<compile_context>
chip_gen: v5e
topology: v5e:2x2
jax: 0.10.0
libtpu: 0.0.40
codegen_flags: <defaults>
</compile_context>

<pallas_src>
import math
from functools import partial

import numpy as np
import jax
import jax.numpy as jnp
from jax.experimental import pallas as pl
from jax.experimental.pallas import tpu as pltpu

# ---------------- small config consistent with the module ----------------
IMG_SIZE = 16
PATCH = 4
IN_CHANS = 1
EMBED_DIM = 32
DEPTH = 2
NUM_HEADS = 4
DEC_EMBED_DIM = 32
DEC_DEPTH = 1
DEC_NUM_HEADS = 4
MLP_RATIO = 4.0
NORM_PIX_LOSS = False
NUM_PATCHES = (IMG_SIZE // PATCH) ** 2
LN_EPS = 1e-5

_VMEM = pl.BlockSpec(memory_space=pltpu.MemorySpace.VMEM)

WEIGHT_NAMES = ("n1_g", "n1_b", "qkv_w", "qkv_b", "proj_w", "proj_b",
                "n2_g", "n2_b", "fc1_w", "fc1_b", "fc2_w", "fc2_b")


# ============================ in-kernel helpers ============================

def _ln(x, g, b, eps):
    mean = jnp.mean(x, axis=-1, keepdims=True)
    var = jnp.mean(jnp.square(x - mean), axis=-1, keepdims=True)
    return (x - mean) * jax.lax.rsqrt(var + eps) * g + b


def _apply_block(x, B, T, num_heads, eps,
                 n1_g, n1_b, qkv_w, qkv_b, proj_w, proj_b,
                 n2_g, n2_b, fc1_w, fc1_b, fc2_w, fc2_b):
    """One pre-norm transformer block on a (B*T, E) activation, fully in VMEM/vregs."""
    BT, E = x.shape
    dh = E // num_heads
    scale = dh ** -0.5

    # ---- attention branch (batch folded into the big matmuls) ----
    h = _ln(x, n1_g, n1_b, eps)
    qkv = jnp.dot(h, qkv_w, preferred_element_type=jnp.float32) + qkv_b      # (B*T, 3E)

    per_sample = []
    for b in range(B):                                          # static unroll (small B)
        rows = qkv[b * T:(b + 1) * T, :]                        # (T, 3E) static slice
        heads = []
        for hd in range(num_heads):                             # static unroll
            lo = hd * dh
            qh = rows[:, lo:lo + dh]
            kh = rows[:, E + lo:E + lo + dh]
            vh = rows[:, 2 * E + lo:2 * E + lo + dh]
            s = jnp.einsum("qd,kd->qk", qh, kh,
                           preferred_element_type=jnp.float32) * scale       # (T, T)
            s = s - jnp.max(s, axis=-1, keepdims=True)
            p = jnp.exp(s)
            p = p / jnp.sum(p, axis=-1, keepdims=True)          # exact softmax norm
            heads.append(jnp.dot(p, vh, preferred_element_type=jnp.float32))  # (T, dh)
        per_sample.append(jnp.concatenate(heads, axis=-1))      # head-concat -> (T, E)
    o = jnp.concatenate(per_sample, axis=0)                     # (B*T, E)
    # single output projection for the whole batch (replaces the per-head partials)
    x = x + jnp.dot(o, proj_w, preferred_element_type=jnp.float32) + proj_b

    # ---- MLP branch ----
    h2 = _ln(x, n2_g, n2_b, eps)
    m = jnp.dot(h2, fc1_w, preferred_element_type=jnp.float32) + fc1_b
    # TODO(synk): torch nn.GELU is exact erf-GELU; tanh approximation used for a
    # guaranteed in-kernel (EUP) lowering.
    m = jax.nn.gelu(m, approximate=True)
    m = jnp.dot(m, fc2_w, preferred_element_type=jnp.float32) + fc2_b
    return x + m


# ============================ Pallas kernels ============================

def _patch_embed_kernel(x_ref, w_ref, b_ref, pos_ref, o_ref, *, batch):
    # x: (N*L, P2), w: (P2, E), b: (1, E), pos: (L, E) -> out (N*L, E)
    y = jnp.dot(x_ref[...], w_ref[...], preferred_element_type=jnp.float32) + b_ref[...]
    pos = jnp.concatenate([pos_ref[...]] * batch, axis=0)
    o_ref[...] = y + pos


def _encoder_stack_kernel(x_ref, n1_g, n1_b, qkv_w, qkv_b, proj_w, proj_b,
                          n2_g, n2_b, fc1_w, fc1_b, fc2_w, fc2_b,
                          fn_g, fn_b, de_w, de_b, o_ref, *,
                          batch, depth, num_heads, eps):
    """All encoder blocks + final norm + decoder_embed fused; single invocation."""
    BT, E = x_ref.shape
    T = BT // batch
    x = x_ref[...]
    for l in range(depth):                                      # static layer unroll
        x = _apply_block(x, batch, T, num_heads, eps,
                         n1_g[l], n1_b[l], qkv_w[l], qkv_b[l], proj_w[l], proj_b[l],
                         n2_g[l], n2_b[l], fc1_w[l], fc1_b[l], fc2_w[l], fc2_b[l])
    y = _ln(x, fn_g[...], fn_b[...], eps)
    # fused decoder_embed linear epilogue
    o_ref[...] = (jnp.dot(y, de_w[...], preferred_element_type=jnp.float32)
                  + de_b[...])


def _decoder_stack_kernel(x_ref, pos_ref, n1_g, n1_b, qkv_w, qkv_b, proj_w, proj_b,
                          n2_g, n2_b, fc1_w, fc1_b, fc2_w, fc2_b,
                          fn_g, fn_b, pr_w, pr_b, tgt_ref, w_ref,
                          pred_ref, num_ref, den_ref, *,
                          batch, depth, num_heads, eps):
    """Decoder pos-add + blocks + final norm + pred head + masked MSE, one invocation."""
    BT, D = x_ref.shape
    T = BT // batch                                             # T = L + 1 (with cls)
    pos = jnp.concatenate([pos_ref[...]] * batch, axis=0)       # (B*T, D)
    x = x_ref[...] + pos
    for l in range(depth):                                      # static layer unroll
        x = _apply_block(x, batch, T, num_heads, eps,
                         n1_g[l], n1_b[l], qkv_w[l], qkv_b[l], proj_w[l], proj_b[l],
                         n2_g[l], n2_b[l], fc1_w[l], fc1_b[l], fc2_w[l], fc2_b[l])
    y = _ln(x, fn_g[...], fn_b[...], eps)
    p = jnp.dot(y, pr_w[...], preferred_element_type=jnp.float32) + pr_b[...]  # (B*T, out)
    # drop the cls row of every sample (static slices + sublane concat)
    p_noc = jnp.concatenate(
        [p[b * T + 1:(b + 1) * T, :] for b in range(batch)], axis=0)           # (B*L, out)
    pred_ref[...] = p_noc

    # fused NaN-safe masked MSE (partials; final divide done in JAX)
    tgt = tgt_ref[...]
    tgt = jnp.where(jnp.isnan(tgt), 0.0, tgt)                   # NaN-safe targets
    w = w_ref[...]                                              # (B*L, 1)
    d = p_noc - tgt
    per_tok = jnp.mean(d * d, axis=-1, keepdims=True)           # (B*L, 1)
    per_tok = jnp.where(w > 0, per_tok, 0.0)
    num_ref[...] = jnp.sum(per_tok * w, axis=0, keepdims=True)
    den_ref[...] = jnp.sum(w, axis=0, keepdims=True)


# ============================ kernel wrappers ============================

def patch_embed(x_patches, w, b, pos2d):
    """x_patches:(N,L,P2) -> (N,L,E) = x@w + b + pos, one un-gridded kernel."""
    N, L, P2 = x_patches.shape
    E = w.shape[1]
    y2d = pl.pallas_call(
        partial(_patch_embed_kernel, batch=N),
        out_shape=jax.ShapeDtypeStruct((N * L, E), jnp.float32),
        in_specs=[_VMEM, _VMEM, _VMEM, _VMEM],
        out_specs=_VMEM,
    )(x_patches.reshape(N * L, P2), w, b, pos2d)
    return y2d.reshape(N, L, E)


def encoder_stack(x, blocks, norm_g, norm_b, de_w, de_b, *, num_heads):
    """Encoder blocks + final norm + decoder_embed fused in one pallas_call."""
    B, T, E = x.shape
    depth = blocks["qkv_w"].shape[0]
    Dd = de_w.shape[1]
    args = ([x.reshape(B * T, E)]
            + [blocks[n] for n in WEIGHT_NAMES]
            + [norm_g, norm_b, de_w, de_b])
    y = pl.pallas_call(
        partial(_encoder_stack_kernel, batch=B, depth=depth,
                num_heads=num_heads, eps=LN_EPS),
        out_shape=jax.ShapeDtypeStruct((B * T, Dd), jnp.float32),
        in_specs=[_VMEM] * len(args),
        out_specs=_VMEM,
    )(*args)
    return y.reshape(B, T, Dd)


def decoder_stack_pred_loss(x, dec_pos2d, blocks, norm_g, norm_b, pr_w, pr_b,
                            target, weight, *, num_heads):
    """Decoder blocks + norm + pred head + masked MSE fused in one pallas_call."""
    B, T, D = x.shape                       # T = L + 1
    L = T - 1
    depth = blocks["qkv_w"].shape[0]
    out_dim = pr_w.shape[1]
    args = ([x.reshape(B * T, D), dec_pos2d]
            + [blocks[n] for n in WEIGHT_NAMES]
            + [norm_g, norm_b, pr_w, pr_b,
               target.reshape(B * L, out_dim), weight.reshape(B * L, 1)])
    pred2d, num, den = pl.pallas_call(
        partial(_decoder_stack_kernel, batch=B, depth=depth,
                num_heads=num_heads, eps=LN_EPS),
        out_shape=(jax.ShapeDtypeStruct((B * L, out_dim), jnp.float32),
                   jax.ShapeDtypeStruct((1, 1), jnp.float32),
                   jax.ShapeDtypeStruct((1, 1), jnp.float32)),
        in_specs=[_VMEM] * len(args),
        out_specs=(_VMEM, _VMEM, _VMEM),
    )(*args)
    return pred2d.reshape(B, L, out_dim), num, den


# ============================ sin-cos positional embedding ============================

def get_1d_sincos_pos_embed_from_grid(embed_dim, pos):
    assert embed_dim % 2 == 0
    omega = np.arange(embed_dim // 2, dtype=np.float64)
    omega /= embed_dim / 2.0
    omega = 1.0 / 10000 ** omega
    pos = pos.reshape(-1)
    out = np.einsum("m,d->md", pos, omega)
    return np.concatenate([np.sin(out), np.cos(out)], axis=1)


def get_2d_sincos_pos_embed(embed_dim, grid_size, cls_token=False):
    grid_h = np.arange(grid_size, dtype=np.float32)
    grid_w = np.arange(grid_size, dtype=np.float32)
    grid = np.meshgrid(grid_w, grid_h)
    grid = np.stack(grid, axis=0).reshape([2, 1, grid_size, grid_size])
    emb_h = get_1d_sincos_pos_embed_from_grid(embed_dim // 2, grid[0])
    emb_w = get_1d_sincos_pos_embed_from_grid(embed_dim // 2, grid[1])
    pos = np.concatenate([emb_h, emb_w], axis=1)
    if cls_token:
        pos = np.concatenate([np.zeros([1, embed_dim]), pos], axis=0)
    return pos.astype(np.float32)


# ============================ parameter init (deterministic) ============================

def _xavier_uniform(key, fan_in, fan_out, shape):
    a = math.sqrt(6.0 / (fan_in + fan_out))
    return jax.random.uniform(key, shape, jnp.float32, -a, a)


def init_blocks(key, depth, dim, mlp_ratio):
    """Per-layer block weights stacked along a leading 'layer' axis."""
    hidden = int(dim * mlp_ratio)
    per_layer = []
    for k in jax.random.split(key, depth):
        kk = jax.random.split(k, 4)
        per_layer.append(dict(
            n1_g=jnp.ones((1, dim), jnp.float32),
            n1_b=jnp.zeros((1, dim), jnp.float32),
            qkv_w=_xavier_uniform(kk[0], dim, 3 * dim, (dim, 3 * dim)),
            qkv_b=jnp.zeros((1, 3 * dim), jnp.float32),
            proj_w=_xavier_uniform(kk[1], dim, dim, (dim, dim)),
            proj_b=jnp.zeros((1, dim), jnp.float32),
            n2_g=jnp.ones((1, dim), jnp.float32),
            n2_b=jnp.zeros((1, dim), jnp.float32),
            fc1_w=_xavier_uniform(kk[2], dim, hidden, (dim, hidden)),
            fc1_b=jnp.zeros((1, hidden), jnp.float32),
            fc2_w=_xavier_uniform(kk[3], hidden, dim, (hidden, dim)),
            fc2_b=jnp.zeros((1, dim), jnp.float32),
        ))
    return {name: jnp.stack([lay[name] for lay in per_layer], axis=0)
            for name in per_layer[0]}


def init_params(key):
    keys = jax.random.split(key, 8)
    grid_size = IMG_SIZE // PATCH
    patch_fan_in = IN_CHANS * PATCH * PATCH
    out_dim = PATCH * PATCH * IN_CHANS
    p = {}
    # PatchEmbed: conv(k=stride=patch) == linear over flattened patches.
    p["patch_w"] = _xavier_uniform(keys[0], patch_fan_in, EMBED_DIM,
                                   (patch_fan_in, EMBED_DIM))
    p["patch_b"] = jnp.zeros((1, EMBED_DIM), jnp.float32)
    p["cls_token"] = 0.02 * jax.random.normal(keys[1], (1, 1, EMBED_DIM), jnp.float32)
    p["pos_embed"] = jnp.asarray(
        get_2d_sincos_pos_embed(EMBED_DIM, grid_size, cls_token=True))[None]
    p["blocks"] = init_blocks(keys[2], DEPTH, EMBED_DIM, MLP_RATIO)
    p["norm_g"] = jnp.ones((1, EMBED_DIM), jnp.float32)
    p["norm_b"] = jnp.zeros((1, EMBED_DIM), jnp.float32)
    p["dec_embed_w"] = _xavier_uniform(keys[3], EMBED_DIM, DEC_EMBED_DIM,
                                       (EMBED_DIM, DEC_EMBED_DIM))
    p["dec_embed_b"] = jnp.zeros((1, DEC_EMBED_DIM), jnp.float32)
    p["mask_token"] = 0.02 * jax.random.normal(keys[4], (1, 1, DEC_EMBED_DIM),
                                               jnp.float32)
    p["dec_pos_embed"] = jnp.asarray(
        get_2d_sincos_pos_embed(DEC_EMBED_DIM, grid_size, cls_token=True))[None]
    p["dec_blocks"] = init_blocks(keys[5], DEC_DEPTH, DEC_EMBED_DIM, MLP_RATIO)
    p["dec_norm_g"] = jnp.ones((1, DEC_EMBED_DIM), jnp.float32)
    p["dec_norm_b"] = jnp.zeros((1, DEC_EMBED_DIM), jnp.float32)
    p["pred_w"] = _xavier_uniform(keys[6], DEC_EMBED_DIM, out_dim,
                                  (DEC_EMBED_DIM, out_dim))
    p["pred_b"] = jnp.zeros((1, out_dim), jnp.float32)
    return p


# ============================ model pieces ============================

def patchify(imgs):
    # imgs: (N, 1, H, W) -> (N, L, p*p*1), same ordering as the torch einsum.
    N, C, H, W = imgs.shape
    p = PATCH
    h = w = H // p
    x = imgs.reshape(N, C, h, p, w, p)
    x = jnp.einsum("nchpwq->nhwpqc", x)
    return x.reshape(N, h * w, p * p * C)


def aod_random_masking(x, mask_ratio, ori_mask, key):
    """Vectorized AOD masking assuming every sample has enough valid coverage."""
    N, L, D = x.shape
    len_keep = int(L * (1 - mask_ratio))
    noise = jax.random.uniform(key, (N, L), jnp.float32)
    # valid tokens first (random order), invalid tokens after (ascending index order)
    invalid_key = 2.0 + jnp.arange(L, dtype=jnp.float32) / L
    sort_key = jnp.where(ori_mask, noise, invalid_key[None, :])
    ids_shuffle = jnp.argsort(sort_key, axis=1)
    ids_restore = jnp.argsort(ids_shuffle, axis=1)
    ids_keep = ids_shuffle[:, :len_keep]
    x_masked = jnp.take_along_axis(
        x, jnp.broadcast_to(ids_keep[:, :, None], (N, len_keep, D)), axis=1)
    kept = jnp.zeros((N, L), jnp.float32).at[
        jnp.arange(N)[:, None], ids_keep].set(1.0)
    new_mask = ori_mask.astype(jnp.float32) * kept
    masked_mask = 1.0 - new_mask        # 1 = removed or originally invalid
    return x_masked, masked_mask, ids_restore


def forward_encoder(params, imgs, mask_ratio, mask_key):
    N = imgs.shape[0]
    patches_raw = patchify(imgs)
    # TODO(synk): original code builds a per-pixel (N, C*H*W) mask and indexes it as
    # per-patch (only consistent when H*W == num_patches); we use a per-patch mask.
    ori_mask = jnp.logical_not(jnp.any(jnp.isnan(patches_raw), axis=-1))   # (N, L)
    x_patches = jnp.where(jnp.isnan(patches_raw), 0.0, patches_raw)        # (N, L, p*p)
    x = patch_embed(x_patches, params["patch_w"], params["patch_b"],
                    params["pos_embed"][0, 1:, :])                         # (N, L, E)
    # TODO(synk): dynamic per-sample batch filtering (batch_mask) is not traceable;
    # we assume every sample has coverage > 1 - mask_ratio (true for NaN-free inputs).
    x_masked, masked_mask, ids_restore = aod_random_masking(
        x, mask_ratio, ori_mask, mask_key)
    cls_tok = params["cls_token"] + params["pos_embed"][:, :1, :]
    cls_tokens = jnp.broadcast_to(cls_tok, (N, 1, EMBED_DIM))
    x = jnp.concatenate([cls_tokens, x_masked], axis=1)                    # (N, T, E)
    # encoder blocks + final norm + decoder_embed fused in one kernel
    latent_dec = encoder_stack(x, params["blocks"], params["norm_g"], params["norm_b"],
                               params["dec_embed_w"], params["dec_embed_b"],
                               num_heads=NUM_HEADS)
    return latent_dec, masked_mask, ids_restore, ori_mask


def forward_decoder_and_loss(params, x, ids_restore, target, weight):
    """x already decoder-embedded (fused into the encoder kernel epilogue)."""
    B, T, D = x.shape
    L = ids_restore.shape[1]
    n_mask = L + 1 - T
    mask_tokens = jnp.broadcast_to(params["mask_token"], (B, n_mask, D))
    x_ = jnp.concatenate([x[:, 1:, :], mask_tokens], axis=1)               # (B, L, D)
    x_ = jnp.take_along_axis(
        x_, jnp.broadcast_to(ids_restore[:, :, None], (B, L, D)), axis=1)
    x = jnp.concatenate([x[:, :1, :], x_], axis=1)                         # (B, L+1, D)
    pred, num, den = decoder_stack_pred_loss(
        x, params["dec_pos_embed"][0], params["dec_blocks"],
        params["dec_norm_g"], params["dec_norm_b"],
        params["pred_w"], params["pred_b"], target, weight,
        num_heads=DEC_NUM_HEADS)
    den_s = den[0, 0]
    loss = jnp.where(den_s > 0, num[0, 0] / den_s, 0.0)
    return pred, loss


def forward(params, imgs, mask_key, mask_ratio=0.75):
    latent, mask, ids_restore, ori_mask = forward_encoder(
        params, imgs, mask_ratio, mask_key)
    target = patchify(imgs)            # may contain NaN; zeroed inside the loss kernel
    if NORM_PIX_LOSS:
        mean = target.mean(axis=-1, keepdims=True)
        var = target.var(axis=-1, keepdims=True)
        target = (target - mean) / (var + 1e-6) ** 0.5
    weight = mask * ori_mask.astype(jnp.float32)
    pred, loss = forward_decoder_and_loss(params, latent, ids_restore, target, weight)
    return loss, pred, mask


# ============================ main ============================

if __name__ == "__main__":
    key = jax.random.PRNGKey(0)
    k_img, k_mask = jax.random.split(key)
    imgs = jax.random.normal(k_img, (2, IN_CHANS, IMG_SIZE, IMG_SIZE), jnp.float32)
    params = init_params(jax.random.PRNGKey(42))

    fwd = jax.jit(lambda p, im, mk: forward(p, im, mk, 0.75))
    loss, pred, mask = fwd(params, imgs, k_mask)
    jax.block_until_ready((loss, pred, mask))

    assert pred.shape == (2, NUM_PATCHES, PATCH * PATCH * IN_CHANS)
    assert mask.shape == (2, NUM_PATCHES)
    assert bool(jnp.isfinite(loss))
    print("KERNEL_OK")
</pallas_src>

<mosaic_0001>
module attributes {stable_mosaic.version = 11 : i64} {
  func.func @_patch_embed_kernel(%arg0: memref<32x16xf32, #tpu.memory_space<vmem>>, %arg1: memref<16x32xf32, #tpu.memory_space<vmem>>, %arg2: memref<1x32xf32, #tpu.memory_space<vmem>>, %arg3: memref<16x32xf32, #tpu.memory_space<vmem>>, %arg4: memref<32x32xf32, #tpu.memory_space<vmem>>) attributes {dimension_semantics = [], scalar_prefetch = 0 : i64, scratch_operands = 0 : i64, tpu.core_type = #tpu.core_type<tc>} {
    %c0 = arith.constant 0 : index
    %c0_0 = arith.constant 0 : index
    %0 = vector.load %arg0[%c0, %c0_0] : memref<32x16xf32, #tpu.memory_space<vmem>>, vector<32x16xf32>
    %c0_1 = arith.constant 0 : index
    %c0_2 = arith.constant 0 : index
    %1 = vector.load %arg1[%c0_1, %c0_2] : memref<16x32xf32, #tpu.memory_space<vmem>>, vector<16x32xf32>
    %cst = arith.constant dense<0.000000e+00> : vector<32x32xf32>
    %2 = tpu.matmul %0, %1, %cst {dimension_numbers = #tpu.dot_dimension_numbers<[1], [0], [0], [1], [0, 0, 1, 1], [], []>} : vector<32x16xf32>, vector<16x32xf32>, vector<32x32xf32> -> vector<32x32xf32>
    %c0_3 = arith.constant 0 : index
    %c0_4 = arith.constant 0 : index
    %3 = vector.load %arg2[%c0_3, %c0_4] : memref<1x32xf32, #tpu.memory_space<vmem>>, vector<1x32xf32>
    %4 = vector.broadcast %3 : vector<1x32xf32> to vector<32x32xf32>
    %5 = arith.addf %2, %4 : vector<32x32xf32>
    %c0_5 = arith.constant 0 : index
    %c0_6 = arith.constant 0 : index
    %6 = vector.load %arg3[%c0_5, %c0_6] : memref<16x32xf32, #tpu.memory_space<vmem>>, vector<16x32xf32>
    %7 = tpu.concatenate %6, %6 in 0 : vector<16x32xf32>, vector<16x32xf32> -> vector<32x32xf32>
    %8 = arith.addf %5, %7 : vector<32x32xf32>
    %c0_7 = arith.constant 0 : index
    %c0_8 = arith.constant 0 : index
    %9 = vector.load %arg4[%c0_7, %c0_8] : memref<32x32xf32, #tpu.memory_space<vmem>>, vector<32x32xf32>
    tpu.vector_store %arg4[%c0_7, %c0_8], %8 {strides = array<i32>} : memref<32x32xf32, #tpu.memory_space<vmem>>, vector<32x32xf32>,
    return
  }
}

module attributes {stable_mosaic.version = 11 : i64} {
  func.func @_encoder_stack_kernel(%arg0: memref<10x32xf32, #tpu.memory_space<vmem>>, %arg1: memref<2x1x32xf32, #tpu.memory_space<vmem>>, %arg2: memref<2x1x32xf32, #tpu.memory_space<vmem>>, %arg3: memref<2x32x96xf32, #tpu.memory_space<vmem>>, %arg4: memref<2x1x96xf32, #tpu.memory_space<vmem>>, %arg5: memref<2x32x32xf32, #tpu.memory_space<vmem>>, %arg6: memref<2x1x32xf32, #tpu.memory_space<vmem>>, %arg7: memref<2x1x32xf32, #tpu.memory_space<vmem>>, %arg8: memref<2x1x32xf32, #tpu.memory_space<vmem>>, %arg9: memref<2x32x128xf32, #tpu.memory_space<vmem>>, %arg10: memref<2x1x128xf32, #tpu.memory_space<vmem>>, %arg11: memref<2x128x32xf32, #tpu.memory_space<vmem>>, %arg12: memref<2x1x32xf32, #tpu.memory_space<vmem>>, %arg13: memref<1x32xf32, #tpu.memory_space<vmem>>, %arg14: memref<1x32xf32, #tpu.memory_space<vmem>>, %arg15: memref<32x32xf32, #tpu.memory_space<vmem>>, %arg16: memref<1x32xf32, #tpu.memory_space<vmem>>, %arg17: memref<10x32xf32, #tpu.memory_space<vmem>>) attributes {dimension_semantics = [], scalar_prefetch = 0 : i64, scratch_operands = 0 : i64, tpu.core_type = #tpu.core_type<tc>} {
    %c0 = arith.constant 0 : index
    %c0_0 = arith.constant 0 : index
    %0 = vector.load %arg0[%c0, %c0_0] : memref<10x32xf32, #tpu.memory_space<vmem>>, vector<10x32xf32>
    %c0_1 = arith.constant 0 : index
    %c0_2 = arith.constant 0 : index
    %c0_3 = arith.constant 0 : index
    %1 = vector.load %arg1[%c0_1, %c0_2, %c0_3] : memref<2x1x32xf32, #tpu.memory_space<vmem>>, vector<1x1x32xf32>
    %2 = vector.shape_cast %1 : vector<1x1x32xf32> to vector<1x32xf32>
    %c0_4 = arith.constant 0 : index
    %c0_5 = arith.constant 0 : index
    %c0_6 = arith.constant 0 : index
    %3 = vector.load %arg2[%c0_4, %c0_5, %c0_6] : memref<2x1x32xf32, #tpu.memory_space<vmem>>, vector<1x1x32xf32>
    %4 = vector.shape_cast %3 : vector<1x1x32xf32> to vector<1x32xf32>
    %c0_7 = arith.constant 0 : index
    %c0_8 = arith.constant 0 : index
    %c0_9 = arith.constant 0 : index
    %5 = vector.load %arg3[%c0_7, %c0_8, %c0_9] : memref<2x32x96xf32, #tpu.memory_space<vmem>>, vector<1x32x96xf32>
    %6 = vector.shape_cast %5 : vector<1x32x96xf32> to vector<32x96xf32>
    %c0_10 = arith.constant 0 : index
    %c0_11 = arith.constant 0 : index
    %c0_12 = arith.constant 0 : index
    %7 = vector.load %arg4[%c0_10, %c0_11, %c0_12] : memref<2x1x96xf32, #tpu.memory_space<vmem>>, vector<1x1x96xf32>
    %8 = vector.shape_cast %7 : vector<1x1x96xf32> to vector<1x96xf32>
    %c0_13 = arith.constant 0 : index
    %c0_14 = arith.constant 0 : index
    %c0_15 = arith.constant 0 : index
    %9 = vector.load %arg5[%c0_13, %c0_14, %c0_15] : memref<2x32x32xf32, #tpu.memory_space<vmem>>, vector<1x32x32xf32>
    %10 = vector.shape_cast %9 : vector<1x32x32xf32> to vector<32x32xf32>
    %c0_16 = arith.constant 0 : index
    %c0_17 = arith.constant 0 : index
    %c0_18 = arith.constant 0 : index
    %11 = vector.load %arg6[%c0_16, %c0_17, %c0_18] : memref<2x1x32xf32, #tpu.memory_space<vmem>>, vector<1x1x32xf32>
    %12 = vector.shape_cast %11 : vector<1x1x32xf32> to vector<1x32xf32>
    %c0_19 = arith.constant 0 : index
    %c0_20 = arith.constant 0 : index
    %c0_21 = arith.constant 0 : index
    %13 = vector.load %arg7[%c0_19, %c0_20, %c0_21] : memref<2x1x32xf32, #tpu.memory_space<vmem>>, vector<1x1x32xf32>
    %14 = vector.shape_cast %13 : vector<1x1x32xf32> to vector<1x32xf32>
    %c0_22 = arith.constant 0 : index
    %c0_23 = arith.constant 0 : index
    %c0_24 = arith.constant 0 : index
    %15 = vector.load %arg8[%c0_22, %c0_23, %c0_24] : memref<2x1x32xf32, #tpu.memory_space<vmem>>, vector<1x1x32xf32>
    %16 = vector.shape_cast %15 : vector<1x1x32xf32> to vector<1x32xf32>
    %c0_25 = arith.constant 0 : index
    %c0_26 = arith.constant 0 : index
    %c0_27 = arith.constant 0 : index
    %17 = vector.load %arg9[%c0_25, %c0_26, %c0_27] : memref<2x32x128xf32, #tpu.memory_space<vmem>>, vector<1x32x128xf32>
    %18 = vector.shape_cast %17 : vector<1x32x128xf32> to vector<32x128xf32>
    %c0_28 = arith.constant 0 : index
    %c0_29 = arith.constant 0 : index
    %c0_30 = arith.constant 0 : index
    %19 = vector.load %arg10[%c0_28, %c0_29, %c0_30] : memref<2x1x128xf32, #tpu.memory_space<vmem>>, vector<1x1x128xf32>
    %20 = vector.shape_cast %19 : vector<1x1x128xf32> to vector<1x128xf32>
    %c0_31 = arith.constant 0 : index
    %c0_32 = arith.constant 0 : index
    %c0_33 = arith.constant 0 : index
    %21 = vector.load %arg11[%c0_31, %c0_32, %c0_33] : memref<2x128x32xf32, #tpu.memory_space<vmem>>, vector<1x128x32xf32>
    %22 = vector.shape_cast %21 : vector<1x128x32xf32> to vector<128x32xf32>
    %c0_34 = arith.constant 0 : index
    %c0_35 = arith.constant 0 : index
    %c0_36 = arith.constant 0 : index
    %23 = vector.load %arg12[%c0_34, %c0_35, %c0_36] : memref<2x1x32xf32, #tpu.memory_space<vmem>>, vector<1x1x32xf32>
    %24 = vector.shape_cast %23 : vector<1x1x32xf32> to vector<1x32xf32>
    %cst = arith.constant dense<0.000000e+00> : vector<10xf32>
    %25 = vector.multi_reduction <add>, %0, %cst [1] : vector<10x32xf32> to vector<10xf32>
    %26 = vector.shape_cast %25 : vector<10xf32> to vector<10x1xf32>
    %cst_37 = arith.constant 3.200000e+01 : f32
    %27 = vector.broadcast %cst_37 : f32 to vector<10x1xf32>
    %28 = arith.divf %26, %27 : vector<10x1xf32>
    %29 = vector.broadcast %28 : vector<10x1xf32> to vector<10x32xf32>
    %30 = arith.subf %0, %29 : vector<10x32xf32>
    %31 = arith.mulf %30, %30 : vector<10x32xf32>
    %cst_38 = arith.constant dense<0.000000e+00> : vector<10xf32>
    %32 = vector.multi_reduction <add>, %31, %cst_38 [1] : vector<10x32xf32> to vector<10xf32>
    %33 = vector.shape_cast %32 : vector<10xf32> to vector<10x1xf32>
    %cst_39 = arith.constant 3.200000e+01 : f32
    %34 = vector.broadcast %cst_39 : f32 to vector<10x1xf32>
    %35 = arith.divf %33, %34 : vector<10x1xf32>
    %36 = vector.broadcast %28 : vector<10x1xf32> to vector<10x32xf32>
    %37 = arith.subf %0, %36 : vector<10x32xf32>
    %cst_40 = arith.constant 9.99999974E-6 : f32
    %38 = vector.broadcast %cst_40 : f32 to vector<10x1xf32>
    %39 = arith.addf %35, %38 : vector<10x1xf32>
    %40 = math.rsqrt %39 : vector<10x1xf32>
    %41 = vector.broadcast %40 : vector<10x1xf32> to vector<10x32xf32>
    %42 = arith.mulf %37, %41 : vector<10x32xf32>
    %43 = vector.broadcast %2 : vector<1x32xf32> to vector<10x32xf32>
    %44 = arith.mulf %42, %43 : vector<10x32xf32>
    %45 = vector.broadcast %4 : vector<1x32xf32> to vector<10x32xf32>
    %46 = arith.addf %44, %45 : vector<10x32xf32>
    %cst_41 = arith.constant dense<0.000000e+00> : vector<10x96xf32>
    %47 = tpu.matmul %46, %6, %cst_41 {dimension_numbers = #tpu.dot_dimension_numbers<[1], [0], [0], [1], [0, 0, 1, 1], [], []>} : vector<10x32xf32>, vector<32x96xf32>, vector<10x96xf32> -> vector<10x96xf32>
    %48 = vector.broadcast %8 : vector<1x96xf32> to vector<10x96xf32>
    %49 = arith.addf %47, %48 : vector<10x96xf32>
    %50 = vector.extract_strided_slice %49 {offsets = [0, 0], sizes = [5, 96], strides = [1, 1]} : vector<10x96xf32> to vector<5x96xf32>
    %51 = vector.extract_strided_slice %50 {offsets = [0, 0], sizes = [5, 8], strides = [1, 1]} : vector<5x96xf32> to vector<5x8xf32>
    %52 = vector.extract_strided_slice %50 {offsets = [0, 32], sizes = [5, 8], strides = [1, 1]} : vector<5x96xf32> to vector<5x8xf32>
    %53 = vector.extract_strided_slice %50 {offsets = [0, 64], sizes = [5, 8], strides = [1, 1]} : vector<5x96xf32> to vector<5x8xf32>
    "tpu.trace_start"() <{level = 10 : i32, message = "qd,kd->qk"}> : () -> ()
    %cst_42 = arith.constant dense<0.000000e+00> : vector<5x5xf32>
    %54 = tpu.matmul %51, %52, %cst_42 {dimension_numbers = #tpu.dot_dimension_numbers<[1], [1], [0], [0], [0, 0, 1, 0], [], []>} : vector<5x8xf32>, vector<5x8xf32>, vector<5x5xf32> -> vector<5x5xf32>
    "tpu.trace_stop"() : () -> ()
    %cst_43 = arith.constant 0.353553385 : f32
    %55 = vector.broadcast %cst_43 : f32 to vector<5x5xf32>
    %56 = arith.mulf %54, %55 : vector<5x5xf32>
    %cst_44 = arith.constant dense<0xFF800000> : vector<5xf32>
    %57 = vector.multi_reduction <maximumf>, %56, %cst_44 [1] : vector<5x5xf32> to vector<5xf32>
    %58 = vector.shape_cast %57 : vector<5xf32> to vector<5x1xf32>
    %59 = vector.broadcast %58 : vector<5x1xf32> to vector<5x5xf32>
    %60 = arith.subf %56, %59 : vector<5x5xf32>
    %61 = math.exp %60 : vector<5x5xf32>
    %cst_45 = arith.constant dense<0.000000e+00> : vector<5xf32>
    %62 = vector.multi_reduction <add>, %61, %cst_45 [1] : vector<5x5xf32> to vector<5xf32>
    %63 = vector.shape_cast %62 : vector<5xf32> to vector<5x1xf32>
    %64 = vector.broadcast %63 : vector<5x1xf32> to vector<5x5xf32>
    %65 = arith.divf %61, %64 : vector<5x5xf32>
    %cst_46 = arith.constant dense<0.000000e+00> : vector<5x8xf32>
    %66 = tpu.matmul %65, %53, %cst_46 {dimension_numbers = #tpu.dot_dimension_numbers<[1], [0], [0], [1], [0, 0, 1, 1], [], []>} : vector<5x5xf32>, vector<5x8xf32>, vector<5x8xf32> -> vector<5x8xf32>
    %67 = vector.extract_strided_slice %50 {offsets = [0, 8], sizes = [5, 8], strides = [1, 1]} : vector<5x96xf32> to vector<5x8xf32>
    %68 = vector.extract_strided_slice %50 {offsets = [0, 40], sizes = [5, 8], strides = [1, 1]} : vector<5x96xf32> to vector<5x8xf32>
    %69 = vector.extract_strided_slice %50 {offsets = [0, 72], sizes = [5, 8], strides = [1, 1]} : vector<5x96xf32> to vector<5x8xf32>
    "tpu.trace_start"() <{level = 10 : i32, message = "qd,kd->qk"}> : () -> ()
    %cst_47 = arith.constant dense<0.000000e+00> : vector<5x5xf32>
    %70 = tpu.matmul %67, %68, %cst_47 {dimension_numbers = #tpu.dot_dimension_numbers<[1], [1], [0], [0], [0, 0, 1, 0], [], []>} : vector<5x8xf32>, vector<5x8xf32>, vector<5x5xf32> -> vector<5x5xf32>
    "tpu.trace_stop"() : () -> ()
    %cst_48 = arith.constant 0.353553385 : f32
    %71 = vector.broadcast %cst_48 : f32 to vector<5x5xf32>
    %72 = arith.mulf %70, %71 : vector<5x5xf32>
    %cst_49 = arith.constant dense<0xFF800000> : vector<5xf32>
    %73 = vector.multi_reduction <maximumf>, %72, %cst_49 [1] : vector<5x5xf32> to vector<5xf32>
    %74 = vector.shape_cast %73 : vector<5xf32> to vector<5x1xf32>
    %75 = vector.broadcast %74 : vector<5x1xf32> to vector<5x5xf32>
    %76 = arith.subf %72, %75 : vector<5x5xf32>
    %77 = math.exp %76 : vector<5x5xf32>
    %cst_50 = arith.constant dense<0.000000e+00> : vector<5xf32>
    %78 = vector.multi_reduction <add>, %77, %cst_50 [1] : vector<5x5xf32> to vector<5xf32>
    %79 = vector.shape_cast %78 : vector<5xf32> to vector<5x1xf32>
    %80 = vector.broadcast %79 : vector<5x1xf32> to vector<5x5xf32>
    %81 = arith.divf %77, %80 : vector<5x5xf32>
    %cst_51 = arith.constant dense<0.000000e+00> : vector<5x8xf32>
    %82 = tpu.matmul %81, %69, %cst_51 {dimension_numbers = #tpu.dot_dimension_numbers<[1], [0], [0], [1], [0, 0, 1, 1], [], []>} : vector<5x5xf32>, vector<5x8xf32>, vector<5x8xf32> -> vector<5x8xf32>
    %83 = vector.extract_strided_slice %50 {offsets = [0, 16], sizes = [5, 8], strides = [1, 1]} : vector<5x96xf32> to vector<5x8xf32>
    %84 = vector.extract_strided_slice %50 {offsets = [0, 48], sizes = [5, 8], strides = [1, 1]} : vector<5x96xf32> to vector<5x8xf32>
    %85 = vector.extract_strided_slice %50 {offsets = [0, 80], sizes = [5, 8], strides = [1, 1]} : vector<5x96xf32> to vector<5x8xf32>
    "tpu.trace_start"() <{level = 10 : i32, message = "qd,kd->qk"}> : () -> ()
    %cst_52 = arith.constant dense<0.000000e+00> : vector<5x5xf32>
    %86 = tpu.matmul %83, %84, %cst_52 {dimension_numbers = #tpu.dot_dimension_numbers<[1], [1], [0], [0], [0, 0, 1, 0], [], []>} : vector<5x8xf32>, vector<5x8xf32>, vector<5x5xf32> -> vector<5x5xf32>
    "tpu.trace_stop"() : () -> ()
    %cst_53 = arith.constant 0.353553385 : f32
    %87 = vector.broadcast %cst_53 : f32 to vector<5x5xf32>
    %88 = arith.mulf %86, %87 : vector<5x5xf32>
    %cst_54 = arith.constant dense<0xFF800000> : vector<5xf32>
    %89 = vector.multi_reduction <maximumf>, %88, %cst_54 [1] : vector<5x5xf32> to vector<5xf32>
    %90 = vector.shape_cast %89 : vector<5xf32> to vector<5x1xf32>
    %91 = vector.broadcast %90 : vector<5x1xf32> to vector<5x5xf32>
    %92 = arith.subf %88, %91 : vector<5x5xf32>
    %93 = math.exp %92 : vector<5x5xf32>
    %cst_55 = arith.constant dense<0.000000e+00> : vector<5xf32>
    %94 = vector.multi_reduction <add>, %93, %cst_55 [1] : vector<5x5xf32> to vector<5xf32>
    %95 = vector.shape_cast %94 : vector<5xf32> to vector<5x1xf32>
    %96 = vector.broadcast %95 : vector<5x1xf32> to vector<5x5xf32>
    %97 = arith.divf %93, %96 : vector<5x5xf32>
    %cst_56 = arith.constant dense<0.000000e+00> : vector<5x8xf32>
    %98 = tpu.matmul %97, %85, %cst_56 {dimension_numbers = #tpu.dot_dimension_numbers<[1], [0], [0], [1], [0, 0, 1, 1], [], []>} : vector<5x5xf32>, vector<5x8xf32>, vector<5x8xf32> -> vector<5x8xf32>
    %99 = vector.extract_strided_slice %50 {offsets = [0, 24], sizes = [5, 8], strides = [1, 1]} : vector<5x96xf32> to vector<5x8xf32>
    %100 = vector.extract_strided_slice %50 {offsets = [0, 56], sizes = [5, 8], strides = [1, 1]} : vector<5x96xf32> to vector<5x8xf32>
    %101 = vector.extract_strided_slice %50 {offsets = [0, 88], sizes = [5, 8], strides = [1, 1]} : vector<5x96xf32> to vector<5x8xf32>
    "tpu.trace_start"() <{level = 10 : i32, message = "qd,kd->qk"}> : () -> ()
    %cst_57 = arith.constant dense<0.000000e+00> : vector<5x5xf32>
    %102 = tpu.matmul %99, %100, %cst_57 {dimension_numbers = #tpu.dot_dimension_numbers<[1], [1], [0], [0], [0, 0, 1, 0], [], []>} : vector<5x8xf32>, vector<5x8xf32>, vector<5x5xf32> -> vector<5x5xf32>
    "tpu.trace_stop"() : () -> ()
    %cst_58 = arith.constant 0.353553385 : f32
    %103 = vector.broadcast %cst_58 : f32 to vector<5x5xf32>
    %104 = arith.mulf %102, %103 : vector<5x5xf32>
    %cst_59 = arith.constant dense<0xFF800000> : vector<5xf32>
    %105 = vector.multi_reduction <maximumf>, %104, %cst_59 [1] : vector<5x5xf32> to vector<5xf32>
    %106 = vector.shape_cast %105 : vector<5xf32> to vector<5x1xf32>
    %107 = vector.broadcast %106 : vector<5x1xf32> to vector<5x5xf32>
    %108 = arith.subf %104, %107 : vector<5x5xf32>
    %109 = math.exp %108 : vector<5x5xf32>
    %cst_60 = arith.constant dense<0.000000e+00> : vector<5xf32>
    %110 = vector.multi_reduction <add>, %109, %cst_60 [1] : vector<5x5xf32> to vector<5xf32>
    %111 = vector.shape_cast %110 : vector<5xf32> to vector<5x1xf32>
    %112 = vector.broadcast %111 : vector<5x1xf32> to vector<5x5xf32>
    %113 = arith.divf %109, %112 : vector<5x5xf32>
    %cst_61 = arith.constant dense<0.000000e+00> : vector<5x8xf32>
    %114 = tpu.matmul %113, %101, %cst_61 {dimension_numbers = #tpu.dot_dimension_numbers<[1], [0], [0], [1], [0, 0, 1, 1], [], []>} : vector<5x5xf32>, vector<5x8xf32>, vector<5x8xf32> -> vector<5x8xf32>
    %115 = tpu.concatenate %66, %82, %98, %114 in 1 : vector<5x8xf32>, vector<5x8xf32>, vector<5x8xf32>, vector<5x8xf32> -> vector<5x32xf32>
    %116 = vector.extract_strided_slice %49 {offsets = [5, 0], sizes = [5, 96], strides = [1, 1]} : vector<10x96xf32> to vector<5x96xf32>
    %117 = vector.extract_strided_slice %116 {offsets = [0, 0], sizes = [5, 8], strides = [1, 1]} : vector<5x96xf32> to vector<5x8xf32>
    %118 = vector.extract_strided_slice %116 {offsets = [0, 32], sizes = [5, 8], strides = [1, 1]} : vector<5x96xf32> to vector<5x8xf32>
    %119 = vector.extract_strided_slice %116 {offsets = [0, 64], sizes = [5, 8], strides = [1, 1]} : vector<5x96xf32> to vector<5x8xf32>
    "tpu.trace_start"() <{level = 10 : i32, message = "qd,kd->qk"}> : () -> ()
    %cst_62 = arith.constant dense<0.000000e+00> : vector<5x5xf32>
    %120 = tpu.matmul %117, %118, %cst_62 {dimension_numbers = #tpu.dot_dimension_numbers<[1], [1], [0], [0], [0, 0, 1, 0], [], []>} : vector<5x8xf32>, vector<5x8xf32>, vector<5x5xf32> -> vector<5x5xf32>
    "tpu.trace_stop"() : () -> ()
    %cst_63 = arith.constant 0.353553385 : f32
    %121 = vector.broadcast %cst_63 : f32 to vector<5x5xf32>
    %122 = arith.mulf %120, %121 : vector<5x5xf32>
    %cst_64 = arith.constant dense<0xFF800000> : vector<5xf32>
    %123 = vector.multi_reduction <maximumf>, %122, %cst_64 [1] : vector<5x5xf32> to vector<5xf32>
    %124 = vector.shape_cast %123 : vector<5xf32> to vector<5x1xf32>
    %125 = vector.broadcast %124 : vector<5x1xf32> to vector<5x5xf32>
    %126 = arith.subf %122, %125 : vector<5x5xf32>
    %127 = math.exp %126 : vector<5x5xf32>
    %cst_65 = arith.constant dense<0.000000e+00> : vector<5xf32>
    %128 = vector.multi_reduction <add>, %127, %cst_65 [1] : vector<5x5xf32> to vector<5xf32>
    %129 = vector.shape_cast %128 : vector<5xf32> to vector<5x1xf32>
    %130 = vector.broadcast %129 : vector<5x1xf32> to vector<5x5xf32>
    %131 = arith.divf %127, %130 : vector<5x5xf32>
    %cst_66 = arith.constant dense<0.000000e+00> : vector<5x8xf32>
    %132 = tpu.matmul %131, %119, %cst_66 {dimension_numbers = #tpu.dot_dimension_numbers<[1], [0], [0], [1], [0, 0, 1, 1], [], []>} : vector<5x5xf32>, vector<5x8xf32>, vector<5x8xf32> -> vector<5x8xf32>
    %133 = vector.extract_strided_slice %116 {offsets = [0, 8], sizes = [5, 8], strides = [1, 1]} : vector<5x96xf32> to vector<5x8xf32>
    %134 = vector.extract_strided_slice %116 {offsets = [0, 40], sizes = [5, 8], strides = [1, 1]} : vector<5x96xf32> to vector<5x8xf32>
    %135 = vector.extract_strided_slice %116 {offsets = [0, 72], sizes = [5, 8], strides = [1, 1]} : vector<5x96xf32> to vector<5x8xf32>
    "tpu.trace_start"() <{level = 10 : i32, message = "qd,kd->qk"}> : () -> ()
    %cst_67 = arith.constant dense<0.000000e+00> : vector<5x5xf32>
    %136 = tpu.matmul %133, %134, %cst_67 {dimension_numbers = #tpu.dot_dimension_numbers<[1], [1], [0], [0], [0, 0, 1, 0], [], []>} : vector<5x8xf32>, vector<5x8xf32>, vector<5x5xf32> -> vector<5x5xf32>
    "tpu.trace_stop"() : () -> ()
    %cst_68 = arith.constant 0.353553385 : f32
    %137 = vector.broadcast %cst_68 : f32 to vector<5x5xf32>
    %138 = arith.mulf %136, %137 : vector<5x5xf32>
    %cst_69 = arith.constant dense<0xFF800000> : vector<5xf32>
    %139 = vector.multi_reduction <maximumf>, %138, %cst_69 [1] : vector<5x5xf32> to vector<5xf32>
    %140 = vector.shape_cast %139 : vector<5xf32> to vector<5x1xf32>
    %141 = vector.broadcast %140 : vector<5x1xf32> to vector<5x5xf32>
    %142 = arith.subf %138, %141 : vector<5x5xf32>
    %143 = math.exp %142 : vector<5x5xf32>
    %cst_70 = arith.constant dense<0.000000e+00> : vector<5xf32>
    %144 = vector.multi_reduction <add>, %143, %cst_70 [1] : vector<5x5xf32> to vector<5xf32>
    %145 = vector.shape_cast %144 : vector<5xf32> to vector<5x1xf32>
    %146 = vector.broadcast %145 : vector<5x1xf32> to vector<5x5xf32>
    %147 = arith.divf %143, %146 : vector<5x5xf32>
    %cst_71 = arith.constant dense<0.000000e+00> : vector<5x8xf32>
    %148 = tpu.matmul %147, %135, %cst_71 {dimension_numbers = #tpu.dot_dimension_numbers<[1], [0], [0], [1], [0, 0, 1, 1], [], []>} : vector<5x5xf32>, vector<5x8xf32>, vector<5x8xf32> -> vector<5x8xf32>
    %149 = vector.extract_strided_slice %116 {offsets = [0, 16], sizes = [5, 8], strides = [1, 1]} : vector<5x96xf32> to vector<5x8xf32>
    %150 = vector.extract_strided_slice %116 {offsets = [0, 48], sizes = [5, 8], strides = [1, 1]} : vector<5x96xf32> to vector<5x8xf32>
    %151 = vector.extract_strided_slice %116 {offsets = [0, 80], sizes = [5, 8], strides = [1, 1]} : vector<5x96xf32> to vector<5x8xf32>
    "tpu.trace_start"() <{level = 10 : i32, message = "qd,kd->qk"}> : () -> ()
    %cst_72 = arith.constant dense<0.000000e+00> : vector<5x5xf32>
    %152 = tpu.matmul %149, %150, %cst_72 {dimension_numbers = #tpu.dot_dimension_numbers<[1], [1], [0], [0], [0, 0, 1, 0], [], []>} : vector<5x8xf32>, vector<5x8xf32>, vector<5x5xf32> -> vector<5x5xf32>
    "tpu.trace_stop"() : () -> ()
    %cst_73 = arith.constant 0.353553385 : f32
    %153 = vector.broadcast %cst_73 : f32 to vector<5x5xf32>
    %154 = arith.mulf %152, %153 : vector<5x5xf32>
    %cst_74 = arith.constant dense<0xFF800000> : vector<5xf32>
    %155 = vector.multi_reduction <maximumf>, %154, %cst_74 [1] : vector<5x5xf32> to vector<5xf32>
    %156 = vector.shape_cast %155 : vector<5xf32> to vector<5x1xf32>
    %157 = vector.broadcast %156 : vector<5x1xf32> to vector<5x5xf32>
    %158 = arith.subf %154, %157 : vector<5x5xf32>
    %159 = math.exp %158 : vector<5x5xf32>
    %cst_75 = arith.constant dense<0.000000e+00> : vector<5xf32>
    %160 = vector.multi_reduction <add>, %159, %cst_75 [1] : vector<5x5xf32> to vector<5xf32>
    %161 = vector.shape_cast %160 : vector<5xf32> to vector<5x1xf32>
    %162 = vector.broadcast %161 : vector<5x1xf32> to vector<5x5xf32>
    %163 = arith.divf %159, %162 : vector<5x5xf32>
    %cst_76 = arith.constant dense<0.000000e+00> : vector<5x8xf32>
    %164 = tpu.matmul %163, %151, %cst_76 {dimension_numbers = #tpu.dot_dimension_numbers<[1], [0], [0], [1], [0, 0, 1, 1], [], []>} : vector<5x5xf32>, vector<5x8xf32>, vector<5x8xf32> -> vector<5x8xf32>
    %165 = vector.extract_strided_slice %116 {offsets = [0, 24], sizes = [5, 8], strides = [1, 1]} : vector<5x96xf32> to vector<5x8xf32>
    %166 = vector.extract_strided_slice %116 {offsets = [0, 56], sizes = [5, 8], strides = [1, 1]} : vector<5x96xf32> to vector<5x8xf32>
    %167 = vector.extract_strided_slice %116 {offsets = [0, 88], sizes = [5, 8], strides = [1, 1]} : vector<5x96xf32> to vector<5x8xf32>
    "tpu.trace_start"() <{level = 10 : i32, message = "qd,kd->qk"}> : () -> ()
    %cst_77 = arith.constant dense<0.000000e+00> : vector<5x5xf32>
    %168 = tpu.matmul %165, %166, %cst_77 {dimension_numbers = #tpu.dot_dimension_numbers<[1], [1], [0], [0], [0, 0, 1, 0], [], []>} : vector<5x8xf32>, vector<5x8xf32>, vector<5x5xf32> -> vector<5x5xf32>
    "tpu.trace_stop"() : () -> ()
    %cst_78 = arith.constant 0.353553385 : f32
    %169 = vector.broadcast %cst_78 : f32 to vector<5x5xf32>
    %170 = arith.mulf %168, %169 : vector<5x5xf32>
    %cst_79 = arith.constant dense<0xFF800000> : vector<5xf32>
    %171 = vector.multi_reduction <maximumf>, %170, %cst_79 [1] : vector<5x5xf32> to vector<5xf32>
    %172 = vector.shape_cast %171 : vector<5xf32> to vector<5x1xf32>
    %173 = vector.broadcast %172 : vector<5x1xf32> to vector<5x5xf32>
    %174 = arith.subf %170, %173 : vector<5x5xf32>
    %175 = math.exp %174 : vector<5x5xf32>
    %cst_80 = arith.constant dense<0.000000e+00> : vector<5xf32>
    %176 = vector.multi_reduction <add>, %175, %cst_80 [1] : vector<5x5xf32> to vector<5xf32>
    %177 = vector.shape_cast %176 : vector<5xf32> to vector<5x1xf32>
    %178 = vector.broadcast %177 : vector<5x1xf32> to vector<5x5xf32>
    %179 = arith.divf %175, %178 : vector<5x5xf32>
    %cst_81 = arith.constant dense<0.000000e+00> : vector<5x8xf32>
    %180 = tpu.matmul %179, %167, %cst_81 {dimension_numbers = #tpu.dot_dimension_numbers<[1], [0], [0], [1], [0, 0, 1, 1], [], []>} : vector<5x5xf32>, vector<5x8xf32>, vector<5x8xf32> -> vector<5x8xf32>
    %181 = tpu.concatenate %132, %148, %164, %180 in 1 : vector<5x8xf32>, vector<5x8xf32>, vector<5x8xf32>, vector<5x8xf32> -> vector<5x32xf32>
    %182 = tpu.concatenate %115, %181 in 0 : vector<5x32xf32>, vector<5x32xf32> -> vector<10x32xf32>
    %cst_82 = arith.constant dense<0.000000e+00> : vector<10x32xf32>
    %183 = tpu.matmul %182, %10, %cst_82 {dimension_numbers = #tpu.dot_dimension_numbers<[1], [0], [0], [1], [0, 0, 1, 1], [], []>} : vector<10x32xf32>, vector<32x32xf32>, vector<10x32xf32> -> vector<10x32xf32>
    %184 = arith.addf %0, %183 : vector<10x32xf32>
    %185 = vector.broadcast %12 : vector<1x32xf32> to vector<10x32xf32>
    %186 = arith.addf %184, %185 : vector<10x32xf32>
    %cst_83 = arith.constant dense<0.000000e+00> : vector<10xf32>
    %187 = vector.multi_reduction <add>, %186, %cst_83 [1] : vector<10x32xf32> to vector<10xf32>
    %188 = vector.shape_cast %187 : vector<10xf32> to vector<10x1xf32>
    %cst_84 = arith.constant 3.200000e+01 : f32
    %189 = vector.broadcast %cst_84 : f32 to vector<10x1xf32>
    %190 = arith.divf %188, %189 : vector<10x1xf32>
    %191 = vector.broadcast %190 : vector<10x1xf32> to vector<10x32xf32>
    %192 = arith.subf %186, %191 : vector<10x32xf32>
    %193 = arith.mulf %192, %192 : vector<10x32xf32>
    %cst_85 = arith.constant dense<0.000000e+00> : vector<10xf32>
    %194 = vector.multi_reduction <add>, %193, %cst_85 [1] : vector<10x32xf32> to vector<10xf32>
    %195 = vector.shape_cast %194 : vector<10xf32> to vector<10x1xf32>
    %cst_86 = arith.constant 3.200000e+01 : f32
    %196 = vector.broadcast %cst_86 : f32 to vector<10x1xf32>
    %197 = arith.divf %195, %196 : vector<10x1xf32>
    %198 = vector.broadcast %190 : vector<10x1xf32> to vector<10x32xf32>
    %199 = arith.subf %186, %198 : vector<10x32xf32>
    %cst_87 = arith.constant 9.99999974E-6 : f32
    %200 = vector.broadcast %cst_87 : f32 to vector<10x1xf32>
    %201 = arith.addf %197, %200 : vector<10x1xf32>
    %202 = math.rsqrt %201 : vector<10x1xf32>
    %203 = vector.broadcast %202 : vector<10x1xf32> to vector<10x32xf32>
    %204 = arith.mulf %199, %203 : vector<10x32xf32>
    %205 = vector.broadcast %14 : vector<1x32xf32> to vector<10x32xf32>
    %206 = arith.mulf %204, %205 : vector<10x32xf32>
    %207 = vector.broadcast %16 : vector<1x32xf32> to vector<10x32xf32>
    %208 = arith.addf %206, %207 : vector<10x32xf32>
    %cst_88 = arith.constant dense<0.000000e+00> : vector<10x128xf32>
    %209 = tpu.matmul %208, %18, %cst_88 {dimension_numbers = #tpu.dot_dimension_numbers<[1], [0], [0], [1], [0, 0, 1, 1], [], []>} : vector<10x32xf32>, vector<32x128xf32>, vector<10x128xf32> -> vector<10x128xf32>
    %210 = vector.broadcast %20 : vector<1x128xf32> to vector<10x128xf32>
    %211 = arith.addf %209, %210 : vector<10x128xf32>
    %212 = arith.mulf %211, %211 : vector<10x128xf32>
    %213 = arith.mulf %211, %212 : vector<10x128xf32>
    %cst_89 = arith.constant 4.471500e-02 : f32
    %214 = vector.broadcast %cst_89 : f32 to vector<10x128xf32>
    %215 = arith.mulf %214, %213 : vector<10x128xf32>
    %216 = arith.addf %211, %215 : vector<10x128xf32>
    %cst_90 = arith.constant 0.797884583 : f32
    %217 = vector.broadcast %cst_90 : f32 to vector<10x128xf32>
    %218 = arith.mulf %217, %216 : vector<10x128xf32>
    %219 = math.tanh %218 : vector<10x128xf32>
    %cst_91 = arith.constant 1.000000e+00 : f32
    %220 = vector.broadcast %cst_91 : f32 to vector<10x128xf32>
    %221 = arith.addf %220, %219 : vector<10x128xf32>
    %cst_92 = arith.constant 5.000000e-01 : f32
    %222 = vector.broadcast %cst_92 : f32 to vector<10x128xf32>
    %223 = arith.mulf %222, %221 : vector<10x128xf32>
    %224 = arith.mulf %211, %223 : vector<10x128xf32>
    %cst_93 = arith.constant dense<0.000000e+00> : vector<10x32xf32>
    %225 = tpu.matmul %224, %22, %cst_93 {dimension_numbers = #tpu.dot_dimension_numbers<[1], [0], [0], [1], [0, 0, 1, 1], [], []>} : vector<10x128xf32>, vector<128x32xf32>, vector<10x32xf32> -> vector<10x32xf32>
    %226 = vector.broadcast %24 : vector<1x32xf32> to vector<10x32xf32>
    %227 = arith.addf %225, %226 : vector<10x32xf32>
    %228 = arith.addf %186, %227 : vector<10x32xf32>
    %c1 = arith.constant 1 : index
    %c0_94 = arith.constant 0 : index
    %c0_95 = arith.constant 0 : index
    %229 = vector.load %arg1[%c1, %c0_94, %c0_95] : memref<2x1x32xf32, #tpu.memory_space<vmem>>, vector<1x1x32xf32>
    %230 = vector.shape_cast %229 : vector<1x1x32xf32> to vector<1x32xf32>
    %c1_96 = arith.constant 1 : index
    %c0_97 = arith.constant 0 : index
    %c0_98 = arith.constant 0 : index
    %231 = vector.load %arg2[%c1_96, %c0_97, %c0_98] : memref<2x1x32xf32, #tpu.memory_space<vmem>>, vector<1x1x32xf32>
    %232 = vector.shape_cast %231 : vector<1x1x32xf32> to vector<1x32xf32>
    %c1_99 = arith.constant 1 : index
    %c0_100 = arith.constant 0 : index
    %c0_101 = arith.constant 0 : index
    %233 = vector.load %arg3[%c1_99, %c0_100, %c0_101] : memref<2x32x96xf32, #tpu.memory_space<vmem>>, vector<1x32x96xf32>
    %234 = vector.shape_cast %233 : vector<1x32x96xf32> to vector<32x96xf32>
    %c1_102 = arith.constant 1 : index
    %c0_103 = arith.constant 0 : index
    %c0_104 = arith.constant 0 : index
    %235 = vector.load %arg4[%c1_102, %c0_103, %c0_104] : memref<2x1x96xf32, #tpu.memory_space<vmem>>, vector<1x1x96xf32>
    %236 = vector.shape_cast %235 : vector<1x1x96xf32> to vector<1x96xf32>
    %c1_105 = arith.constant 1 : index
    %c0_106 = arith.constant 0 : index
    %c0_107 = arith.constant 0 : index
    %237 = vector.load %arg5[%c1_105, %c0_106, %c0_107] : memref<2x32x32xf32, #tpu.memory_space<vmem>>, vector<1x32x32xf32>
    %238 = vector.shape_cast %237 : vector<1x32x32xf32> to vector<32x32xf32>
    %c1_108 = arith.constant 1 : index
    %c0_109 = arith.constant 0 : index
    %c0_110 = arith.constant 0 : index
    %239 = vector.load %arg6[%c1_108, %c0_109, %c0_110] : memref<2x1x32xf32, #tpu.memory_space<vmem>>, vector<1x1x32xf32>
    %240 = vector.shape_cast %239 : vector<1x1x32xf32> to vector<1x32xf32>
    %c1_111 = arith.constant 1 : index
    %c0_112 = arith.constant 0 : index
    %c0_113 = arith.constant 0 : index
    %241 = vector.load %arg7[%c1_111, %c0_112, %c0_113] : memref<2x1x32xf32, #tpu.memory_space<vmem>>, vector<1x1x32xf32>
    %242 = vector.shape_cast %241 : vector<1x1x32xf32> to vector<1x32xf32>
    %c1_114 = arith.constant 1 : index
    %c0_115 = arith.constant 0 : index
    %c0_116 = arith.constant 0 : index
    %243 = vector.load %arg8[%c1_114, %c0_115, %c0_116] : memref<2x1x32xf32, #tpu.memory_space<vmem>>, vector<1x1x32xf32>
    %244 = vector.shape_cast %243 : vector<1x1x32xf32> to vector<1x32xf32>
    %c1_117 = arith.constant 1 : index
    %c0_118 = arith.constant 0 : index
    %c0_119 = arith.constant 0 : index
    %245 = vector.load %arg9[%c1_117, %c0_118, %c0_119] : memref<2x32x128xf32, #tpu.memory_space<vmem>>, vector<1x32x128xf32>
    %246 = vector.shape_cast %245 : vector<1x32x128xf32> to vector<32x128xf32>
    %c1_120 = arith.constant 1 : index
    %c0_121 = arith.constant 0 : index
    %c0_122 = arith.constant 0 : index
    %247 = vector.load %arg10[%c1_120, %c0_121, %c0_122] : memref<2x1x128xf32, #tpu.memory_space<vmem>>, vector<1x1x128xf32>
    %248 = vector.shape_cast %247 : vector<1x1x128xf32> to vector<1x128xf32>
    %c1_123 = arith.constant 1 : index
    %c0_124 = arith.constant 0 : index
    %c0_125 = arith.constant 0 : index
    %249 = vector.load %arg11[%c1_123, %c0_124, %c0_125] : memref<2x128x32xf32, #tpu.memory_space<vmem>>, vector<1x128x32xf32>
    %250 = vector.shape_cast %249 : vector<1x128x32xf32> to vector<128x32xf32>
    %c1_126 = arith.constant 1 : index
    %c0_127 = arith.constant 0 : index
    %c0_128 = arith.constant 0 : index
    %251 = vector.load %arg12[%c1_126, %c0_127, %c0_128] : memref<2x1x32xf32, #tpu.memory_space<vmem>>, vector<1x1x32xf32>
    %252 = vector.shape_cast %251 : vector<1x1x32xf32> to vector<1x32xf32>
    %cst_129 = arith.constant dense<0.000000e+00> : vector<10xf32>
    %253 = vector.multi_reduction <add>, %228, %cst_129 [1] : vector<10x32xf32> to vector<10xf32>
    %254 = vector.shape_cast %253 : vector<10xf32> to vector<10x1xf32>
    %cst_130 = arith.constant 3.200000e+01 : f32
    %255 = vector.broadcast %cst_130 : f32 to vector<10x1xf32>
    %256 = arith.divf %254, %255 : vector<10x1xf32>
    %257 = vector.broadcast %256 : vector<10x1xf32> to vector<10x32xf32>
    %258 = arith.subf %228, %257 : vector<10x32xf32>
    %259 = arith.mulf %258, %258 : vector<10x32xf32>
    %cst_131 = arith.constant dense<0.000000e+00> : vector<10xf32>
    %260 = vector.multi_reduction <add>, %259, %cst_131 [1] : vector<10x32xf32> to vector<10xf32>
    %261 = vector.shape_cast %260 : vector<10xf32> to vector<10x1xf32>
    %cst_132 = arith.constant 3.200000e+01 : f32
    %262 = vector.broadcast %cst_132 : f32 to vector<10x1xf32>
    %263 = arith.divf %261, %262 : vector<10x1xf32>
    %264 = vector.broadcast %256 : vector<10x1xf32> to vector<10x32xf32>
    %265 = arith.subf %228, %264 : vector<10x32xf32>
    %cst_133 = arith.constant 9.99999974E-6 : f32
    %266 = vector.broadcast %cst_133 : f32 to vector<10x1xf32>
    %267 = arith.addf %263, %266 : vector<10x1xf32>
    %268 = math.rsqrt %267 : vector<10x1xf32>
    %269 = vector.broadcast %268 : vector<10x1xf32> to vector<10x32xf32>
    %270 = arith.mulf %265, %269 : vector<10x32xf32>
    %271 = vector.broadcast %230 : vector<1x32xf32> to vector<10x32xf32>
    %272 = arith.mulf %270, %271 : vector<10x32xf32>
    %273 = vector.broadcast %232 : vector<1x32xf32> to vector<10x32xf32>
    %274 = arith.addf %272, %273 : vector<10x32xf32>
    %cst_134 = arith.constant dense<0.000000e+00> : vector<10x96xf32>
    %275 = tpu.matmul %274, %234, %cst_134 {dimension_numbers = #tpu.dot_dimension_numbers<[1], [0], [0], [1], [0, 0, 1, 1], [], []>} : vector<10x32xf32>, vector<32x96xf32>, vector<10x96xf32> -> vector<10x96xf32>
    %276 = vector.broadcast %236 : vector<1x96xf32> to vector<10x96xf32>
    %277 = arith.addf %275, %276 : vector<10x96xf32>
    %278 = vector.extract_strided_slice %277 {offsets = [0, 0], sizes = [5, 96], strides = [1, 1]} : vector<10x96xf32> to vector<5x96xf32>
    %279 = vector.extract_strided_slice %278 {offsets = [0, 0], sizes = [5, 8], strides = [1, 1]} : vector<5x96xf32> to vector<5x8xf32>
    %280 = vector.extract_strided_slice %278 {offsets = [0, 32], sizes = [5, 8], strides = [1, 1]} : vector<5x96xf32> to vector<5x8xf32>
    %281 = vector.extract_strided_slice %278 {offsets = [0, 64], sizes = [5, 8], strides = [1, 1]} : vector<5x96xf32> to vector<5x8xf32>
    "tpu.trace_start"() <{level = 10 : i32, message = "qd,kd->qk"}> : () -> ()
    %cst_135 = arith.constant dense<0.000000e+00> : vector<5x5xf32>
    %282 = tpu.matmul %279, %280, %cst_135 {dimension_numbers = #tpu.dot_dimension_numbers<[1], [1], [0], [0], [0, 0, 1, 0], [], []>} : vector<5x8xf32>, vector<5x8xf32>, vector<5x5xf32> -> vector<5x5xf32>
    "tpu.trace_stop"() : () -> ()
    %cst_136 = arith.constant 0.353553385 : f32
    %283 = vector.broadcast %cst_136 : f32 to vector<5x5xf32>
    %284 = arith.mulf %282, %283 : vector<5x5xf32>
    %cst_137 = arith.constant dense<0xFF800000> : vector<5xf32>
    %285 = vector.multi_reduction <maximumf>, %284, %cst_137 [1] : vector<5x5xf32> to vector<5xf32>
    %286 = vector.shape_cast %285 : vector<5xf32> to vector<5x1xf32>
    %287 = vector.broadcast %286 : vector<5x1xf32> to vector<5x5xf32>
    %288 = arith.subf %284, %287 : vector<5x5xf32>
    %289 = math.exp %288 : vector<5x5xf32>
    %cst_138 = arith.constant dense<0.000000e+00> : vector<5xf32>
    %290 = vector.multi_reduction <add>, %289, %cst_138 [1] : vector<5x5xf32> to vector<5xf32>
    %291 = vector.shape_cast %290 : vector<5xf32> to vector<5x1xf32>
    %292 = vector.broadcast %291 : vector<5x1xf32> to vector<5x5xf32>
    %293 = arith.divf %289, %292 : vector<5x5xf32>
    %cst_139 = arith.constant dense<0.000000e+00> : vector<5x8xf32>
    %294 = tpu.matmul %293, %281, %cst_139 {dimension_numbers = #tpu.dot_dimension_numbers<[1], [0], [0], [1], [0, 0, 1, 1], [], []>} : vector<5x5xf32>, vector<5x8xf32>, vector<5x8xf32> -> vector<5x8xf32>
    %295 = vector.extract_strided_slice %278 {offsets = [0, 8], sizes = [5, 8], strides = [1, 1]} : vector<5x96xf32> to vector<5x8xf32>
    %296 = vector.extract_strided_slice %278 {offsets = [0, 40], sizes = [5, 8], strides = [1, 1]} : vector<5x96xf32> to vector<5x8xf32>
    %297 = vector.extract_strided_slice %278 {offsets = [0, 72], sizes = [5, 8], strides = [1, 1]} : vector<5x96xf32> to vector<5x8xf32>
    "tpu.trace_start"() <{level = 10 : i32, message = "qd,kd->qk"}> : () -> ()
    %cst_140 = arith.constant dense<0.000000e+00> : vector<5x5xf32>
    %298 = tpu.matmul %295, %296, %cst_140 {dimension_numbers = #tpu.dot_dimension_numbers<[1], [1], [0], [0], [0, 0, 1, 0], [], []>} : vector<5x8xf32>, vector<5x8xf32>, vector<5x5xf32> -> vector<5x5xf32>
    "tpu.trace_stop"() : () -> ()
    %cst_141 = arith.constant 0.353553385 : f32
    %299 = vector.broadcast %cst_141 : f32 to vector<5x5xf32>
    %300 = arith.mulf %298, %299 : vector<5x5xf32>
    %cst_142 = arith.constant dense<0xFF800000> : vector<5xf32>
    %301 = vector.multi_reduction <maximumf>, %300, %cst_142 [1] : vector<5x5xf32> to vector<5xf32>
    %302 = vector.shape_cast %301 : vector<5xf32> to vector<5x1xf32>
    %303 = vector.broadcast %302 : vector<5x1xf32> to vector<5x5xf32>
    %304 = arith.subf %300, %303 : vector<5x5xf32>
    %305 = math.exp %304 : vector<5x5xf32>
    %cst_143 = arith.constant dense<0.000000e+00> : vector<5xf32>
    %306 = vector.multi_reduction <add>, %305, %cst_143 [1] : vector<5x5xf32> to vector<5xf32>
    %307 = vector.shape_cast %306 : vector<5xf32> to vector<5x1xf32>
    %308 = vector.broadcast %307 : vector<5x1xf32> to vector<5x5xf32>
    %309 = arith.divf %305, %308 : vector<5x5xf32>
    %cst_144 = arith.constant dense<0.000000e+00> : vector<5x8xf32>
    %310 = tpu.matmul %309, %297, %cst_144 {dimension_numbers = #tpu.dot_dimension_numbers<[1], [0], [0], [1], [0, 0, 1, 1], [], []>} : vector<5x5xf32>, vector<5x8xf32>, vector<5x8xf32> -> vector<5x8xf32>
    %311 = vector.extract_strided_slice %278 {offsets = [0, 16], sizes = [5, 8], strides = [1, 1]} : vector<5x96xf32> to vector<5x8xf32>
    %312 = vector.extract_strided_slice %278 {offsets = [0, 48], sizes = [5, 8], strides = [1, 1]} : vector<5x96xf32> to vector<5x8xf32>
    %313 = vector.extract_strided_slice %278 {offsets = [0, 80], sizes = [5, 8], strides = [1, 1]} : vector<5x96xf32> to vector<5x8xf32>
    "tpu.trace_start"() <{level = 10 : i32, message = "qd,kd->qk"}> : () -> ()
    %cst_145 = arith.constant dense<0.000000e+00> : vector<5x5xf32>
    %314 = tpu.matmul %311, %312, %cst_145 {dimension_numbers = #tpu.dot_dimension_numbers<[1], [1], [0], [0], [0, 0, 1, 0], [], []>} : vector<5x8xf32>, vector<5x8xf32>, vector<5x5xf32> -> vector<5x5xf32>
    "tpu.trace_stop"() : () -> ()
    %cst_146 = arith.constant 0.353553385 : f32
    %315 = vector.broadcast %cst_146 : f32 to vector<5x5xf32>
    %316 = arith.mulf %314, %315 : vector<5x5xf32>
    %cst_147 = arith.constant dense<0xFF800000> : vector<5xf32>
    %317 = vector.multi_reduction <maximumf>, %316, %cst_147 [1] : vector<5x5xf32> to vector<5xf32>
    %318 = vector.shape_cast %317 : vector<5xf32> to vector<5x1xf32>
    %319 = vector.broadcast %318 : vector<5x1xf32> to vector<5x5xf32>
    %320 = arith.subf %316, %319 : vector<5x5xf32>
    %321 = math.exp %320 : vector<5x5xf32>
    %cst_148 = arith.constant dense<0.000000e+00> : vector<5xf32>
    %322 = vector.multi_reduction <add>, %321, %cst_148 [1] : vector<5x5xf32> to vector<5xf32>
    %323 = vector.shape_cast %322 : vector<5xf32> to vector<5x1xf32>
    %324 = vector.broadcast %323 : vector<5x1xf32> to vector<5x5xf32>
    %325 = arith.divf %321, %324 : vector<5x5xf32>
    %cst_149 = arith.constant dense<0.000000e+00> : vector<5x8xf32>
    %326 = tpu.matmul %325, %313, %cst_149 {dimension_numbers = #tpu.dot_dimension_numbers<[1], [0], [0], [1], [0, 0, 1, 1], [], []>} : vector<5x5xf32>, vector<5x8xf32>, vector<5x8xf32> -> vector<5x8xf32>
    %327 = vector.extract_strided_slice %278 {offsets = [0, 24], sizes = [5, 8], strides = [1, 1]} : vector<5x96xf32> to vector<5x8xf32>
    %328 = vector.extract_strided_slice %278 {offsets = [0, 56], sizes = [5, 8], strides = [1, 1]} : vector<5x96xf32> to vector<5x8xf32>
    %329 = vector.extract_strided_slice %278 {offsets = [0, 88], sizes = [5, 8], strides = [1, 1]} : vector<5x96xf32> to vector<5x8xf32>
    "tpu.trace_start"() <{level = 10 : i32, message = "qd,kd->qk"}> : () -> ()
    %cst_150 = arith.constant dense<0.000000e+00> : vector<5x5xf32>
    %330 = tpu.matmul %327, %328, %cst_150 {dimension_numbers = #tpu.dot_dimension_numbers<[1], [1], [0], [0], [0, 0, 1, 0], [], []>} : vector<5x8xf32>, vector<5x8xf32>, vector<5x5xf32> -> vector<5x5xf32>
    "tpu.trace_stop"() : () -> ()
    %cst_151 = arith.constant 0.353553385 : f32
    %331 = vector.broadcast %cst_151 : f32 to vector<5x5xf32>
    %332 = arith.mulf %330, %331 : vector<5x5xf32>
    %cst_152 = arith.constant dense<0xFF800000> : vector<5xf32>
    %333 = vector.multi_reduction <maximumf>, %332, %cst_152 [1] : vector<5x5xf32> to vector<5xf32>
    %334 = vector.shape_cast %333 : vector<5xf32> to vector<5x1xf32>
    %335 = vector.broadcast %334 : vector<5x1xf32> to vector<5x5xf32>
    %336 = arith.subf %332, %335 : vector<5x5xf32>
    %337 = math.exp %336 : vector<5x5xf32>
    %cst_153 = arith.constant dense<0.000000e+00> : vector<5xf32>
    %338 = vector.multi_reduction <add>, %337, %cst_153 [1] : vector<5x5xf32> to vector<5xf32>
    %339 = vector.shape_cast %338 : vector<5xf32> to vector<5x1xf32>
    %340 = vector.broadcast %339 : vector<5x1xf32> to vector<5x5xf32>
    %341 = arith.divf %337, %340 : vector<5x5xf32>
    %cst_154 = arith.constant dense<0.000000e+00> : vector<5x8xf32>
    %342 = tpu.matmul %341, %329, %cst_154 {dimension_numbers = #tpu.dot_dimension_numbers<[1], [0], [0], [1], [0, 0, 1, 1], [], []>} : vector<5x5xf32>, vector<5x8xf32>, vector<5x8xf32> -> vector<5x8xf32>
    %343 = tpu.concatenate %294, %310, %326, %342 in 1 : vector<5x8xf32>, vector<5x8xf32>, vector<5x8xf32>, vector<5x8xf32> -> vector<5x32xf32>
    %344 = vector.extract_strided_slice %277 {offsets = [5, 0], sizes = [5, 96], strides = [1, 1]} : vector<10x96xf32> to vector<5x96xf32>
    %345 = vector.extract_strided_slice %344 {offsets = [0, 0], sizes = [5, 8], strides = [1, 1]} : vector<5x96xf32> to vector<5x8xf32>
    %346 = vector.extract_strided_slice %344 {offsets = [0, 32], sizes = [5, 8], strides = [1, 1]} : vector<5x96xf32> to vector<5x8xf32>
    %347 = vector.extract_strided_slice %344 {offsets = [0, 64], sizes = [5, 8], strides = [1, 1]} : vector<5x96xf32> to vector<5x8xf32>
    "tpu.trace_start"() <{level = 10 : i32, message = "qd,kd->qk"}> : () -> ()
    %cst_155 = arith.constant dense<0.000000e+00> : vector<5x5xf32>
    %348 = tpu.matmul %345, %346, %cst_155 {dimension_numbers = #tpu.dot_dimension_numbers<[1], [1], [0], [0], [0, 0, 1, 0], [], []>} : vector<5x8xf32>, vector<5x8xf32>, vector<5x5xf32> -> vector<5x5xf32>
    "tpu.trace_stop"() : () -> ()
    %cst_156 = arith.constant 0.353553385 : f32
    %349 = vector.broadcast %cst_156 : f32 to vector<5x5xf32>
    %350 = arith.mulf %348, %349 : vector<5x5xf32>
    %cst_157 = arith.constant dense<0xFF800000> : vector<5xf32>
    %351 = vector.multi_reduction <maximumf>, %350, %cst_157 [1] : vector<5x5xf32> to vector<5xf32>
    %352 = vector.shape_cast %351 : vector<5xf32> to vector<5x1xf32>
    %353 = vector.broadcast %352 : vector<5x1xf32> to vector<5x5xf32>
    %354 = arith.subf %350, %353 : vector<5x5xf32>
    %355 = math.exp %354 : vector<5x5xf32>
    %cst_158 = arith.constant dense<0.000000e+00> : vector<5xf32>
    %356 = vector.multi_reduction <add>, %355, %cst_158 [1] : vector<5x5xf32> to vector<5xf32>
    %357 = vector.shape_cast %356 : vector<5xf32> to vector<5x1xf32>
    %358 = vector.broadcast %357 : vector<5x1xf32> to vector<5x5xf32>
    %359 = arith.divf %355, %358 : vector<5x5xf32>
    %cst_159 = arith.constant dense<0.000000e+00> : vector<5x8xf32>
    %360 = tpu.matmul %359, %347, %cst_159 {dimension_numbers = #tpu.dot_dimension_numbers<[1], [0], [0], [1], [0, 0, 1, 1], [], []>} : vector<5x5xf32>, vector<5x8xf32>, vector<5x8xf32> -> vector<5x8xf32>
    %361 = vector.extract_strided_slice %344 {offsets = [0, 8], sizes = [5, 8], strides = [1, 1]} : vector<5x96xf32> to vector<5x8xf32>
    %362 = vector.extract_strided_slice %344 {offsets = [0, 40], sizes = [5, 8], strides = [1, 1]} : vector<5x96xf32> to vector<5x8xf32>
    %363 = vector.extract_strided_slice %344 {offsets = [0, 72], sizes = [5, 8], strides = [1, 1]} : vector<5x96xf32> to vector<5x8xf32>
    "tpu.trace_start"() <{level = 10 : i32, message = "qd,kd->qk"}> : () -> ()
    %cst_160 = arith.constant dense<0.000000e+00> : vector<5x5xf32>
    %364 = tpu.matmul %361, %362, %cst_160 {dimension_numbers = #tpu.dot_dimension_numbers<[1], [1], [0], [0], [0, 0, 1, 0], [], []>} : vector<5x8xf32>, vector<5x8xf32>, vector<5x5xf32> -> vector<5x5xf32>
    "tpu.trace_stop"() : () -> ()
    %cst_161 = arith.constant 0.353553385 : f32
    %365 = vector.broadcast %cst_161 : f32 to vector<5x5xf32>
    %366 = arith.mulf %364, %365 : vector<5x5xf32>
    %cst_162 = arith.constant dense<0xFF800000> : vector<5xf32>
    %367 = vector.multi_reduction <maximumf>, %366, %cst_162 [1] : vector<5x5xf32> to vector<5xf32>
    %368 = vector.shape_cast %367 : vector<5xf32> to vector<5x1xf32>
    %369 = vector.broadcast %368 : vector<5x1xf32> to vector<5x5xf32>
    %370 = arith.subf %366, %369 : vector<5x5xf32>
    %371 = math.exp %370 : vector<5x5xf32>
    %cst_163 = arith.constant dense<0.000000e+00> : vector<5xf32>
    %372 = vector.multi_reduction <add>, %371, %cst_163 [1] : vector<5x5xf32> to vector<5xf32>
    %373 = vector.shape_cast %372 : vector<5xf32> to vector<5x1xf32>
    %374 = vector.broadcast %373 : vector<5x1xf32> to vector<5x5xf32>
    %375 = arith.divf %371, %374 : vector<5x5xf32>
    %cst_164 = arith.constant dense<0.000000e+00> : vector<5x8xf32>
    %376 = tpu.matmul %375, %363, %cst_164 {dimension_numbers = #tpu.dot_dimension_numbers<[1], [0], [0], [1], [0, 0, 1, 1], [], []>} : vector<5x5xf32>, vector<5x8xf32>, vector<5x8xf32> -> vector<5x8xf32>
    %377 = vector.extract_strided_slice %344 {offsets = [0, 16], sizes = [5, 8], strides = [1, 1]} : vector<5x96xf32> to vector<5x8xf32>
    %378 = vector.extract_strided_slice %344 {offsets = [0, 48], sizes = [5, 8], strides = [1, 1]} : vector<5x96xf32> to vector<5x8xf32>
    %379 = vector.extract_strided_slice %344 {offsets = [0, 80], sizes = [5, 8], strides = [1, 1]} : vector<5x96xf32> to vector<5x8xf32>
    "tpu.trace_start"() <{level = 10 : i32, message = "qd,kd->qk"}> : () -> ()
    %cst_165 = arith.constant dense<0.000000e+00> : vector<5x5xf32>
    %380 = tpu.matmul %377, %378, %cst_165 {dimension_numbers = #tpu.dot_dimension_numbers<[1], [1], [0], [0], [0, 0, 1, 0], [], []>} : vector<5x8xf32>, vector<5x8xf32>, vector<5x5xf32> -> vector<5x5xf32>
    "tpu.trace_stop"() : () -> ()
    %cst_166 = arith.constant 0.353553385 : f32
    %381 = vector.broadcast %cst_166 : f32 to vector<5x5xf32>
    %382 = arith.mulf %380, %381 : vector<5x5xf32>
    %cst_167 = arith.constant dense<0xFF800000> : vector<5xf32>
    %383 = vector.multi_reduction <maximumf>, %382, %cst_167 [1] : vector<5x5xf32> to vector<5xf32>
    %384 = vector.shape_cast %383 : vector<5xf32> to vector<5x1xf32>
    %385 = vector.broadcast %384 : vector<5x1xf32> to vector<5x5xf32>
    %386 = arith.subf %382, %385 : vector<5x5xf32>
    %387 = math.exp %386 : vector<5x5xf32>
    %cst_168 = arith.constant dense<0.000000e+00> : vector<5xf32>
    %388 = vector.multi_reduction <add>, %387, %cst_168 [1] : vector<5x5xf32> to vector<5xf32>
    %389 = vector.shape_cast %388 : vector<5xf32> to vector<5x1xf32>
    %390 = vector.broadcast %389 : vector<5x1xf32> to vector<5x5xf32>
    %391 = arith.divf %387, %390 : vector<5x5xf32>
    %cst_169 = arith.constant dense<0.000000e+00> : vector<5x8xf32>
    %392 = tpu.matmul %391, %379, %cst_169 {dimension_numbers = #tpu.dot_dimension_numbers<[1], [0], [0], [1], [0, 0, 1, 1], [], []>} : vector<5x5xf32>, vector<5x8xf32>, vector<5x8xf32> -> vector<5x8xf32>
    %393 = vector.extract_strided_slice %344 {offsets = [0, 24], sizes = [5, 8], strides = [1, 1]} : vector<5x96xf32> to vector<5x8xf32>
    %394 = vector.extract_strided_slice %344 {offsets = [0, 56], sizes = [5, 8], strides = [1, 1]} : vector<5x96xf32> to vector<5x8xf32>
    %395 = vector.extract_strided_slice %344 {offsets = [0, 88], sizes = [5, 8], strides = [1, 1]} : vector<5x96xf32> to vector<5x8xf32>
    "tpu.trace_start"() <{level = 10 : i32, message = "qd,kd->qk"}> : () -> ()
    %cst_170 = arith.constant dense<0.000000e+00> : vector<5x5xf32>
    %396 = tpu.matmul %393, %394, %cst_170 {dimension_numbers = #tpu.dot_dimension_numbers<[1], [1], [0], [0], [0, 0, 1, 0], [], []>} : vector<5x8xf32>, vector<5x8xf32>, vector<5x5xf32> -> vector<5x5xf32>
    "tpu.trace_stop"() : () -> ()
    %cst_171 = arith.constant 0.353553385 : f32
    %397 = vector.broadcast %cst_171 : f32 to vector<5x5xf32>
    %398 = arith.mulf %396, %397 : vector<5x5xf32>
    %cst_172 = arith.constant dense<0xFF800000> : vector<5xf32>
    %399 = vector.multi_reduction <maximumf>, %398, %cst_172 [1] : vector<5x5xf32> to vector<5xf32>
    %400 = vector.shape_cast %399 : vector<5xf32> to vector<5x1xf32>
    %401 = vector.broadcast %400 : vector<5x1xf32> to vector<5x5xf32>
    %402 = arith.subf %398, %401 : vector<5x5xf32>
    %403 = math.exp %402 : vector<5x5xf32>
    %cst_173 = arith.constant dense<0.000000e+00> : vector<5xf32>
    %404 = vector.multi_reduction <add>, %403, %cst_173 [1] : vector<5x5xf32> to vector<5xf32>
    %405 = vector.shape_cast %404 : vector<5xf32> to vector<5x1xf32>
    %406 = vector.broadcast %405 : vector<5x1xf32> to vector<5x5xf32>
    %407 = arith.divf %403, %406 : vector<5x5xf32>
    %cst_174 = arith.constant dense<0.000000e+00> : vector<5x8xf32>
    %408 = tpu.matmul %407, %395, %cst_174 {dimension_numbers = #tpu.dot_dimension_numbers<[1], [0], [0], [1], [0, 0, 1, 1], [], []>} : vector<5x5xf32>, vector<5x8xf32>, vector<5x8xf32> -> vector<5x8xf32>
    %409 = tpu.concatenate %360, %376, %392, %408 in 1 : vector<5x8xf32>, vector<5x8xf32>, vector<5x8xf32>, vector<5x8xf32> -> vector<5x32xf32>
    %410 = tpu.concatenate %343, %409 in 0 : vector<5x32xf32>, vector<5x32xf32> -> vector<10x32xf32>
    %cst_175 = arith.constant dense<0.000000e+00> : vector<10x32xf32>
    %411 = tpu.matmul %410, %238, %cst_175 {dimension_numbers = #tpu.dot_dimension_numbers<[1], [0], [0], [1], [0, 0, 1, 1], [], []>} : vector<10x32xf32>, vector<32x32xf32>, vector<10x32xf32> -> vector<10x32xf32>
    %412 = arith.addf %228, %411 : vector<10x32xf32>
    %413 = vector.broadcast %240 : vector<1x32xf32> to vector<10x32xf32>
    %414 = arith.addf %412, %413 : vector<10x32xf32>
    %cst_176 = arith.constant dense<0.000000e+00> : vector<10xf32>
    %415 = vector.multi_reduction <add>, %414, %cst_176 [1] : vector<10x32xf32> to vector<10xf32>
    %416 = vector.shape_cast %415 : vector<10xf32> to vector<10x1xf32>
    %cst_177 = arith.constant 3.200000e+01 : f32
    %417 = vector.broadcast %cst_177 : f32 to vector<10x1xf32>
    %418 = arith.divf %416, %417 : vector<10x1xf32>
    %419 = vector.broadcast %418 : vector<10x1xf32> to vector<10x32xf32>
    %420 = arith.subf %414, %419 : vector<10x32xf32>
    %421 = arith.mulf %420, %420 : vector<10x32xf32>
    %cst_178 = arith.constant dense<0.000000e+00> : vector<10xf32>
    %422 = vector.multi_reduction <add>, %421, %cst_178 [1] : vector<10x32xf32> to vector<10xf32>
    %423 = vector.shape_cast %422 : vector<10xf32> to vector<10x1xf32>
    %cst_179 = arith.constant 3.200000e+01 : f32
    %424 = vector.broadcast %cst_179 : f32 to vector<10x1xf32>
    %425 = arith.divf %423, %424 : vector<10x1xf32>
    %426 = vector.broadcast %418 : vector<10x1xf32> to vector<10x32xf32>
    %427 = arith.subf %414, %426 : vector<10x32xf32>
    %cst_180 = arith.constant 9.99999974E-6 : f32
    %428 = vector.broadcast %cst_180 : f32 to vector<10x1xf32>
    %429 = arith.addf %425, %428 : vector<10x1xf32>
    %430 = math.rsqrt %429 : vector<10x1xf32>
    %431 = vector.broadcast %430 : vector<10x1xf32> to vector<10x32xf32>
    %432 = arith.mulf %427, %431 : vector<10x32xf32>
    %433 = vector.broadcast %242 : vector<1x32xf32> to vector<10x32xf32>
    %434 = arith.mulf %432, %433 : vector<10x32xf32>
    %435 = vector.broadcast %244 : vector<1x32xf32> to vector<10x32xf32>
    %436 = arith.addf %434, %435 : vector<10x32xf32>
    %cst_181 = arith.constant dense<0.000000e+00> : vector<10x128xf32>
    %437 = tpu.matmul %436, %246, %cst_181 {dimension_numbers = #tpu.dot_dimension_numbers<[1], [0], [0], [1], [0, 0, 1, 1], [], []>} : vector<10x32xf32>, vector<32x128xf32>, vector<10x128xf32> -> vector<10x128xf32>
    %438 = vector.broadcast %248 : vector<1x128xf32> to vector<10x128xf32>
    %439 = arith.addf %437, %438 : vector<10x128xf32>
    %440 = arith.mulf %439, %439 : vector<10x128xf32>
    %441 = arith.mulf %439, %440 : vector<10x128xf32>
    %cst_182 = arith.constant 4.471500e-02 : f32
    %442 = vector.broadcast %cst_182 : f32 to vector<10x128xf32>
    %443 = arith.mulf %442, %441 : vector<10x128xf32>
    %444 = arith.addf %439, %443 : vector<10x128xf32>
    %cst_183 = arith.constant 0.797884583 : f32
    %445 = vector.broadcast %cst_183 : f32 to vector<10x128xf32>
    %446 = arith.mulf %445, %444 : vector<10x128xf32>
    %447 = math.tanh %446 : vector<10x128xf32>
    %cst_184 = arith.constant 1.000000e+00 : f32
    %448 = vector.broadcast %cst_184 : f32 to vector<10x128xf32>
    %449 = arith.addf %448, %447 : vector<10x128xf32>
    %cst_185 = arith.constant 5.000000e-01 : f32
    %450 = vector.broadcast %cst_185 : f32 to vector<10x128xf32>
    %451 = arith.mulf %450, %449 : vector<10x128xf32>
    %452 = arith.mulf %439, %451 : vector<10x128xf32>
    %cst_186 = arith.constant dense<0.000000e+00> : vector<10x32xf32>
    %453 = tpu.matmul %452, %250, %cst_186 {dimension_numbers = #tpu.dot_dimension_numbers<[1], [0], [0], [1], [0, 0, 1, 1], [], []>} : vector<10x128xf32>, vector<128x32xf32>, vector<10x32xf32> -> vector<10x32xf32>
    %454 = vector.broadcast %252 : vector<1x32xf32> to vector<10x32xf32>
    %455 = arith.addf %453, %454 : vector<10x32xf32>
    %456 = arith.addf %414, %455 : vector<10x32xf32>
    %c0_187 = arith.constant 0 : index
    %c0_188 = arith.constant 0 : index
    %457 = vector.load %arg13[%c0_187, %c0_188] : memref<1x32xf32, #tpu.memory_space<vmem>>, vector<1x32xf32>
    %c0_189 = arith.constant 0 : index
    %c0_190 = arith.constant 0 : index
    %458 = vector.load %arg14[%c0_189, %c0_190] : memref<1x32xf32, #tpu.memory_space<vmem>>, vector<1x32xf32>
    %cst_191 = arith.constant dense<0.000000e+00> : vector<10xf32>
    %459 = vector.multi_reduction <add>, %456, %cst_191 [1] : vector<10x32xf32> to vector<10xf32>
    %460 = vector.shape_cast %459 : vector<10xf32> to vector<10x1xf32>
    %cst_192 = arith.constant 3.200000e+01 : f32
    %461 = vector.broadcast %cst_192 : f32 to vector<10x1xf32>
    %462 = arith.divf %460, %461 : vector<10x1xf32>
    %463 = vector.broadcast %462 : vector<10x1xf32> to vector<10x32xf32>
    %464 = arith.subf %456, %463 : vector<10x32xf32>
    %465 = arith.mulf %464, %464 : vector<10x32xf32>
    %cst_193 = arith.constant dense<0.000000e+00> : vector<10xf32>
    %466 = vector.multi_reduction <add>, %465, %cst_193 [1] : vector<10x32xf32> to vector<10xf32>
    %467 = vector.shape_cast %466 : vector<10xf32> to vector<10x1xf32>
    %cst_194 = arith.constant 3.200000e+01 : f32
    %468 = vector.broadcast %cst_194 : f32 to vector<10x1xf32>
    %469 = arith.divf %467, %468 : vector<10x1xf32>
    %470 = vector.broadcast %462 : vector<10x1xf32> to vector<10x32xf32>
    %471 = arith.subf %456, %470 : vector<10x32xf32>
    %cst_195 = arith.constant 9.99999974E-6 : f32
    %472 = vector.broadcast %cst_195 : f32 to vector<10x1xf32>
    %473 = arith.addf %469, %472 : vector<10x1xf32>
    %474 = math.rsqrt %473 : vector<10x1xf32>
    %475 = vector.broadcast %474 : vector<10x1xf32> to vector<10x32xf32>
    %476 = arith.mulf %471, %475 : vector<10x32xf32>
    %477 = vector.broadcast %457 : vector<1x32xf32> to vector<10x32xf32>
    %478 = arith.mulf %476, %477 : vector<10x32xf32>
    %479 = vector.broadcast %458 : vector<1x32xf32> to vector<10x32xf32>
    %480 = arith.addf %478, %479 : vector<10x32xf32>
    %c0_196 = arith.constant 0 : index
    %c0_197 = arith.constant 0 : index
    %481 = vector.load %arg15[%c0_196, %c0_197] : memref<32x32xf32, #tpu.memory_space<vmem>>, vector<32x32xf32>
    %cst_198 = arith.constant dense<0.000000e+00> : vector<10x32xf32>
    %482 = tpu.matmul %480, %481, %cst_198 {dimension_numbers = #tpu.dot_dimension_numbers<[1], [0], [0], [1], [0, 0, 1, 1], [], []>} : vector<10x32xf32>, vector<32x32xf32>, vector<10x32xf32> -> vector<10x32xf32>
    %c0_199 = arith.constant 0 : index
    %c0_200 = arith.constant 0 : index
    %483 = vector.load %arg16[%c0_199, %c0_200] : memref<1x32xf32, #tpu.memory_space<vmem>>, vector<1x32xf32>
    %484 = vector.broadcast %483 : vector<1x32xf32> to vector<10x32xf32>
    %485 = arith.addf %482, %484 : vector<10x32xf32>
    %c0_201 = arith.constant 0 : index
    %c0_202 = arith.constant 0 : index
    %486 = vector.load %arg17[%c0_201, %c0_202] : memref<10x32xf32, #tpu.memory_space<vmem>>, vector<10x32xf32>
    tpu.vector_store %arg17[%c0_201, %c0_202], %485 {strides = array<i32>} : memref<10x32xf32, #tpu.memory_space<vmem>>, vector<10x32xf32>,
    return
  }
}

module attributes {stable_mosaic.version = 11 : i64} {
  func.func @_decoder_stack_kernel(%arg0: memref<34x32xf32, #tpu.memory_space<vmem>>, %arg1: memref<17x32xf32, #tpu.memory_space<vmem>>, %arg2: memref<1x1x32xf32, #tpu.memory_space<vmem>>, %arg3: memref<1x1x32xf32, #tpu.memory_space<vmem>>, %arg4: memref<1x32x96xf32, #tpu.memory_space<vmem>>, %arg5: memref<1x1x96xf32, #tpu.memory_space<vmem>>, %arg6: memref<1x32x32xf32, #tpu.memory_space<vmem>>, %arg7: memref<1x1x32xf32, #tpu.memory_space<vmem>>, %arg8: memref<1x1x32xf32, #tpu.memory_space<vmem>>, %arg9: memref<1x1x32xf32, #tpu.memory_space<vmem>>, %arg10: memref<1x32x128xf32, #tpu.memory_space<vmem>>, %arg11: memref<1x1x128xf32, #tpu.memory_space<vmem>>, %arg12: memref<1x128x32xf32, #tpu.memory_space<vmem>>, %arg13: memref<1x1x32xf32, #tpu.memory_space<vmem>>, %arg14: memref<1x32xf32, #tpu.memory_space<vmem>>, %arg15: memref<1x32xf32, #tpu.memory_space<vmem>>, %arg16: memref<32x16xf32, #tpu.memory_space<vmem>>, %arg17: memref<1x16xf32, #tpu.memory_space<vmem>>, %arg18: memref<32x16xf32, #tpu.memory_space<vmem>>, %arg19: memref<32x1xf32, #tpu.memory_space<vmem>>, %arg20: memref<32x16xf32, #tpu.memory_space<vmem>>, %arg21: memref<1x1xf32, #tpu.memory_space<vmem>>, %arg22: memref<1x1xf32, #tpu.memory_space<vmem>>) attributes {dimension_semantics = [], scalar_prefetch = 0 : i64, scratch_operands = 0 : i64, tpu.core_type = #tpu.core_type<tc>} {
    %c0 = arith.constant 0 : index
    %c0_0 = arith.constant 0 : index
    %0 = vector.load %arg1[%c0, %c0_0] : memref<17x32xf32, #tpu.memory_space<vmem>>, vector<17x32xf32>
    %1 = tpu.concatenate %0, %0 in 0 : vector<17x32xf32>, vector<17x32xf32> -> vector<34x32xf32>
    %c0_1 = arith.constant 0 : index
    %c0_2 = arith.constant 0 : index
    %2 = vector.load %arg0[%c0_1, %c0_2] : memref<34x32xf32, #tpu.memory_space<vmem>>, vector<34x32xf32>
    %3 = arith.addf %2, %1 : vector<34x32xf32>
    %c0_3 = arith.constant 0 : index
    %c0_4 = arith.constant 0 : index
    %c0_5 = arith.constant 0 : index
    %4 = vector.load %arg2[%c0_3, %c0_4, %c0_5] : memref<1x1x32xf32, #tpu.memory_space<vmem>>, vector<1x1x32xf32>
    %5 = vector.shape_cast %4 : vector<1x1x32xf32> to vector<1x32xf32>
    %c0_6 = arith.constant 0 : index
    %c0_7 = arith.constant 0 : index
    %c0_8 = arith.constant 0 : index
    %6 = vector.load %arg3[%c0_6, %c0_7, %c0_8] : memref<1x1x32xf32, #tpu.memory_space<vmem>>, vector<1x1x32xf32>
    %7 = vector.shape_cast %6 : vector<1x1x32xf32> to vector<1x32xf32>
    %c0_9 = arith.constant 0 : index
    %c0_10 = arith.constant 0 : index
    %c0_11 = arith.constant 0 : index
    %8 = vector.load %arg4[%c0_9, %c0_10, %c0_11] : memref<1x32x96xf32, #tpu.memory_space<vmem>>, vector<1x32x96xf32>
    %9 = vector.shape_cast %8 : vector<1x32x96xf32> to vector<32x96xf32>
    %c0_12 = arith.constant 0 : index
    %c0_13 = arith.constant 0 : index
    %c0_14 = arith.constant 0 : index
    %10 = vector.load %arg5[%c0_12, %c0_13, %c0_14] : memref<1x1x96xf32, #tpu.memory_space<vmem>>, vector<1x1x96xf32>
    %11 = vector.shape_cast %10 : vector<1x1x96xf32> to vector<1x96xf32>
    %c0_15 = arith.constant 0 : index
    %c0_16 = arith.constant 0 : index
    %c0_17 = arith.constant 0 : index
    %12 = vector.load %arg6[%c0_15, %c0_16, %c0_17] : memref<1x32x32xf32, #tpu.memory_space<vmem>>, vector<1x32x32xf32>
    %13 = vector.shape_cast %12 : vector<1x32x32xf32> to vector<32x32xf32>
    %c0_18 = arith.constant 0 : index
    %c0_19 = arith.constant 0 : index
    %c0_20 = arith.constant 0 : index
    %14 = vector.load %arg7[%c0_18, %c0_19, %c0_20] : memref<1x1x32xf32, #tpu.memory_space<vmem>>, vector<1x1x32xf32>
    %15 = vector.shape_cast %14 : vector<1x1x32xf32> to vector<1x32xf32>
    %c0_21 = arith.constant 0 : index
    %c0_22 = arith.constant 0 : index
    %c0_23 = arith.constant 0 : index
    %16 = vector.load %arg8[%c0_21, %c0_22, %c0_23] : memref<1x1x32xf32, #tpu.memory_space<vmem>>, vector<1x1x32xf32>
    %17 = vector.shape_cast %16 : vector<1x1x32xf32> to vector<1x32xf32>
    %c0_24 = arith.constant 0 : index
    %c0_25 = arith.constant 0 : index
    %c0_26 = arith.constant 0 : index
    %18 = vector.load %arg9[%c0_24, %c0_25, %c0_26] : memref<1x1x32xf32, #tpu.memory_space<vmem>>, vector<1x1x32xf32>
    %19 = vector.shape_cast %18 : vector<1x1x32xf32> to vector<1x32xf32>
    %c0_27 = arith.constant 0 : index
    %c0_28 = arith.constant 0 : index
    %c0_29 = arith.constant 0 : index
    %20 = vector.load %arg10[%c0_27, %c0_28, %c0_29] : memref<1x32x128xf32, #tpu.memory_space<vmem>>, vector<1x32x128xf32>
    %21 = vector.shape_cast %20 : vector<1x32x128xf32> to vector<32x128xf32>
    %c0_30 = arith.constant 0 : index
    %c0_31 = arith.constant 0 : index
    %c0_32 = arith.constant 0 : index
    %22 = vector.load %arg11[%c0_30, %c0_31, %c0_32] : memref<1x1x128xf32, #tpu.memory_space<vmem>>, vector<1x1x128xf32>
    %23 = vector.shape_cast %22 : vector<1x1x128xf32> to vector<1x128xf32>
    %c0_33 = arith.constant 0 : index
    %c0_34 = arith.constant 0 : index
    %c0_35 = arith.constant 0 : index
    %24 = vector.load %arg12[%c0_33, %c0_34, %c0_35] : memref<1x128x32xf32, #tpu.memory_space<vmem>>, vector<1x128x32xf32>
    %25 = vector.shape_cast %24 : vector<1x128x32xf32> to vector<128x32xf32>
    %c0_36 = arith.constant 0 : index
    %c0_37 = arith.constant 0 : index
    %c0_38 = arith.constant 0 : index
    %26 = vector.load %arg13[%c0_36, %c0_37, %c0_38] : memref<1x1x32xf32, #tpu.memory_space<vmem>>, vector<1x1x32xf32>
    %27 = vector.shape_cast %26 : vector<1x1x32xf32> to vector<1x32xf32>
    %cst = arith.constant dense<0.000000e+00> : vector<34xf32>
    %28 = vector.multi_reduction <add>, %3, %cst [1] : vector<34x32xf32> to vector<34xf32>
    %29 = vector.shape_cast %28 : vector<34xf32> to vector<34x1xf32>
    %cst_39 = arith.constant 3.200000e+01 : f32
    %30 = vector.broadcast %cst_39 : f32 to vector<34x1xf32>
    %31 = arith.divf %29, %30 : vector<34x1xf32>
    %32 = vector.broadcast %31 : vector<34x1xf32> to vector<34x32xf32>
    %33 = arith.subf %3, %32 : vector<34x32xf32>
    %34 = arith.mulf %33, %33 : vector<34x32xf32>
    %cst_40 = arith.constant dense<0.000000e+00> : vector<34xf32>
    %35 = vector.multi_reduction <add>, %34, %cst_40 [1] : vector<34x32xf32> to vector<34xf32>
    %36 = vector.shape_cast %35 : vector<34xf32> to vector<34x1xf32>
    %cst_41 = arith.constant 3.200000e+01 : f32
    %37 = vector.broadcast %cst_41 : f32 to vector<34x1xf32>
    %38 = arith.divf %36, %37 : vector<34x1xf32>
    %39 = vector.broadcast %31 : vector<34x1xf32> to vector<34x32xf32>
    %40 = arith.subf %3, %39 : vector<34x32xf32>
    %cst_42 = arith.constant 9.99999974E-6 : f32
    %41 = vector.broadcast %cst_42 : f32 to vector<34x1xf32>
    %42 = arith.addf %38, %41 : vector<34x1xf32>
    %43 = math.rsqrt %42 : vector<34x1xf32>
    %44 = vector.broadcast %43 : vector<34x1xf32> to vector<34x32xf32>
    %45 = arith.mulf %40, %44 : vector<34x32xf32>
    %46 = vector.broadcast %5 : vector<1x32xf32> to vector<34x32xf32>
    %47 = arith.mulf %45, %46 : vector<34x32xf32>
    %48 = vector.broadcast %7 : vector<1x32xf32> to vector<34x32xf32>
    %49 = arith.addf %47, %48 : vector<34x32xf32>
    %cst_43 = arith.constant dense<0.000000e+00> : vector<34x96xf32>
    %50 = tpu.matmul %49, %9, %cst_43 {dimension_numbers = #tpu.dot_dimension_numbers<[1], [0], [0], [1], [0, 0, 1, 1], [], []>} : vector<34x32xf32>, vector<32x96xf32>, vector<34x96xf32> -> vector<34x96xf32>
    %51 = vector.broadcast %11 : vector<1x96xf32> to vector<34x96xf32>
    %52 = arith.addf %50, %51 : vector<34x96xf32>
    %53 = vector.extract_strided_slice %52 {offsets = [0, 0], sizes = [17, 96], strides = [1, 1]} : vector<34x96xf32> to vector<17x96xf32>
    %54 = vector.extract_strided_slice %53 {offsets = [0, 0], sizes = [17, 8], strides = [1, 1]} : vector<17x96xf32> to vector<17x8xf32>
    %55 = vector.extract_strided_slice %53 {offsets = [0, 32], sizes = [17, 8], strides = [1, 1]} : vector<17x96xf32> to vector<17x8xf32>
    %56 = vector.extract_strided_slice %53 {offsets = [0, 64], sizes = [17, 8], strides = [1, 1]} : vector<17x96xf32> to vector<17x8xf32>
    "tpu.trace_start"() <{level = 10 : i32, message = "qd,kd->qk"}> : () -> ()
    %cst_44 = arith.constant dense<0.000000e+00> : vector<17x17xf32>
    %57 = tpu.matmul %54, %55, %cst_44 {dimension_numbers = #tpu.dot_dimension_numbers<[1], [1], [0], [0], [0, 0, 1, 0], [], []>} : vector<17x8xf32>, vector<17x8xf32>, vector<17x17xf32> -> vector<17x17xf32>
    "tpu.trace_stop"() : () -> ()
    %cst_45 = arith.constant 0.353553385 : f32
    %58 = vector.broadcast %cst_45 : f32 to vector<17x17xf32>
    %59 = arith.mulf %57, %58 : vector<17x17xf32>
    %cst_46 = arith.constant dense<0xFF800000> : vector<17xf32>
    %60 = vector.multi_reduction <maximumf>, %59, %cst_46 [1] : vector<17x17xf32> to vector<17xf32>
    %61 = vector.shape_cast %60 : vector<17xf32> to vector<17x1xf32>
    %62 = vector.broadcast %61 : vector<17x1xf32> to vector<17x17xf32>
    %63 = arith.subf %59, %62 : vector<17x17xf32>
    %64 = math.exp %63 : vector<17x17xf32>
    %cst_47 = arith.constant dense<0.000000e+00> : vector<17xf32>
    %65 = vector.multi_reduction <add>, %64, %cst_47 [1] : vector<17x17xf32> to vector<17xf32>
    %66 = vector.shape_cast %65 : vector<17xf32> to vector<17x1xf32>
    %67 = vector.broadcast %66 : vector<17x1xf32> to vector<17x17xf32>
    %68 = arith.divf %64, %67 : vector<17x17xf32>
    %cst_48 = arith.constant dense<0.000000e+00> : vector<17x8xf32>
    %69 = tpu.matmul %68, %56, %cst_48 {dimension_numbers = #tpu.dot_dimension_numbers<[1], [0], [0], [1], [0, 0, 1, 1], [], []>} : vector<17x17xf32>, vector<17x8xf32>, vector<17x8xf32> -> vector<17x8xf32>
    %70 = vector.extract_strided_slice %53 {offsets = [0, 8], sizes = [17, 8], strides = [1, 1]} : vector<17x96xf32> to vector<17x8xf32>
    %71 = vector.extract_strided_slice %53 {offsets = [0, 40], sizes = [17, 8], strides = [1, 1]} : vector<17x96xf32> to vector<17x8xf32>
    %72 = vector.extract_strided_slice %53 {offsets = [0, 72], sizes = [17, 8], strides = [1, 1]} : vector<17x96xf32> to vector<17x8xf32>
    "tpu.trace_start"() <{level = 10 : i32, message = "qd,kd->qk"}> : () -> ()
    %cst_49 = arith.constant dense<0.000000e+00> : vector<17x17xf32>
    %73 = tpu.matmul %70, %71, %cst_49 {dimension_numbers = #tpu.dot_dimension_numbers<[1], [1], [0], [0], [0, 0, 1, 0], [], []>} : vector<17x8xf32>, vector<17x8xf32>, vector<17x17xf32> -> vector<17x17xf32>
    "tpu.trace_stop"() : () -> ()
    %cst_50 = arith.constant 0.353553385 : f32
    %74 = vector.broadcast %cst_50 : f32 to vector<17x17xf32>
    %75 = arith.mulf %73, %74 : vector<17x17xf32>
    %cst_51 = arith.constant dense<0xFF800000> : vector<17xf32>
    %76 = vector.multi_reduction <maximumf>, %75, %cst_51 [1] : vector<17x17xf32> to vector<17xf32>
    %77 = vector.shape_cast %76 : vector<17xf32> to vector<17x1xf32>
    %78 = vector.broadcast %77 : vector<17x1xf32> to vector<17x17xf32>
    %79 = arith.subf %75, %78 : vector<17x17xf32>
    %80 = math.exp %79 : vector<17x17xf32>
    %cst_52 = arith.constant dense<0.000000e+00> : vector<17xf32>
    %81 = vector.multi_reduction <add>, %80, %cst_52 [1] : vector<17x17xf32> to vector<17xf32>
    %82 = vector.shape_cast %81 : vector<17xf32> to vector<17x1xf32>
    %83 = vector.broadcast %82 : vector<17x1xf32> to vector<17x17xf32>
    %84 = arith.divf %80, %83 : vector<17x17xf32>
    %cst_53 = arith.constant dense<0.000000e+00> : vector<17x8xf32>
    %85 = tpu.matmul %84, %72, %cst_53 {dimension_numbers = #tpu.dot_dimension_numbers<[1], [0], [0], [1], [0, 0, 1, 1], [], []>} : vector<17x17xf32>, vector<17x8xf32>, vector<17x8xf32> -> vector<17x8xf32>
    %86 = vector.extract_strided_slice %53 {offsets = [0, 16], sizes = [17, 8], strides = [1, 1]} : vector<17x96xf32> to vector<17x8xf32>
    %87 = vector.extract_strided_slice %53 {offsets = [0, 48], sizes = [17, 8], strides = [1, 1]} : vector<17x96xf32> to vector<17x8xf32>
    %88 = vector.extract_strided_slice %53 {offsets = [0, 80], sizes = [17, 8], strides = [1, 1]} : vector<17x96xf32> to vector<17x8xf32>
    "tpu.trace_start"() <{level = 10 : i32, message = "qd,kd->qk"}> : () -> ()
    %cst_54 = arith.constant dense<0.000000e+00> : vector<17x17xf32>
    %89 = tpu.matmul %86, %87, %cst_54 {dimension_numbers = #tpu.dot_dimension_numbers<[1], [1], [0], [0], [0, 0, 1, 0], [], []>} : vector<17x8xf32>, vector<17x8xf32>, vector<17x17xf32> -> vector<17x17xf32>
    "tpu.trace_stop"() : () -> ()
    %cst_55 = arith.constant 0.353553385 : f32
    %90 = vector.broadcast %cst_55 : f32 to vector<17x17xf32>
    %91 = arith.mulf %89, %90 : vector<17x17xf32>
    %cst_56 = arith.constant dense<0xFF800000> : vector<17xf32>
    %92 = vector.multi_reduction <maximumf>, %91, %cst_56 [1] : vector<17x17xf32> to vector<17xf32>
    %93 = vector.shape_cast %92 : vector<17xf32> to vector<17x1xf32>
    %94 = vector.broadcast %93 : vector<17x1xf32> to vector<17x17xf32>
    %95 = arith.subf %91, %94 : vector<17x17xf32>
    %96 = math.exp %95 : vector<17x17xf32>
    %cst_57 = arith.constant dense<0.000000e+00> : vector<17xf32>
    %97 = vector.multi_reduction <add>, %96, %cst_57 [1] : vector<17x17xf32> to vector<17xf32>
    %98 = vector.shape_cast %97 : vector<17xf32> to vector<17x1xf32>
    %99 = vector.broadcast %98 : vector<17x1xf32> to vector<17x17xf32>
    %100 = arith.divf %96, %99 : vector<17x17xf32>
    %cst_58 = arith.constant dense<0.000000e+00> : vector<17x8xf32>
    %101 = tpu.matmul %100, %88, %cst_58 {dimension_numbers = #tpu.dot_dimension_numbers<[1], [0], [0], [1], [0, 0, 1, 1], [], []>} : vector<17x17xf32>, vector<17x8xf32>, vector<17x8xf32> -> vector<17x8xf32>
    %102 = vector.extract_strided_slice %53 {offsets = [0, 24], sizes = [17, 8], strides = [1, 1]} : vector<17x96xf32> to vector<17x8xf32>
    %103 = vector.extract_strided_slice %53 {offsets = [0, 56], sizes = [17, 8], strides = [1, 1]} : vector<17x96xf32> to vector<17x8xf32>
    %104 = vector.extract_strided_slice %53 {offsets = [0, 88], sizes = [17, 8], strides = [1, 1]} : vector<17x96xf32> to vector<17x8xf32>
    "tpu.trace_start"() <{level = 10 : i32, message = "qd,kd->qk"}> : () -> ()
    %cst_59 = arith.constant dense<0.000000e+00> : vector<17x17xf32>
    %105 = tpu.matmul %102, %103, %cst_59 {dimension_numbers = #tpu.dot_dimension_numbers<[1], [1], [0], [0], [0, 0, 1, 0], [], []>} : vector<17x8xf32>, vector<17x8xf32>, vector<17x17xf32> -> vector<17x17xf32>
    "tpu.trace_stop"() : () -> ()
    %cst_60 = arith.constant 0.353553385 : f32
    %106 = vector.broadcast %cst_60 : f32 to vector<17x17xf32>
    %107 = arith.mulf %105, %106 : vector<17x17xf32>
    %cst_61 = arith.constant dense<0xFF800000> : vector<17xf32>
    %108 = vector.multi_reduction <maximumf>, %107, %cst_61 [1] : vector<17x17xf32> to vector<17xf32>
    %109 = vector.shape_cast %108 : vector<17xf32> to vector<17x1xf32>
    %110 = vector.broadcast %109 : vector<17x1xf32> to vector<17x17xf32>
    %111 = arith.subf %107, %110 : vector<17x17xf32>
    %112 = math.exp %111 : vector<17x17xf32>
    %cst_62 = arith.constant dense<0.000000e+00> : vector<17xf32>
    %113 = vector.multi_reduction <add>, %112, %cst_62 [1] : vector<17x17xf32> to vector<17xf32>
    %114 = vector.shape_cast %113 : vector<17xf32> to vector<17x1xf32>
    %115 = vector.broadcast %114 : vector<17x1xf32> to vector<17x17xf32>
    %116 = arith.divf %112, %115 : vector<17x17xf32>
    %cst_63 = arith.constant dense<0.000000e+00> : vector<17x8xf32>
    %117 = tpu.matmul %116, %104, %cst_63 {dimension_numbers = #tpu.dot_dimension_numbers<[1], [0], [0], [1], [0, 0, 1, 1], [], []>} : vector<17x17xf32>, vector<17x8xf32>, vector<17x8xf32> -> vector<17x8xf32>
    %118 = tpu.concatenate %69, %85, %101, %117 in 1 : vector<17x8xf32>, vector<17x8xf32>, vector<17x8xf32>, vector<17x8xf32> -> vector<17x32xf32>
    %119 = vector.extract_strided_slice %52 {offsets = [17, 0], sizes = [17, 96], strides = [1, 1]} : vector<34x96xf32> to vector<17x96xf32>
    %120 = vector.extract_strided_slice %119 {offsets = [0, 0], sizes = [17, 8], strides = [1, 1]} : vector<17x96xf32> to vector<17x8xf32>
    %121 = vector.extract_strided_slice %119 {offsets = [0, 32], sizes = [17, 8], strides = [1, 1]} : vector<17x96xf32> to vector<17x8xf32>
    %122 = vector.extract_strided_slice %119 {offsets = [0, 64], sizes = [17, 8], strides = [1, 1]} : vector<17x96xf32> to vector<17x8xf32>
    "tpu.trace_start"() <{level = 10 : i32, message = "qd,kd->qk"}> : () -> ()
    %cst_64 = arith.constant dense<0.000000e+00> : vector<17x17xf32>
    %123 = tpu.matmul %120, %121, %cst_64 {dimension_numbers = #tpu.dot_dimension_numbers<[1], [1], [0], [0], [0, 0, 1, 0], [], []>} : vector<17x8xf32>, vector<17x8xf32>, vector<17x17xf32> -> vector<17x17xf32>
    "tpu.trace_stop"() : () -> ()
    %cst_65 = arith.constant 0.353553385 : f32
    %124 = vector.broadcast %cst_65 : f32 to vector<17x17xf32>
    %125 = arith.mulf %123, %124 : vector<17x17xf32>
    %cst_66 = arith.constant dense<0xFF800000> : vector<17xf32>
    %126 = vector.multi_reduction <maximumf>, %125, %cst_66 [1] : vector<17x17xf32> to vector<17xf32>
    %127 = vector.shape_cast %126 : vector<17xf32> to vector<17x1xf32>
    %128 = vector.broadcast %127 : vector<17x1xf32> to vector<17x17xf32>
    %129 = arith.subf %125, %128 : vector<17x17xf32>
    %130 = math.exp %129 : vector<17x17xf32>
    %cst_67 = arith.constant dense<0.000000e+00> : vector<17xf32>
    %131 = vector.multi_reduction <add>, %130, %cst_67 [1] : vector<17x17xf32> to vector<17xf32>
    %132 = vector.shape_cast %131 : vector<17xf32> to vector<17x1xf32>
    %133 = vector.broadcast %132 : vector<17x1xf32> to vector<17x17xf32>
    %134 = arith.divf %130, %133 : vector<17x17xf32>
    %cst_68 = arith.constant dense<0.000000e+00> : vector<17x8xf32>
    %135 = tpu.matmul %134, %122, %cst_68 {dimension_numbers = #tpu.dot_dimension_numbers<[1], [0], [0], [1], [0, 0, 1, 1], [], []>} : vector<17x17xf32>, vector<17x8xf32>, vector<17x8xf32> -> vector<17x8xf32>
    %136 = vector.extract_strided_slice %119 {offsets = [0, 8], sizes = [17, 8], strides = [1, 1]} : vector<17x96xf32> to vector<17x8xf32>
    %137 = vector.extract_strided_slice %119 {offsets = [0, 40], sizes = [17, 8], strides = [1, 1]} : vector<17x96xf32> to vector<17x8xf32>
    %138 = vector.extract_strided_slice %119 {offsets = [0, 72], sizes = [17, 8], strides = [1, 1]} : vector<17x96xf32> to vector<17x8xf32>
    "tpu.trace_start"() <{level = 10 : i32, message = "qd,kd->qk"}> : () -> ()
    %cst_69 = arith.constant dense<0.000000e+00> : vector<17x17xf32>
    %139 = tpu.matmul %136, %137, %cst_69 {dimension_numbers = #tpu.dot_dimension_numbers<[1], [1], [0], [0], [0, 0, 1, 0], [], []>} : vector<17x8xf32>, vector<17x8xf32>, vector<17x17xf32> -> vector<17x17xf32>
    "tpu.trace_stop"() : () -> ()
    %cst_70 = arith.constant 0.353553385 : f32
    %140 = vector.broadcast %cst_70 : f32 to vector<17x17xf32>
    %141 = arith.mulf %139, %140 : vector<17x17xf32>
    %cst_71 = arith.constant dense<0xFF800000> : vector<17xf32>
    %142 = vector.multi_reduction <maximumf>, %141, %cst_71 [1] : vector<17x17xf32> to vector<17xf32>
    %143 = vector.shape_cast %142 : vector<17xf32> to vector<17x1xf32>
    %144 = vector.broadcast %143 : vector<17x1xf32> to vector<17x17xf32>
    %145 = arith.subf %141, %144 : vector<17x17xf32>
    %146 = math.exp %145 : vector<17x17xf32>
    %cst_72 = arith.constant dense<0.000000e+00> : vector<17xf32>
    %147 = vector.multi_reduction <add>, %146, %cst_72 [1] : vector<17x17xf32> to vector<17xf32>
    %148 = vector.shape_cast %147 : vector<17xf32> to vector<17x1xf32>
    %149 = vector.broadcast %148 : vector<17x1xf32> to vector<17x17xf32>
    %150 = arith.divf %146, %149 : vector<17x17xf32>
    %cst_73 = arith.constant dense<0.000000e+00> : vector<17x8xf32>
    %151 = tpu.matmul %150, %138, %cst_73 {dimension_numbers = #tpu.dot_dimension_numbers<[1], [0], [0], [1], [0, 0, 1, 1], [], []>} : vector<17x17xf32>, vector<17x8xf32>, vector<17x8xf32> -> vector<17x8xf32>
    %152 = vector.extract_strided_slice %119 {offsets = [0, 16], sizes = [17, 8], strides = [1, 1]} : vector<17x96xf32> to vector<17x8xf32>
    %153 = vector.extract_strided_slice %119 {offsets = [0, 48], sizes = [17, 8], strides = [1, 1]} : vector<17x96xf32> to vector<17x8xf32>
    %154 = vector.extract_strided_slice %119 {offsets = [0, 80], sizes = [17, 8], strides = [1, 1]} : vector<17x96xf32> to vector<17x8xf32>
    "tpu.trace_start"() <{level = 10 : i32, message = "qd,kd->qk"}> : () -> ()
    %cst_74 = arith.constant dense<0.000000e+00> : vector<17x17xf32>
    %155 = tpu.matmul %152, %153, %cst_74 {dimension_numbers = #tpu.dot_dimension_numbers<[1], [1], [0], [0], [0, 0, 1, 0], [], []>} : vector<17x8xf32>, vector<17x8xf32>, vector<17x17xf32> -> vector<17x17xf32>
    "tpu.trace_stop"() : () -> ()
    %cst_75 = arith.constant 0.353553385 : f32
    %156 = vector.broadcast %cst_75 : f32 to vector<17x17xf32>
    %157 = arith.mulf %155, %156 : vector<17x17xf32>
    %cst_76 = arith.constant dense<0xFF800000> : vector<17xf32>
    %158 = vector.multi_reduction <maximumf>, %157, %cst_76 [1] : vector<17x17xf32> to vector<17xf32>
    %159 = vector.shape_cast %158 : vector<17xf32> to vector<17x1xf32>
    %160 = vector.broadcast %159 : vector<17x1xf32> to vector<17x17xf32>
    %161 = arith.subf %157, %160 : vector<17x17xf32>
    %162 = math.exp %161 : vector<17x17xf32>
    %cst_77 = arith.constant dense<0.000000e+00> : vector<17xf32>
    %163 = vector.multi_reduction <add>, %162, %cst_77 [1] : vector<17x17xf32> to vector<17xf32>
    %164 = vector.shape_cast %163 : vector<17xf32> to vector<17x1xf32>
    %165 = vector.broadcast %164 : vector<17x1xf32> to vector<17x17xf32>
    %166 = arith.divf %162, %165 : vector<17x17xf32>
    %cst_78 = arith.constant dense<0.000000e+00> : vector<17x8xf32>
    %167 = tpu.matmul %166, %154, %cst_78 {dimension_numbers = #tpu.dot_dimension_numbers<[1], [0], [0], [1], [0, 0, 1, 1], [], []>} : vector<17x17xf32>, vector<17x8xf32>, vector<17x8xf32> -> vector<17x8xf32>
    %168 = vector.extract_strided_slice %119 {offsets = [0, 24], sizes = [17, 8], strides = [1, 1]} : vector<17x96xf32> to vector<17x8xf32>
    %169 = vector.extract_strided_slice %119 {offsets = [0, 56], sizes = [17, 8], strides = [1, 1]} : vector<17x96xf32> to vector<17x8xf32>
    %170 = vector.extract_strided_slice %119 {offsets = [0, 88], sizes = [17, 8], strides = [1, 1]} : vector<17x96xf32> to vector<17x8xf32>
    "tpu.trace_start"() <{level = 10 : i32, message = "qd,kd->qk"}> : () -> ()
    %cst_79 = arith.constant dense<0.000000e+00> : vector<17x17xf32>
    %171 = tpu.matmul %168, %169, %cst_79 {dimension_numbers = #tpu.dot_dimension_numbers<[1], [1], [0], [0], [0, 0, 1, 0], [], []>} : vector<17x8xf32>, vector<17x8xf32>, vector<17x17xf32> -> vector<17x17xf32>
    "tpu.trace_stop"() : () -> ()
    %cst_80 = arith.constant 0.353553385 : f32
    %172 = vector.broadcast %cst_80 : f32 to vector<17x17xf32>
    %173 = arith.mulf %171, %172 : vector<17x17xf32>
    %cst_81 = arith.constant dense<0xFF800000> : vector<17xf32>
    %174 = vector.multi_reduction <maximumf>, %173, %cst_81 [1] : vector<17x17xf32> to vector<17xf32>
    %175 = vector.shape_cast %174 : vector<17xf32> to vector<17x1xf32>
    %176 = vector.broadcast %175 : vector<17x1xf32> to vector<17x17xf32>
    %177 = arith.subf %173, %176 : vector<17x17xf32>
    %178 = math.exp %177 : vector<17x17xf32>
    %cst_82 = arith.constant dense<0.000000e+00> : vector<17xf32>
    %179 = vector.multi_reduction <add>, %178, %cst_82 [1] : vector<17x17xf32> to vector<17xf32>
    %180 = vector.shape_cast %179 : vector<17xf32> to vector<17x1xf32>
    %181 = vector.broadcast %180 : vector<17x1xf32> to vector<17x17xf32>
    %182 = arith.divf %178, %181 : vector<17x17xf32>
    %cst_83 = arith.constant dense<0.000000e+00> : vector<17x8xf32>
    %183 = tpu.matmul %182, %170, %cst_83 {dimension_numbers = #tpu.dot_dimension_numbers<[1], [0], [0], [1], [0, 0, 1, 1], [], []>} : vector<17x17xf32>, vector<17x8xf32>, vector<17x8xf32> -> vector<17x8xf32>
    %184 = tpu.concatenate %135, %151, %167, %183 in 1 : vector<17x8xf32>, vector<17x8xf32>, vector<17x8xf32>, vector<17x8xf32> -> vector<17x32xf32>
    %185 = tpu.concatenate %118, %184 in 0 : vector<17x32xf32>, vector<17x32xf32> -> vector<34x32xf32>
    %cst_84 = arith.constant dense<0.000000e+00> : vector<34x32xf32>
    %186 = tpu.matmul %185, %13, %cst_84 {dimension_numbers = #tpu.dot_dimension_numbers<[1], [0], [0], [1], [0, 0, 1, 1], [], []>} : vector<34x32xf32>, vector<32x32xf32>, vector<34x32xf32> -> vector<34x32xf32>
    %187 = arith.addf %3, %186 : vector<34x32xf32>
    %188 = vector.broadcast %15 : vector<1x32xf32> to vector<34x32xf32>
    %189 = arith.addf %187, %188 : vector<34x32xf32>
    %cst_85 = arith.constant dense<0.000000e+00> : vector<34xf32>
    %190 = vector.multi_reduction <add>, %189, %cst_85 [1] : vector<34x32xf32> to vector<34xf32>
    %191 = vector.shape_cast %190 : vector<34xf32> to vector<34x1xf32>
    %cst_86 = arith.constant 3.200000e+01 : f32
    %192 = vector.broadcast %cst_86 : f32 to vector<34x1xf32>
    %193 = arith.divf %191, %192 : vector<34x1xf32>
    %194 = vector.broadcast %193 : vector<34x1xf32> to vector<34x32xf32>
    %195 = arith.subf %189, %194 : vector<34x32xf32>
    %196 = arith.mulf %195, %195 : vector<34x32xf32>
    %cst_87 = arith.constant dense<0.000000e+00> : vector<34xf32>
    %197 = vector.multi_reduction <add>, %196, %cst_87 [1] : vector<34x32xf32> to vector<34xf32>
    %198 = vector.shape_cast %197 : vector<34xf32> to vector<34x1xf32>
    %cst_88 = arith.constant 3.200000e+01 : f32
    %199 = vector.broadcast %cst_88 : f32 to vector<34x1xf32>
    %200 = arith.divf %198, %199 : vector<34x1xf32>
    %201 = vector.broadcast %193 : vector<34x1xf32> to vector<34x32xf32>
    %202 = arith.subf %189, %201 : vector<34x32xf32>
    %cst_89 = arith.constant 9.99999974E-6 : f32
    %203 = vector.broadcast %cst_89 : f32 to vector<34x1xf32>
    %204 = arith.addf %200, %203 : vector<34x1xf32>
    %205 = math.rsqrt %204 : vector<34x1xf32>
    %206 = vector.broadcast %205 : vector<34x1xf32> to vector<34x32xf32>
    %207 = arith.mulf %202, %206 : vector<34x32xf32>
    %208 = vector.broadcast %17 : vector<1x32xf32> to vector<34x32xf32>
    %209 = arith.mulf %207, %208 : vector<34x32xf32>
    %210 = vector.broadcast %19 : vector<1x32xf32> to vector<34x32xf32>
    %211 = arith.addf %209, %210 : vector<34x32xf32>
    %cst_90 = arith.constant dense<0.000000e+00> : vector<34x128xf32>
    %212 = tpu.matmul %211, %21, %cst_90 {dimension_numbers = #tpu.dot_dimension_numbers<[1], [0], [0], [1], [0, 0, 1, 1], [], []>} : vector<34x32xf32>, vector<32x128xf32>, vector<34x128xf32> -> vector<34x128xf32>
    %213 = vector.broadcast %23 : vector<1x128xf32> to vector<34x128xf32>
    %214 = arith.addf %212, %213 : vector<34x128xf32>
    %215 = arith.mulf %214, %214 : vector<34x128xf32>
    %216 = arith.mulf %214, %215 : vector<34x128xf32>
    %cst_91 = arith.constant 4.471500e-02 : f32
    %217 = vector.broadcast %cst_91 : f32 to vector<34x128xf32>
    %218 = arith.mulf %217, %216 : vector<34x128xf32>
    %219 = arith.addf %214, %218 : vector<34x128xf32>
    %cst_92 = arith.constant 0.797884583 : f32
    %220 = vector.broadcast %cst_92 : f32 to vector<34x128xf32>
    %221 = arith.mulf %220, %219 : vector<34x128xf32>
    %222 = math.tanh %221 : vector<34x128xf32>
    %cst_93 = arith.constant 1.000000e+00 : f32
    %223 = vector.broadcast %cst_93 : f32 to vector<34x128xf32>
    %224 = arith.addf %223, %222 : vector<34x128xf32>
    %cst_94 = arith.constant 5.000000e-01 : f32
    %225 = vector.broadcast %cst_94 : f32 to vector<34x128xf32>
    %226 = arith.mulf %225, %224 : vector<34x128xf32>
    %227 = arith.mulf %214, %226 : vector<34x128xf32>
    %cst_95 = arith.constant dense<0.000000e+00> : vector<34x32xf32>
    %228 = tpu.matmul %227, %25, %cst_95 {dimension_numbers = #tpu.dot_dimension_numbers<[1], [0], [0], [1], [0, 0, 1, 1], [], []>} : vector<34x128xf32>, vector<128x32xf32>, vector<34x32xf32> -> vector<34x32xf32>
    %229 = vector.broadcast %27 : vector<1x32xf32> to vector<34x32xf32>
    %230 = arith.addf %228, %229 : vector<34x32xf32>
    %231 = arith.addf %189, %230 : vector<34x32xf32>
    %c0_96 = arith.constant 0 : index
    %c0_97 = arith.constant 0 : index
    %232 = vector.load %arg14[%c0_96, %c0_97] : memref<1x32xf32, #tpu.memory_space<vmem>>, vector<1x32xf32>
    %c0_98 = arith.constant 0 : index
    %c0_99 = arith.constant 0 : index
    %233 = vector.load %arg15[%c0_98, %c0_99] : memref<1x32xf32, #tpu.memory_space<vmem>>, vector<1x32xf32>
    %cst_100 = arith.constant dense<0.000000e+00> : vector<34xf32>
    %234 = vector.multi_reduction <add>, %231, %cst_100 [1] : vector<34x32xf32> to vector<34xf32>
    %235 = vector.shape_cast %234 : vector<34xf32> to vector<34x1xf32>
    %cst_101 = arith.constant 3.200000e+01 : f32
    %236 = vector.broadcast %cst_101 : f32 to vector<34x1xf32>
    %237 = arith.divf %235, %236 : vector<34x1xf32>
    %238 = vector.broadcast %237 : vector<34x1xf32> to vector<34x32xf32>
    %239 = arith.subf %231, %238 : vector<34x32xf32>
    %240 = arith.mulf %239, %239 : vector<34x32xf32>
    %cst_102 = arith.constant dense<0.000000e+00> : vector<34xf32>
    %241 = vector.multi_reduction <add>, %240, %cst_102 [1] : vector<34x32xf32> to vector<34xf32>
    %242 = vector.shape_cast %241 : vector<34xf32> to vector<34x1xf32>
    %cst_103 = arith.constant 3.200000e+01 : f32
    %243 = vector.broadcast %cst_103 : f32 to vector<34x1xf32>
    %244 = arith.divf %242, %243 : vector<34x1xf32>
    %245 = vector.broadcast %237 : vector<34x1xf32> to vector<34x32xf32>
    %246 = arith.subf %231, %245 : vector<34x32xf32>
    %cst_104 = arith.constant 9.99999974E-6 : f32
    %247 = vector.broadcast %cst_104 : f32 to vector<34x1xf32>
    %248 = arith.addf %244, %247 : vector<34x1xf32>
    %249 = math.rsqrt %248 : vector<34x1xf32>
    %250 = vector.broadcast %249 : vector<34x1xf32> to vector<34x32xf32>
    %251 = arith.mulf %246, %250 : vector<34x32xf32>
    %252 = vector.broadcast %232 : vector<1x32xf32> to vector<34x32xf32>
    %253 = arith.mulf %251, %252 : vector<34x32xf32>
    %254 = vector.broadcast %233 : vector<1x32xf32> to vector<34x32xf32>
    %255 = arith.addf %253, %254 : vector<34x32xf32>
    %c0_105 = arith.constant 0 : index
    %c0_106 = arith.constant 0 : index
    %256 = vector.load %arg16[%c0_105, %c0_106] : memref<32x16xf32, #tpu.memory_space<vmem>>, vector<32x16xf32>
    %cst_107 = arith.constant dense<0.000000e+00> : vector<34x16xf32>
    %257 = tpu.matmul %255, %256, %cst_107 {dimension_numbers = #tpu.dot_dimension_numbers<[1], [0], [0], [1], [0, 0, 1, 1], [], []>} : vector<34x32xf32>, vector<32x16xf32>, vector<34x16xf32> -> vector<34x16xf32>
    %c0_108 = arith.constant 0 : index
    %c0_109 = arith.constant 0 : index
    %258 = vector.load %arg17[%c0_108, %c0_109] : memref<1x16xf32, #tpu.memory_space<vmem>>, vector<1x16xf32>
    %259 = vector.broadcast %258 : vector<1x16xf32> to vector<34x16xf32>
    %260 = arith.addf %257, %259 : vector<34x16xf32>
    %261 = vector.extract_strided_slice %260 {offsets = [1, 0], sizes = [16, 16], strides = [1, 1]} : vector<34x16xf32> to vector<16x16xf32>
    %262 = vector.extract_strided_slice %260 {offsets = [18, 0], sizes = [16, 16], strides = [1, 1]} : vector<34x16xf32> to vector<16x16xf32>
    %263 = tpu.concatenate %261, %262 in 0 : vector<16x16xf32>, vector<16x16xf32> -> vector<32x16xf32>
    %c0_110 = arith.constant 0 : index
    %c0_111 = arith.constant 0 : index
    %264 = vector.load %arg20[%c0_110, %c0_111] : memref<32x16xf32, #tpu.memory_space<vmem>>, vector<32x16xf32>
    tpu.vector_store %arg20[%c0_110, %c0_111], %263 {strides = array<i32>} : memref<32x16xf32, #tpu.memory_space<vmem>>, vector<32x16xf32>,
    %c0_112 = arith.constant 0 : index
    %c0_113 = arith.constant 0 : index
    %265 = vector.load %arg18[%c0_112, %c0_113] : memref<32x16xf32, #tpu.memory_space<vmem>>, vector<32x16xf32>
    %266 = arith.cmpf one, %265, %265 : vector<32x16xf32>
    %cst_114 = arith.constant 0.000000e+00 : f32
    %267 = vector.broadcast %cst_114 : f32 to vector<32x16xf32>
    %268 = arith.select %266, %267, %265 : vector<32x16xi1>, vector<32x16xf32>
    %c0_115 = arith.constant 0 : index
    %c0_116 = arith.constant 0 : index
    %269 = vector.load %arg19[%c0_115, %c0_116] : memref<32x1xf32, #tpu.memory_space<vmem>>, vector<32x1xf32>
    %270 = arith.subf %263, %268 : vector<32x16xf32>
    %271 = arith.mulf %270, %270 : vector<32x16xf32>
    %cst_117 = arith.constant dense<0.000000e+00> : vector<32xf32>
    %272 = vector.multi_reduction <add>, %271, %cst_117 [1] : vector<32x16xf32> to vector<32xf32>
    %273 = vector.shape_cast %272 : vector<32xf32> to vector<32x1xf32>
    %cst_118 = arith.constant 1.600000e+01 : f32
    %274 = vector.broadcast %cst_118 : f32 to vector<32x1xf32>
    %275 = arith.divf %273, %274 : vector<32x1xf32>
    %cst_119 = arith.constant 0.000000e+00 : f32
    %276 = vector.broadcast %cst_119 : f32 to vector<32x1xf32>
    %277 = arith.cmpf ogt, %269, %276 : vector<32x1xf32>
    %cst_120 = arith.constant 0.000000e+00 : f32
    %278 = vector.broadcast %cst_120 : f32 to vector<32x1xf32>
    %279 = arith.select %277, %275, %278 : vector<32x1xi1>, vector<32x1xf32>
    %280 = arith.mulf %279, %269 : vector<32x1xf32>
    %cst_121 = arith.constant dense<0.000000e+00> : vector<1xf32>
    %281 = vector.multi_reduction <add>, %280, %cst_121 [0] : vector<32x1xf32> to vector<1xf32>
    %282 = vector.shape_cast %281 : vector<1xf32> to vector<1x1xf32>
    %c0_122 = arith.constant 0 : index
    %c0_123 = arith.constant 0 : index
    %283 = vector.load %arg21[%c0_122, %c0_123] : memref<1x1xf32, #tpu.memory_space<vmem>>, vector<1x1xf32>
    tpu.vector_store %arg21[%c0_122, %c0_123], %282 {strides = array<i32>} : memref<1x1xf32, #tpu.memory_space<vmem>>, vector<1x1xf32>,
    %cst_124 = arith.constant dense<0.000000e+00> : vector<1xf32>
    %284 = vector.multi_reduction <add>, %269, %cst_124 [0] : vector<32x1xf32> to vector<1xf32>
    %285 = vector.shape_cast %284 : vector<1xf32> to vector<1x1xf32>
    %c0_125 = arith.constant 0 : index
    %c0_126 = arith.constant 0 : index
    %286 = vector.load %arg22[%c0_125, %c0_126] : memref<1x1xf32, #tpu.memory_space<vmem>>, vector<1x1xf32>
    tpu.vector_store %arg22[%c0_125, %c0_126], %285 {strides = array<i32>} : memref<1x1xf32, #tpu.memory_space<vmem>>, vector<1x1xf32>,
    return
  }
}

</mosaic_0001>

<llo_original>
// kernel: _lambda_.3
$region0: #{_lambda_.3}
  #allocation0 [shape = 'u32[]', space=smem, size = 0x4, offset = 0x4, fixed_abs, tag = 'smem constant byte address 0x4 - core index']
  #allocation1 [shape = 'u32[72,128]{1,0:T(1,128)}', space=vmem, size = 0x9000, scoped, tag = 'internal scratch']
  %s0 = inlined_call_operand.vmem [shape: f32[32,16], index: 0, kind: input, shape index: {}]
  %s1 = inlined_call_operand.vmem [shape: f32[16,32], index: 1, kind: input, shape index: {}]
  %s2 = inlined_call_operand.vmem [shape: f32[1,32], index: 2, kind: input, shape index: {}]
  %s3 = inlined_call_operand.vmem [shape: f32[16,32], index: 3, kind: input, shape index: {}]
  %s4 = inlined_call_operand.vmem [shape: f32[32,32], index: 4, kind: output, shape index: {}]
  %s5 = sld [smem:[#allocation0]]
  $region26: #{_lambda_.3} parent=0
    _
  %s7 = ssub.s32 1, %s5
  %s8 = scalar_select 0, %s7, %s5
  // Predicated region
  $region2: #{_lambda_.3} parent=0 // pred_check
    _
  $region3: #{_lambda_.3} parent=0 // pred_check_branch
    %10 = sbr.rel (0) target = $region5
  $region4: #{_lambda_.3} parent=0 // pred_region
    _
  $region5: #{_lambda_.3} parent=0 // pred_fallthru
    _
  // Predicated region
  $region6: #{_lambda_.3} parent=0 // pred_check
    _
  $region7: #{_lambda_.3} parent=0 // pred_check_branch
    %12 = sbr.rel (0) target = $region9
  $region8: #{_lambda_.3} parent=0 // pred_region
    _
  $region9: #{_lambda_.3} parent=0 // pred_fallthru
    _
  // Predicated region
  $region10: #{_lambda_.3} parent=0 // pred_check
    _
  $region11: #{_lambda_.3} parent=0 // pred_check_branch
    %14 = sbr.rel (0) target = $region13
  $region12: #{_lambda_.3} parent=0 // pred_region
    _
  $region13: #{_lambda_.3} parent=0 // pred_fallthru
    _
  // Predicated region
  $region14: #{_lambda_.3} parent=0 // pred_check
    _
  $region15: #{_lambda_.3} parent=0 // pred_check_branch
    %16 = sbr.rel (0) target = $region17
  $region16: #{_lambda_.3} parent=0 // pred_region
    _
  $region17: #{_lambda_.3} parent=0 // pred_fallthru
    _
  %v17 = vld [vmem:[%s0] sm:$0xff]
  %v18 = vld [vmem:[%s0 + $0x8] sm:$0xff]
  %v19 = vld [vmem:[%s0 + $0x10] sm:$0xff]
  %v20 = vld [vmem:[%s0 + $0x18] sm:$0xff]
  %v21 = vld [vmem:[%s1] sm:$0xff]
  %v22 = vld [vmem:[%s1 + $0x8] sm:$0xff]
  %v23 = vld [vmem:[%s2] sm:$0x1]
  %v25 = vperm.slane %v23, 0
  %vm27 = vcmask 130048
  %v29 = vsel %vm27, %v17, 0
  %v32 = vsel %vm27, %v18, 0
  %v35 = vsel %vm27, %v19, 0
  %v38 = vsel %vm27, %v20, 0
  %40 = vmatpush.msra.mxu0 0.0
  %41 = vmatpush.msra.mxu0 0.0
  %42 = vmatpush.msra.mxu0 0.0
  %43 = vmatpush.msra.mxu0 0.0
  %44 = vmatpush.msra.mxu0 0.0
  %45 = vmatpush.msra.mxu0 0.0
  %46 = vmatpush.msra.mxu0 0.0
  %47 = vmatpush.msra.mxu0 0.0
  %48 = vmatpush.msra.mxu0 0.0
  %49 = vmatpush.msra.mxu0 0.0
  %50 = vmatpush.msra.mxu0 0.0
  %51 = vmatpush.msra.mxu0 0.0
  %52 = vmatpush.msra.mxu0 0.0
  %53 = vmatpush.msra.mxu0 0.0
  %54 = vmatpush.msra.mxu0 %v22
  %55 = vmatpush.msra.mxu0 %v21
  %56 = vmatmul.f32.gmra.mxu0 %v29
  %v57 = vpop.f32.mrf.mxu0
  %v58 = vadd.f32 %v25, %v57
  %59 = vmatmul.f32.gmra.mxu0 %v32
  %v60 = vpop.f32.mrf.mxu0
  %v61 = vadd.f32 %v25, %v60
  %62 = vmatmul.f32.gmra.mxu0 %v35
  %v63 = vpop.f32.mrf.mxu0
  %v64 = vadd.f32 %v25, %v63
  %65 = vmatmul.f32.gmra.mxu0 %v38
  %v66 = vpop.f32.mrf.mxu0
  %v67 = vadd.f32 %v25, %v66
  %68 = vdwg.mxu0
  %v69 = vld [vmem:[%s3] sm:$0xff]
  %v70 = vld [vmem:[%s3 + $0x8] sm:$0xff]
  %v71 = vadd.f32 %v58, %v69
  %v72 = vadd.f32 %v61, %v70
  %v73 = vadd.f32 %v64, %v69
  %v74 = vadd.f32 %v67, %v70
  %vm75 = vcmask 261120
  %76 = vst.msk [vmem:[%s4] sm:$0xff] %vm75, %v71
  %77 = vst.msk [vmem:[%s4 + $0x8] sm:$0xff] %vm75, %v72
  %78 = vst.msk [vmem:[%s4 + $0x10] sm:$0xff] %vm75, %v73
  %79 = vst.msk [vmem:[%s4 + $0x18] sm:$0xff] %vm75, %v74
  // Predicated region
  $region18: #{_lambda_.3} parent=0 // pred_check
    _
  $region19: #{_lambda_.3} parent=0 // pred_check_branch
    %81 = sbr.rel (0) target = $region21
  $region20: #{_lambda_.3} parent=0 // pred_region
    _
  $region21: #{_lambda_.3} parent=0 // pred_fallthru
    _
  // Predicated region
  $region22: #{_lambda_.3} parent=0 // pred_check
    _
  $region23: #{_lambda_.3} parent=0 // pred_check_branch
    %83 = sbr.rel (0) target = $region25
  $region24: #{_lambda_.3} parent=0 // pred_region
    _
  $region25: #{_lambda_.3} parent=0 // pred_fallthru
    _

// kernel: _lambda_.4
$region0: #{_lambda_.4}
  #allocation0 [shape = 'u32[]', space=smem, size = 0x4, offset = 0x4, fixed_abs, tag = 'smem constant byte address 0x4 - core index']
  #allocation1 [shape = 'u32[72,128]{1,0:T(1,128)}', space=vmem, size = 0x9000, scoped, tag = 'internal scratch']
  %s0 = inlined_call_operand.vmem [shape: f32[10,32], index: 0, kind: input, shape index: {}]
  %s1 = inlined_call_operand.vmem [shape: f32[2,1,32], index: 1, kind: input, shape index: {}]
  %s2 = inlined_call_operand.vmem [shape: f32[2,1,32], index: 2, kind: input, shape index: {}]
  %s3 = inlined_call_operand.vmem [shape: f32[2,32,96], index: 3, kind: input, shape index: {}]
  %s4 = inlined_call_operand.vmem [shape: f32[2,1,96], index: 4, kind: input, shape index: {}]
  %s5 = inlined_call_operand.vmem [shape: f32[2,32,32], index: 5, kind: input, shape index: {}]
  %s6 = inlined_call_operand.vmem [shape: f32[2,1,32], index: 6, kind: input, shape index: {}]
  %s7 = inlined_call_operand.vmem [shape: f32[2,1,32], index: 7, kind: input, shape index: {}]
  %s8 = inlined_call_operand.vmem [shape: f32[2,1,32], index: 8, kind: input, shape index: {}]
  %s9 = inlined_call_operand.vmem [shape: f32[2,32,128], index: 9, kind: input, shape index: {}]
  %s10 = inlined_call_operand.vmem [shape: f32[2,1,128], index: 10, kind: input, shape index: {}]
  %s11 = inlined_call_operand.vmem [shape: f32[2,128,32], index: 11, kind: input, shape index: {}]
  %s12 = inlined_call_operand.vmem [shape: f32[2,1,32], index: 12, kind: input, shape index: {}]
  %s13 = inlined_call_operand.vmem [shape: f32[1,32], index: 13, kind: input, shape index: {}]
  %s14 = inlined_call_operand.vmem [shape: f32[1,32], index: 14, kind: input, shape index: {}]
  %s15 = inlined_call_operand.vmem [shape: f32[32,32], index: 15, kind: input, shape index: {}]
  %s16 = inlined_call_operand.vmem [shape: f32[1,32], index: 16, kind: input, shape index: {}]
  %s17 = inlined_call_operand.vmem [shape: f32[10,32], index: 17, kind: output, shape index: {}]
  %s18 = sld [smem:[#allocation0]]
  $region78: #{_lambda_.4} parent=0
    _
  %s20 = ssub.s32 1, %s18
  %s21 = scalar_select 0, %s20, %s18
  // Predicated region
  $region2: #{_lambda_.4} parent=0 // pred_check
    _
  $region3: #{_lambda_.4} parent=0 // pred_check_branch
    %23 = sbr.rel (0) target = $region5
  $region4: #{_lambda_.4} parent=0 // pred_region
    _
  $region5: #{_lambda_.4} parent=0 // pred_fallthru
    _
  // Predicated region
  $region6: #{_lambda_.4} parent=0 // pred_check
    _
  $region7: #{_lambda_.4} parent=0 // pred_check_branch
    %25 = sbr.rel (0) target = $region9
  $region8: #{_lambda_.4} parent=0 // pred_region
    _
  $region9: #{_lambda_.4} parent=0 // pred_fallthru
    _
  // Predicated region
  $region10: #{_lambda_.4} parent=0 // pred_check
    _
  $region11: #{_lambda_.4} parent=0 // pred_check_branch
    %27 = sbr.rel (0) target = $region13
  $region12: #{_lambda_.4} parent=0 // pred_region
    _
  $region13: #{_lambda_.4} parent=0 // pred_fallthru
    _
  // Predicated region
  $region14: #{_lambda_.4} parent=0 // pred_check
    _
  $region15: #{_lambda_.4} parent=0 // pred_check_branch
    %29 = sbr.rel (0) target = $region17
  $region16: #{_lambda_.4} parent=0 // pred_region
    _
  $region17: #{_lambda_.4} parent=0 // pred_fallthru
    _
  // Predicated region
  $region18: #{_lambda_.4} parent=0 // pred_check
    _
  $region19: #{_lambda_.4} parent=0 // pred_check_branch
    %31 = sbr.rel (0) target = $region21
  $region20: #{_lambda_.4} parent=0 // pred_region
    _
  $region21: #{_lambda_.4} parent=0 // pred_fallthru
    _
  // Predicated region
  $region22: #{_lambda_.4} parent=0 // pred_check
    _
  $region23: #{_lambda_.4} parent=0 // pred_check_branch
    %33 = sbr.rel (0) target = $region25
  $region24: #{_lambda_.4} parent=0 // pred_region
    _
  $region25: #{_lambda_.4} parent=0 // pred_fallthru
    _
  // Predicated region
  $region26: #{_lambda_.4} parent=0 // pred_check
    _
  $region27: #{_lambda_.4} parent=0 // pred_check_branch
    %35 = sbr.rel (0) target = $region29
  $region28: #{_lambda_.4} parent=0 // pred_region
    _
  $region29: #{_lambda_.4} parent=0 // pred_fallthru
    _
  // Predicated region
  $region30: #{_lambda_.4} parent=0 // pred_check
    _
  $region31: #{_lambda_.4} parent=0 // pred_check_branch
    %37 = sbr.rel (0) target = $region33
  $region32: #{_lambda_.4} parent=0 // pred_region
    _
  $region33: #{_lambda_.4} parent=0 // pred_fallthru
    _
  // Predicated region
  $region34: #{_lambda_.4} parent=0 // pred_check
    _
  $region35: #{_lambda_.4} parent=0 // pred_check_branch
    %39 = sbr.rel (0) target = $region37
  $region36: #{_lambda_.4} parent=0 // pred_region
    _
  $region37: #{_lambda_.4} parent=0 // pred_fallthru
    _
  // Predicated region
  $region38: #{_lambda_.4} parent=0 // pred_check
    _
  $region39: #{_lambda_.4} parent=0 // pred_check_branch
    %41 = sbr.rel (0) target = $region41
  $region40: #{_lambda_.4} parent=0 // pred_region
    _
  $region41: #{_lambda_.4} parent=0 // pred_fallthru
    _
  // Predicated region
  $region42: #{_lambda_.4} parent=0 // pred_check
    _
  $region43: #{_lambda_.4} parent=0 // pred_check_branch
    %43 = sbr.rel (0) target = $region45
  $region44: #{_lambda_.4} parent=0 // pred_region
    _
  $region45: #{_lambda_.4} parent=0 // pred_fallthru
    _
  // Predicated region
  $region46: #{_lambda_.4} parent=0 // pred_check
    _
  $region47: #{_lambda_.4} parent=0 // pred_check_branch
    %45 = sbr.rel (0) target = $region49
  $region48: #{_lambda_.4} parent=0 // pred_region
    _
  $region49: #{_lambda_.4} parent=0 // pred_fallthru
    _
  // Predicated region
  $region50: #{_lambda_.4} parent=0 // pred_check
    _
  $region51: #{_lambda_.4} parent=0 // pred_check_branch
    %47 = sbr.rel (0) target = $region53
  $region52: #{_lambda_.4} parent=0 // pred_region
    _
  $region53: #{_lambda_.4} parent=0 // pred_fallthru
    _
  // Predicated region
  $region54: #{_lambda_.4} parent=0 // pred_check
    _
  $region55: #{_lambda_.4} parent=0 // pred_check_branch
    %49 = sbr.rel (0) target = $region57
  $region56: #{_lambda_.4} parent=0 // pred_region
    _
  $region57: #{_lambda_.4} parent=0 // pred_fallthru
    _
  // Predicated region
  $region58: #{_lambda_.4} parent=0 // pred_check
    _
  $region59: #{_lambda_.4} parent=0 // pred_check_branch
    %51 = sbr.rel (0) target = $region61
  $region60: #{_lambda_.4} parent=0 // pred_region
    _
  $region61: #{_lambda_.4} parent=0 // pred_fallthru
    _
  // Predicated region
  $region62: #{_lambda_.4} parent=0 // pred_check
    _
  $region63: #{_lambda_.4} parent=0 // pred_check_branch
    %53 = sbr.rel (0) target = $region65
  $region64: #{_lambda_.4} parent=0 // pred_region
    _
  $region65: #{_lambda_.4} parent=0 // pred_fallthru
    _
  // Predicated region
  $region66: #{_lambda_.4} parent=0 // pred_check
    _
  $region67: #{_lambda_.4} parent=0 // pred_check_branch
    %55 = sbr.rel (0) target = $region69
  $region68: #{_lambda_.4} parent=0 // pred_region
    _
  $region69: #{_lambda_.4} parent=0 // pred_fallthru
    _
  %v56 = vld [vmem:[%s0] sm:$0xff]
  %v57 = vld [vmem:[%s0 + $0x8] sm:$0x3]
  %v58 = vld [vmem:[%s1] sm:$0x1]
  %v59 = vld [vmem:[%s2] sm:$0x1]
  %v60 = vld [vmem:[%s3] sm:$0xff]
  %v61 = vld [vmem:[%s3 + $0x8] sm:$0xff]
  %v62 = vld [vmem:[%s3 + $0x10] sm:$0xff]
  %v63 = vld [vmem:[%s3 + $0x18] sm:$0xff]
  %v64 = vld [vmem:[%s4] sm:$0x1]
  %v65 = vld [vmem:[%s5] sm:$0xff]
  %v66 = vld [vmem:[%s5 + $0x8] sm:$0xff]
  %v67 = vld [vmem:[%s5 + $0x10] sm:$0xff]
  %v68 = vld [vmem:[%s5 + $0x18] sm:$0xff]
  %v69 = vld [vmem:[%s6] sm:$0x1]
  %v70 = vld [vmem:[%s7] sm:$0x1]
  %v71 = vld [vmem:[%s8] sm:$0x1]
  %v72 = vld [vmem:[%s9] sm:$0xff]
  %v73 = vld [vmem:[%s9 + $0x8] sm:$0xff]
  %v74 = vld [vmem:[%s9 + $0x10] sm:$0xff]
  %v75 = vld [vmem:[%s9 + $0x18] sm:$0xff]
  %v76 = vld [vmem:[%s10] sm:$0x1]
  %v77 = vld [vmem:[%s11] sm:$0xff]
  %v78 = vld [vmem:[%s11 + $0x8] sm:$0xff]
  %v79 = vld [vmem:[%s11 + $0x10] sm:$0xff]
  %v80 = vld [vmem:[%s11 + $0x18] sm:$0xff]
  %v81 = vld [vmem:[%s11 + $0x20] sm:$0xff]
  %v82 = vld [vmem:[%s11 + $0x28] sm:$0xff]
  %v83 = vld [vmem:[%s11 + $0x30] sm:$0xff]
  %v84 = vld [vmem:[%s11 + $0x38] sm:$0xff]
  %v85 = vld [vmem:[%s11 + $0x40] sm:$0xff]
  %v86 = vld [vmem:[%s11 + $0x48] sm:$0xff]
  %v87 = vld [vmem:[%s11 + $0x50] sm:$0xff]
  %v88 = vld [vmem:[%s11 + $0x58] sm:$0xff]
  %v89 = vld [vmem:[%s11 + $0x60] sm:$0xff]
  %v90 = vld [vmem:[%s11 + $0x68] sm:$0xff]
  %v91 = vld [vmem:[%s11 + $0x70] sm:$0xff]
  %v92 = vld [vmem:[%s11 + $0x78] sm:$0xff]
  %v93 = vld [vmem:[%s12] sm:$0x1]
  %vm94 = vcmask 261120
  %v95 = vsel %vm94, %v56, 0.0
  %96 = vadd.xlane.f32.xlu0 %v95
  %v97 = vpop.xlane.xlu0 %96
  %vm98 = vcmask 254976
  %v99 = vsel %vm98, %v57, 0.0
  %100 = vadd.xlane.f32.xlu0 %v99
  %v101 = vpop.xlane.xlu0 %100
  %v102 = vrcp.pop 32.0
  %v103 = vmul.f32 32.0, %v102
  %v104 = vsub.f32 1.0, %v103
  %v105 = vmul.f32 %v102, %v104
  %v106 = vadd.f32 %v102, %v105
  %vm107 = vweird.f32 %v102
  %v108 = vsel %vm107, %v102, %v106
  %v109 = vmul.f32 %v97, %v108
  %v110 = vmul.f32 %v101, %v108
  %v111 = vsub.f32 %v56, %v109
  %v112 = vsub.f32 %v57, %v110
  %v113 = vmul.f32 %v111, %v111
  %v114 = vmul.f32 %v112, %v112
  %v115 = vsel %vm94, %v113, 0.0
  %116 = vadd.xlane.f32.xlu0 %v115
  %v117 = vpop.xlane.xlu0 %116
  %v118 = vsel %vm98, %v114, 0.0
  %119 = vadd.xlane.f32.xlu0 %v118
  %v120 = vpop.xlane.xlu0 %119
  %v121 = vmul.f32 %v117, %v108
  %v122 = vmul.f32 %v120, %v108
  %v123 = vadd.f32 %v121, 1e-05
  %v124 = vadd.f32 %v122, 1e-05
  %v125 = vrsqrt.pop %v123
  %v126 = vmul.f32 %v125, %v123
  %v127 = vmul.f32 %v126, %v125
  %v128 = vmul.f32 0.5, %v127
  %v129 = vsub.f32 1.5, %v128
  %v130 = vmul.f32 %v125, %v129
  %vm131 = vweird.f32 %v123
  %vm132 = vweird.f32 %v125
  %vm133 = vmor %vm131, %vm132
  %v134 = vsel %vm133, %v125, %v130
  %v135 = vrsqrt.pop %v124
  %v136 = vmul.f32 %v135, %v124
  %v137 = vmul.f32 %v136, %v135
  %v138 = vmul.f32 0.5, %v137
  %v139 = vsub.f32 1.5, %v138
  %v140 = vmul.f32 %v135, %v139
  %vm141 = vweird.f32 %v124
  %vm142 = vweird.f32 %v135
  %vm143 = vmor %vm141, %vm142
  %v144 = vsel %vm143, %v135, %v140
  %v145 = vmul.f32 %v111, %v134
  %v146 = vmul.f32 %v112, %v144
  %v148 = vperm.slane %v58, 0
  %v150 = vmul.f32 %v145, %v148
  %v151 = vmul.f32 %v146, %v148
  %v153 = vperm.slane %v59, 0
  %v155 = vadd.f32 %v150, %v153
  %v156 = vadd.f32 %v151, %v153
  %v158 = vperm.slane %v64, 0
  %v161 = vsel %vm94, %v155, 0
  %v164 = vsel %vm94, %v156, 0
  %166 = vmatpush.msra.mxu0 0.0
  %167 = vmatpush.msra.mxu0 0.0
  %168 = vmatpush.msra.mxu0 0.0
  %169 = vmatpush.msra.mxu0 0.0
  %170 = vmatpush.msra.mxu0 0.0
  %171 = vmatpush.msra.mxu0 0.0
  %172 = vmatpush.msra.mxu0 0.0
  %173 = vmatpush.msra.mxu0 0.0
  %174 = vmatpush.msra.mxu0 0.0
  %175 = vmatpush.msra.mxu0 0.0
  %176 = vmatpush.msra.mxu0 0.0
  %177 = vmatpush.msra.mxu0 0.0
  %178 = vmatpush.msra.mxu0 %v63
  %179 = vmatpush.msra.mxu0 %v62
  %180 = vmatpush.msra.mxu0 %v61
  %181 = vmatpush.msra.mxu0 %v60
  %182 = vmatmul.f32.gmra.mxu0 %v161
  %v183 = vpop.f32.mrf.mxu0
  %v184 = vadd.f32 %v158, %v183
  %185 = vmatmul.f32.gmra.mxu0 %v164
  %v186 = vpop.f32.mrf.mxu0
  %v187 = vadd.f32 %v158, %v186
  %188 = vdwg.mxu0
  %190 = vrot.lane.b32.xlu0 %v184, 96
  %v191 = vpop.permute.xlu0 %190
  %vm192 = vcmask 64512
  %v193 = vsel %vm192, %v184, 0
  %v195 = vsel %vm192, %v191, 0
  %197 = vmatpush.xpose.msra.mxu0 0.0
  %198 = vmatpush.xpose.msra.mxu0 0.0
  %199 = vmatpush.xpose.msra.mxu0 0.0
  %200 = vmatpush.xpose.msra.mxu0 0.0
  %201 = vmatpush.xpose.msra.mxu0 0.0
  %202 = vmatpush.xpose.msra.mxu0 0.0
  %203 = vmatpush.xpose.msra.mxu0 0.0
  %204 = vmatpush.xpose.msra.mxu0 0.0
  %205 = vmatpush.xpose.msra.mxu0 0.0
  %206 = vmatpush.xpose.msra.mxu0 0.0
  %207 = vmatpush.xpose.msra.mxu0 0.0
  %208 = vmatpush.xpose.msra.mxu0 0.0
  %209 = vmatpush.xpose.msra.mxu0 0.0
  %210 = vmatpush.xpose.msra.mxu0 0.0
  %211 = vmatpush.xpose.msra.mxu0 0.0
  %212 = vmatpush.xpose.msra.mxu0 %v195
  %213 = vmatmul.f32.gmra.mxu0 %v193
  %v214 = vpop.f32.mrf.mxu0
  %v215 = vadd.f32 0.0, %v214
  %216 = vdwg.mxu0
  %v217 = vmul.f32 %v215, 0.35355338
  %vm218 = vcmask 36864
  %v219 = vsel %vm218, %v217, -inf
  %220 = vmax.xlane.f32.xlu0 %v219
  %v221 = vpop.xlane.xlu0 %220
  %v222 = vsub.f32 %v217, %v221
  %v223 = vmul.f32 %v222, 1.442695
  %v224 = vpow.pop %v223
  %v225 = vsel %vm218, %v224, 0.0
  %226 = vadd.xlane.f32.xlu0 %v225
  %v227 = vpop.xlane.xlu0 %226
  %v228 = vrcp.pop %v227
  %v229 = vmul.f32 %v227, %v228
  %v230 = vsub.f32 1.0, %v229
  %v231 = vmul.f32 %v228, %v230
  %v232 = vadd.f32 %v228, %v231
  %vm233 = vweird.f32 %v227
  %vm234 = vweird.f32 %v228
  %vm235 = vmor %vm233, %vm234
  %v236 = vsel %vm235, %v228, %v232
  %v237 = vand.u32 2147483647, %v227
  %vm238 = vcmp.eq.f32.partialorder %v237, 8.507059e+37
  %v239 = vand.u32 %v227, 2147483648
  %v240 = vor.u32 1.1754944e-38, %v239
  %v241 = vsel %vm238, %v240, %v236
  %v242 = vmul.f32 %v224, %v241
  %243 = vrot.lane.b32.xlu0 %v184, 64
  %v244 = vpop.permute.xlu0 %243
  %vm245 = vcmask 39936
  %v247 = vsel %vm245, %v242, 0
  %vm249 = vcmask 1044480
  %v250 = vsel %vm249, %v244, 0
  %252 = vmatpush.msra.mxu0 0.0
  %253 = vmatpush.msra.mxu0 0.0
  %254 = vmatpush.msra.mxu0 0.0
  %255 = vmatpush.msra.mxu0 0.0
  %256 = vmatpush.msra.mxu0 0.0
  %257 = vmatpush.msra.mxu0 0.0
  %258 = vmatpush.msra.mxu0 0.0
  %259 = vmatpush.msra.mxu0 0.0
  %260 = vmatpush.msra.mxu0 0.0
  %261 = vmatpush.msra.mxu0 0.0
  %262 = vmatpush.msra.mxu0 0.0
  %263 = vmatpush.msra.mxu0 0.0
  %264 = vmatpush.msra.mxu0 0.0
  %265 = vmatpush.msra.mxu0 0.0
  %266 = vmatpush.msra.mxu0 0.0
  %267 = vmatpush.msra.mxu0 %v250
  %268 = vmatmul.f32.gmra.mxu0 %v247
  %v269 = vpop.f32.mrf.mxu0
  %v270 = vadd.f32 0.0, %v269
  %271 = vdwg.mxu0
  %272 = vrot.lane.b32.xlu0 %v184, 120
  %v273 = vpop.permute.xlu0 %272
  %274 = vrot.lane.b32.xlu0 %v184, 88
  %v275 = vpop.permute.xlu0 %274
  %v276 = vsel %vm192, %v273, 0
  %v278 = vsel %vm192, %v275, 0
  %280 = vmatpush.xpose.msra.mxu0 0.0
  %281 = vmatpush.xpose.msra.mxu0 0.0
  %282 = vmatpush.xpose.msra.mxu0 0.0
  %283 = vmatpush.xpose.msra.mxu0 0.0
  %284 = vmatpush.xpose.msra.mxu0 0.0
  %285 = vmatpush.xpose.msra.mxu0 0.0
  %286 = vmatpush.xpose.msra.mxu0 0.0
  %287 = vmatpush.xpose.msra.mxu0 0.0
  %288 = vmatpush.xpose.msra.mxu0 0.0
  %289 = vmatpush.xpose.msra.mxu0 0.0
  %290 = vmatpush.xpose.msra.mxu0 0.0
  %291 = vmatpush.xpose.msra.mxu0 0.0
  %292 = vmatpush.xpose.msra.mxu0 0.0
  %293 = vmatpush.xpose.msra.mxu0 0.0
  %294 = vmatpush.xpose.msra.mxu0 0.0
  %295 = vmatpush.xpose.msra.mxu0 %v278
  %296 = vmatmul.f32.gmra.mxu0 %v276
  %v297 = vpop.f32.mrf.mxu0
  %v298 = vadd.f32 0.0, %v297
  %299 = vdwg.mxu0
  %v300 = vmul.f32 %v298, 0.35355338
  %v301 = vsel %vm218, %v300, -inf
  %302 = vmax.xlane.f32.xlu0 %v301
  %v303 = vpop.xlane.xlu0 %302
  %v304 = vsub.f32 %v300, %v303
  %v305 = vmul.f32 %v304, 1.442695
  %v306 = vpow.pop %v305
  %v307 = vsel %vm218, %v306, 0.0
  %308 = vadd.xlane.f32.xlu0 %v307
  %v309 = vpop.xlane.xlu0 %308
  %v310 = vrcp.pop %v309
  %v311 = vmul.f32 %v309, %v310
  %v312 = vsub.f32 1.0, %v311
  %v313 = vmul.f32 %v310, %v312
  %v314 = vadd.f32 %v310, %v313
  %vm315 = vweird.f32 %v309
  %vm316 = vweird.f32 %v310
  %vm317 = vmor %vm315, %vm316
  %v318 = vsel %vm317, %v310, %v314
  %v319 = vand.u32 2147483647, %v309
  %vm320 = vcmp.eq.f32.partialorder %v319, 8.507059e+37
  %v321 = vand.u32 %v309, 2147483648
  %v322 = vor.u32 1.1754944e-38, %v321
  %v323 = vsel %vm320, %v322, %v318
  %v324 = vmul.f32 %v306, %v323
  %325 = vrot.lane.b32.xlu0 %v184, 56
  %v326 = vpop.permute.xlu0 %325
  %v328 = vsel %vm245, %v324, 0
  %v330 = vsel %vm249, %v326, 0
  %332 = vmatpush.msra.mxu0 0.0
  %333 = vmatpush.msra.mxu0 0.0
  %334 = vmatpush.msra.mxu0 0.0
  %335 = vmatpush.msra.mxu0 0.0
  %336 = vmatpush.msra.mxu0 0.0
  %337 = vmatpush.msra.mxu0 0.0
  %338 = vmatpush.msra.mxu0 0.0
  %339 = vmatpush.msra.mxu0 0.0
  %340 = vmatpush.msra.mxu0 0.0
  %341 = vmatpush.msra.mxu0 0.0
  %342 = vmatpush.msra.mxu0 0.0
  %343 = vmatpush.msra.mxu0 0.0
  %344 = vmatpush.msra.mxu0 0.0
  %345 = vmatpush.msra.mxu0 0.0
  %346 = vmatpush.msra.mxu0 0.0
  %347 = vmatpush.msra.mxu0 %v330
  %348 = vmatmul.f32.gmra.mxu0 %v328
  %v349 = vpop.f32.mrf.mxu0
  %v350 = vadd.f32 0.0, %v349
  %351 = vdwg.mxu0
  %352 = vrot.lane.b32.xlu0 %v184, 112
  %v353 = vpop.permute.xlu0 %352
  %354 = vrot.lane.b32.xlu0 %v184, 80
  %v355 = vpop.permute.xlu0 %354
  %v356 = vsel %vm192, %v353, 0
  %v358 = vsel %vm192, %v355, 0
  %360 = vmatpush.xpose.msra.mxu0 0.0
  %361 = vmatpush.xpose.msra.mxu0 0.0
  %362 = vmatpush.xpose.msra.mxu0 0.0
  %363 = vmatpush.xpose.msra.mxu0 0.0
  %364 = vmatpush.xpose.msra.mxu0 0.0
  %365 = vmatpush.xpose.msra.mxu0 0.0
  %366 = vmatpush.xpose.msra.mxu0 0.0
  %367 = vmatpush.xpose.msra.mxu0 0.0
  %368 = vmatpush.xpose.msra.mxu0 0.0
  %369 = vmatpush.xpose.msra.mxu0 0.0
  %370 = vmatpush.xpose.msra.mxu0 0.0
  %371 = vmatpush.xpose.msra.mxu0 0.0
  %372 = vmatpush.xpose.msra.mxu0 0.0
  %373 = vmatpush.xpose.msra.mxu0 0.0
  %374 = vmatpush.xpose.msra.mxu0 0.0
  %375 = vmatpush.xpose.msra.mxu0 %v358
  %376 = vmatmul.f32.gmra.mxu0 %v356
  %v377 = vpop.f32.mrf.mxu0
  %v378 = vadd.f32 0.0, %v377
  %379 = vdwg.mxu0
  %v380 = vmul.f32 %v378, 0.35355338
  %v381 = vsel %vm218, %v380, -inf
  %382 = vmax.xlane.f32.xlu0 %v381
  %v383 = vpop.xlane.xlu0 %382
  %v384 = vsub.f32 %v380, %v383
  %v385 = vmul.f32 %v384, 1.442695
  %v386 = vpow.pop %v385
  %v387 = vsel %vm218, %v386, 0.0
  %388 = vadd.xlane.f32.xlu0 %v387
  %v389 = vpop.xlane.xlu0 %388
  %v390 = vrcp.pop %v389
  %v391 = vmul.f32 %v389, %v390
  %v392 = vsub.f32 1.0, %v391
  %v393 = vmul.f32 %v390, %v392
  %v394 = vadd.f32 %v390, %v393
  %vm395 = vweird.f32 %v389
  %vm396 = vweird.f32 %v390
  %vm397 = vmor %vm395, %vm396
  %v398 = vsel %vm397, %v390, %v394
  %v399 = vand.u32 2147483647, %v389
  %vm400 = vcmp.eq.f32.partialorder %v399, 8.507059e+37
  %v401 = vand.u32 %v389, 2147483648
  %v402 = vor.u32 1.1754944e-38, %v401
  %v403 = vsel %vm400, %v402, %v398
  %v404 = vmul.f32 %v386, %v403
  %405 = vrot.lane.b32.xlu0 %v184, 48
  %v406 = vpop.permute.xlu0 %405
  %v408 = vsel %vm245, %v404, 0
  %v410 = vsel %vm249, %v406, 0
  %412 = vmatpush.msra.mxu0 0.0
  %413 = vmatpush.msra.mxu0 0.0
  %414 = vmatpush.msra.mxu0 0.0
  %415 = vmatpush.msra.mxu0 0.0
  %416 = vmatpush.msra.mxu0 0.0
  %417 = vmatpush.msra.mxu0 0.0
  %418 = vmatpush.msra.mxu0 0.0
  %419 = vmatpush.msra.mxu0 0.0
  %420 = vmatpush.msra.mxu0 0.0
  %421 = vmatpush.msra.mxu0 0.0
  %422 = vmatpush.msra.mxu0 0.0
  %423 = vmatpush.msra.mxu0 0.0
  %424 = vmatpush.msra.mxu0 0.0
  %425 = vmatpush.msra.mxu0 0.0
  %426 = vmatpush.msra.mxu0 0.0
  %427 = vmatpush.msra.mxu0 %v410
  %428 = vmatmul.f32.gmra.mxu0 %v408
  %v429 = vpop.f32.mrf.mxu0
  %v430 = vadd.f32 0.0, %v429
  %431 = vdwg.mxu0
  %432 = vrot.lane.b32.xlu0 %v184, 104
  %v433 = vpop.permute.xlu0 %432
  %434 = vrot.lane.b32.xlu0 %v184, 72
  %v435 = vpop.permute.xlu0 %434
  %v436 = vsel %vm192, %v433, 0
  %v438 = vsel %vm192, %v435, 0
  %440 = vmatpush.xpose.msra.mxu0 0.0
  %441 = vmatpush.xpose.msra.mxu0 0.0
  %442 = vmatpush.xpose.msra.mxu0 0.0
  %443 = vmatpush.xpose.msra.mxu0 0.0
  %444 = vmatpush.xpose.msra.mxu0 0.0
  %445 = vmatpush.xpose.msra.mxu0 0.0
  %446 = vmatpush.xpose.msra.mxu0 0.0
  %447 = vmatpush.xpose.msra.mxu0 0.0
  %448 = vmatpush.xpose.msra.mxu0 0.0
  %449 = vmatpush.xpose.msra.mxu0 0.0
  %450 = vmatpush.xpose.msra.mxu0 0.0
  %451 = vmatpush.xpose.msra.mxu0 0.0
  %452 = vmatpush.xpose.msra.mxu0 0.0
  %453 = vmatpush.xpose.msra.mxu0 0.0
  %454 = vmatpush.xpose.msra.mxu0 0.0
  %455 = vmatpush.xpose.msra.mxu0 %v438
  %456 = vmatmul.f32.gmra.mxu0 %v436
  %v457 = vpop.f32.mrf.mxu0
  %v458 = vadd.f32 0.0, %v457
  %459 = vdwg.mxu0
  %v460 = vmul.f32 %v458, 0.35355338
  %v461 = vsel %vm218, %v460, -inf
  %462 = vmax.xlane.f32.xlu0 %v461
  %v463 = vpop.xlane.xlu0 %462
  %v464 = vsub.f32 %v460, %v463
  %v465 = vmul.f32 %v464, 1.442695
  %v466 = vpow.pop %v465
  %v467 = vsel %vm218, %v466, 0.0
  %468 = vadd.xlane.f32.xlu0 %v467
  %v469 = vpop.xlane.xlu0 %468
  %v470 = vrcp.pop %v469
  %v471 = vmul.f32 %v469, %v470
  %v472 = vsub.f32 1.0, %v471
  %v473 = vmul.f32 %v470, %v472
  %v474 = vadd.f32 %v470, %v473
  %vm475 = vweird.f32 %v469
  %vm476 = vweird.f32 %v470
  %vm477 = vmor %vm475, %vm476
  %v478 = vsel %vm477, %v470, %v474
  %v479 = vand.u32 2147483647, %v469
  %vm480 = vcmp.eq.f32.partialorder %v479, 8.507059e+37
  %v481 = vand.u32 %v469, 2147483648
  %v482 = vor.u32 1.1754944e-38, %v481
  %v483 = vsel %vm480, %v482, %v478
  %v484 = vmul.f32 %v466, %v483
  %485 = vrot.lane.b32.xlu0 %v184, 40
  %v486 = vpop.permute.xlu0 %485
  %v488 = vsel %vm245, %v484, 0
  %v490 = vsel %vm249, %v486, 0
  %492 = vmatpush.msra.mxu0 0.0
  %493 = vmatpush.msra.mxu0 0.0
  %494 = vmatpush.msra.mxu0 0.0
  %495 = vmatpush.msra.mxu0 0.0
  %496 = vmatpush.msra.mxu0 0.0
  %497 = vmatpush.msra.mxu0 0.0
  %498 = vmatpush.msra.mxu0 0.0
  %499 = vmatpush.msra.mxu0 0.0
  %500 = vmatpush.msra.mxu0 0.0
  %501 = vmatpush.msra.mxu0 0.0
  %502 = vmatpush.msra.mxu0 0.0
  %503 = vmatpush.msra.mxu0 0.0
  %504 = vmatpush.msra.mxu0 0.0
  %505 = vmatpush.msra.mxu0 0.0
  %506 = vmatpush.msra.mxu0 0.0
  %507 = vmatpush.msra.mxu0 %v490
  %508 = vmatmul.f32.gmra.mxu0 %v488
  %v509 = vpop.f32.mrf.mxu0
  %v510 = vadd.f32 0.0, %v509
  %511 = vdwg.mxu0
  %513 = vrot.lane.b32.xlu0 %v350, 8
  %v514 = vpop.permute.xlu0 %513
  %517 = vrot.lane.b32.xlu0 %v430, 16
  %v518 = vpop.permute.xlu0 %517
  %521 = vrot.lane.b32.xlu0 %v510, 24
  %v522 = vpop.permute.xlu0 %521
  %v524 = vsel %vm192, %v270, %v514
  %vm525 = vcmask 130048
  %v526 = vsel %vm525, %v524, %v518
  %vm527 = vcmask 195584
  %v528 = vsel %vm527, %v526, %v522
  %vm530 = vcmask 1042432
  %v531 = vrot.slane %v184, 5
  %v532 = vrot.slane %v187, 5
  %v533 = vsel %vm530, %v531, %v532
  %534 = vrot.lane.b32.xlu0 %v533, 96
  %v535 = vpop.permute.xlu0 %534
  %v536 = vsel %vm192, %v533, 0
  %v538 = vsel %vm192, %v535, 0
  %540 = vmatpush.xpose.msra.mxu0 0.0
  %541 = vmatpush.xpose.msra.mxu0 0.0
  %542 = vmatpush.xpose.msra.mxu0 0.0
  %543 = vmatpush.xpose.msra.mxu0 0.0
  %544 = vmatpush.xpose.msra.mxu0 0.0
  %545 = vmatpush.xpose.msra.mxu0 0.0
  %546 = vmatpush.xpose.msra.mxu0 0.0
  %547 = vmatpush.xpose.msra.mxu0 0.0
  %548 = vmatpush.xpose.msra.mxu0 0.0
  %549 = vmatpush.xpose.msra.mxu0 0.0
  %550 = vmatpush.xpose.msra.mxu0 0.0
  %551 = vmatpush.xpose.msra.mxu0 0.0
  %552 = vmatpush.xpose.msra.mxu0 0.0
  %553 = vmatpush.xpose.msra.mxu0 0.0
  %554 = vmatpush.xpose.msra.mxu0 0.0
  %555 = vmatpush.xpose.msra.mxu0 %v538
  %556 = vmatmul.f32.gmra.mxu0 %v536
  %v557 = vpop.f32.mrf.mxu0
  %v558 = vadd.f32 0.0, %v557
  %559 = vdwg.mxu0
  %v560 = vmul.f32 %v558, 0.35355338
  %v561 = vsel %vm218, %v560, -inf
  %562 = vmax.xlane.f32.xlu0 %v561
  %v563 = vpop.xlane.xlu0 %562
  %v564 = vsub.f32 %v560, %v563
  %v565 = vmul.f32 %v564, 1.442695
  %v566 = vpow.pop %v565
  %v567 = vsel %vm218, %v566, 0.0
  %568 = vadd.xlane.f32.xlu0 %v567
  %v569 = vpop.xlane.xlu0 %568
  %v570 = vrcp.pop %v569
  %v571 = vmul.f32 %v569, %v570
  %v572 = vsub.f32 1.0, %v571
  %v573 = vmul.f32 %v570, %v572
  %v574 = vadd.f32 %v570, %v573
  %vm575 = vweird.f32 %v569
  %vm576 = vweird.f32 %v570
  %vm577 = vmor %vm575, %vm576
  %v578 = vsel %vm577, %v570, %v574
  %v579 = vand.u32 2147483647, %v569
  %vm580 = vcmp.eq.f32.partialorder %v579, 8.507059e+37
  %v581 = vand.u32 %v569, 2147483648
  %v582 = vor.u32 1.1754944e-38, %v581
  %v583 = vsel %vm580, %v582, %v578
  %v584 = vmul.f32 %v566, %v583
  %585 = vrot.lane.b32.xlu0 %v533, 64
  %v586 = vpop.permute.xlu0 %585
  %v588 = vsel %vm245, %v584, 0
  %v590 = vsel %vm249, %v586, 0
  %592 = vmatpush.msra.mxu0 0.0
  %593 = vmatpush.msra.mxu0 0.0
  %594 = vmatpush.msra.mxu0 0.0
  %595 = vmatpush.msra.mxu0 0.0
  %596 = vmatpush.msra.mxu0 0.0
  %597 = vmatpush.msra.mxu0 0.0
  %598 = vmatpush.msra.mxu0 0.0
  %599 = vmatpush.msra.mxu0 0.0
  %600 = vmatpush.msra.mxu0 0.0
  %601 = vmatpush.msra.mxu0 0.0
  %602 = vmatpush.msra.mxu0 0.0
  %603 = vmatpush.msra.mxu0 0.0
  %604 = vmatpush.msra.mxu0 0.0
  %605 = vmatpush.msra.mxu0 0.0
  %606 = vmatpush.msra.mxu0 0.0
  %607 = vmatpush.msra.mxu0 %v590
  %608 = vmatmul.f32.gmra.mxu0 %v588
  %v609 = vpop.f32.mrf.mxu0
  %v610 = vadd.f32 0.0, %v609
  %611 = vdwg.mxu0
  %612 = vrot.lane.b32.xlu0 %v533, 120
  %v613 = vpop.permute.xlu0 %612
  %614 = vrot.lane.b32.xlu0 %v533, 88
  %v615 = vpop.permute.xlu0 %614
  %v616 = vsel %vm192, %v613, 0
  %v618 = vsel %vm192, %v615, 0
  %620 = vmatpush.xpose.msra.mxu0 0.0
  %621 = vmatpush.xpose.msra.mxu0 0.0
  %622 = vmatpush.xpose.msra.mxu0 0.0
  %623 = vmatpush.xpose.msra.mxu0 0.0
  %624 = vmatpush.xpose.msra.mxu0 0.0
  %625 = vmatpush.xpose.msra.mxu0 0.0
  %626 = vmatpush.xpose.msra.mxu0 0.0
  %627 = vmatpush.xpose.msra.mxu0 0.0
  %628 = vmatpush.xpose.msra.mxu0 0.0
  %629 = vmatpush.xpose.msra.mxu0 0.0
  %630 = vmatpush.xpose.msra.mxu0 0.0
  %631 = vmatpush.xpose.msra.mxu0 0.0
  %632 = vmatpush.xpose.msra.mxu0 0.0
  %633 = vmatpush.xpose.msra.mxu0 0.0
  %634 = vmatpush.xpose.msra.mxu0 0.0
  %635 = vmatpush.xpose.msra.mxu0 %v618
  %636 = vmatmul.f32.gmra.mxu0 %v616
  %v637 = vpop.f32.mrf.mxu0
  %v638 = vadd.f32 0.0, %v637
  %639 = vdwg.mxu0
  %v640 = vmul.f32 %v638, 0.35355338
  %v641 = vsel %vm218, %v640, -inf
  %642 = vmax.xlane.f32.xlu0 %v641
  %v643 = vpop.xlane.xlu0 %642
  %v644 = vsub.f32 %v640, %v643
  %v645 = vmul.f32 %v644, 1.442695
  %v646 = vpow.pop %v645
  %v647 = vsel %vm218, %v646, 0.0
  %648 = vadd.xlane.f32.xlu0 %v647
  %v649 = vpop.xlane.xlu0 %648
  %v650 = vrcp.pop %v649
  %v651 = vmul.f32 %v649, %v650
  %v652 = vsub.f32 1.0, %v651
  %v653 = vmul.f32 %v650, %v652
  %v654 = vadd.f32 %v650, %v653
  %vm655 = vweird.f32 %v649
  %vm656 = vweird.f32 %v650
  %vm657 = vmor %vm655, %vm656
  %v658 = vsel %vm657, %v650, %v654
  %v659 = vand.u32 2147483647, %v649
  %vm660 = vcmp.eq.f32.partialorder %v659, 8.507059e+37
  %v661 = vand.u32 %v649, 2147483648
  %v662 = vor.u32 1.1754944e-38, %v661
  %v663 = vsel %vm660, %v662, %v658
  %v664 = vmul.f32 %v646, %v663
  %665 = vrot.lane.b32.xlu0 %v533, 56
  %v666 = vpop.permute.xlu0 %665
  %v668 = vsel %vm245, %v664, 0
  %v670 = vsel %vm249, %v666, 0
  %672 = vmatpush.msra.mxu0 0.0
  %673 = vmatpush.msra.mxu0 0.0
  %674 = vmatpush.msra.mxu0 0.0
  %675 = vmatpush.msra.mxu0 0.0
  %676 = vmatpush.msra.mxu0 0.0
  %677 = vmatpush.msra.mxu0 0.0
  %678 = vmatpush.msra.mxu0 0.0
  %679 = vmatpush.msra.mxu0 0.0
  %680 = vmatpush.msra.mxu0 0.0
  %681 = vmatpush.msra.mxu0 0.0
  %682 = vmatpush.msra.mxu0 0.0
  %683 = vmatpush.msra.mxu0 0.0
  %684 = vmatpush.msra.mxu0 0.0
  %685 = vmatpush.msra.mxu0 0.0
  %686 = vmatpush.msra.mxu0 0.0
  %687 = vmatpush.msra.mxu0 %v670
  %688 = vmatmul.f32.gmra.mxu0 %v668
  %v689 = vpop.f32.mrf.mxu0
  %v690 = vadd.f32 0.0, %v689
  %691 = vdwg.mxu0
  %692 = vrot.lane.b32.xlu0 %v533, 112
  %v693 = vpop.permute.xlu0 %692
  %694 = vrot.lane.b32.xlu0 %v533, 80
  %v695 = vpop.permute.xlu0 %694
  %v696 = vsel %vm192, %v693, 0
  %v698 = vsel %vm192, %v695, 0
  %700 = vmatpush.xpose.msra.mxu0 0.0
  %701 = vmatpush.xpose.msra.mxu0 0.0
  %702 = vmatpush.xpose.msra.mxu0 0.0
  %703 = vmatpush.xpose.msra.mxu0 0.0
  %704 = vmatpush.xpose.msra.mxu0 0.0
  %705 = vmatpush.xpose.msra.mxu0 0.0
  %706 = vmatpush.xpose.msra.mxu0 0.0
  %707 = vmatpush.xpose.msra.mxu0 0.0
  %708 = vmatpush.xpose.msra.mxu0 0.0
  %709 = vmatpush.xpose.msra.mxu0 0.0
  %710 = vmatpush.xpose.msra.mxu0 0.0
  %711 = vmatpush.xpose.msra.mxu0 0.0
  %712 = vmatpush.xpose.msra.mxu0 0.0
  %713 = vmatpush.xpose.msra.mxu0 0.0
  %714 = vmatpush.xpose.msra.mxu0 0.0
  %715 = vmatpush.xpose.msra.mxu0 %v698
  %716 = vmatmul.f32.gmra.mxu0 %v696
  %v717 = vpop.f32.mrf.mxu0
  %v718 = vadd.f32 0.0, %v717
  %719 = vdwg.mxu0
  %v720 = vmul.f32 %v718, 0.35355338
  %v721 = vsel %vm218, %v720, -inf
  %722 = vmax.xlane.f32.xlu0 %v721
  %v723 = vpop.xlane.xlu0 %722
  %v724 = vsub.f32 %v720, %v723
  %v725 = vmul.f32 %v724, 1.442695
  %v726 = vpow.pop %v725
  %v727 = vsel %vm218, %v726, 0.0
  %728 = vadd.xlane.f32.xlu0 %v727
  %v729 = vpop.xlane.xlu0 %728
  %v730 = vrcp.pop %v729
  %v731 = vmul.f32 %v729, %v730
  %v732 = vsub.f32 1.0, %v731
  %v733 = vmul.f32 %v730, %v732
  %v734 = vadd.f32 %v730, %v733
  %vm735 = vweird.f32 %v729
  %vm736 = vweird.f32 %v730
  %vm737 = vmor %vm735, %vm736
  %v738 = vsel %vm737, %v730, %v734
  %v739 = vand.u32 2147483647, %v729
  %vm740 = vcmp.eq.f32.partialorder %v739, 8.507059e+37
  %v741 = vand.u32 %v729, 2147483648
  %v742 = vor.u32 1.1754944e-38, %v741
  %v743 = vsel %vm740, %v742, %v738
  %v744 = vmul.f32 %v726, %v743
  %745 = vrot.lane.b32.xlu0 %v533, 48
  %v746 = vpop.permute.xlu0 %745
  %v748 = vsel %vm245, %v744, 0
  %v750 = vsel %vm249, %v746, 0
  %752 = vmatpush.msra.mxu0 0.0
  %753 = vmatpush.msra.mxu0 0.0
  %754 = vmatpush.msra.mxu0 0.0
  %755 = vmatpush.msra.mxu0 0.0
  %756 = vmatpush.msra.mxu0 0.0
  %757 = vmatpush.msra.mxu0 0.0
  %758 = vmatpush.msra.mxu0 0.0
  %759 = vmatpush.msra.mxu0 0.0
  %760 = vmatpush.msra.mxu0 0.0
  %761 = vmatpush.msra.mxu0 0.0
  %762 = vmatpush.msra.mxu0 0.0
  %763 = vmatpush.msra.mxu0 0.0
  %764 = vmatpush.msra.mxu0 0.0
  %765 = vmatpush.msra.mxu0 0.0
  %766 = vmatpush.msra.mxu0 0.0
  %767 = vmatpush.msra.mxu0 %v750
  %768 = vmatmul.f32.gmra.mxu0 %v748
  %v769 = vpop.f32.mrf.mxu0
  %v770 = vadd.f32 0.0, %v769
  %771 = vdwg.mxu0
  %772 = vrot.lane.b32.xlu0 %v533, 104
  %v773 = vpop.permute.xlu0 %772
  %774 = vrot.lane.b32.xlu0 %v533, 72
  %v775 = vpop.permute.xlu0 %774
  %v776 = vsel %vm192, %v773, 0
  %v778 = vsel %vm192, %v775, 0
  %780 = vmatpush.xpose.msra.mxu0 0.0
  %781 = vmatpush.xpose.msra.mxu0 0.0
  %782 = vmatpush.xpose.msra.mxu0 0.0
  %783 = vmatpush.xpose.msra.mxu0 0.0
  %784 = vmatpush.xpose.msra.mxu0 0.0
  %785 = vmatpush.xpose.msra.mxu0 0.0
  %786 = vmatpush.xpose.msra.mxu0 0.0
  %787 = vmatpush.xpose.msra.mxu0 0.0
  %788 = vmatpush.xpose.msra.mxu0 0.0
  %789 = vmatpush.xpose.msra.mxu0 0.0
  %790 = vmatpush.xpose.msra.mxu0 0.0
  %791 = vmatpush.xpose.msra.mxu0 0.0
  %792 = vmatpush.xpose.msra.mxu0 0.0
  %793 = vmatpush.xpose.msra.mxu0 0.0
  %794 = vmatpush.xpose.msra.mxu0 0.0
  %795 = vmatpush.xpose.msra.mxu0 %v778
  %796 = vmatmul.f32.gmra.mxu0 %v776
  %v797 = vpop.f32.mrf.mxu0
  %v798 = vadd.f32 0.0, %v797
  %799 = vdwg.mxu0
  %v800 = vmul.f32 %v798, 0.35355338
  %v801 = vsel %vm218, %v800, -inf
  %802 = vmax.xlane.f32.xlu0 %v801
  %v803 = vpop.xlane.xlu0 %802
  %v804 = vsub.f32 %v800, %v803
  %v805 = vmul.f32 %v804, 1.442695
  %v806 = vpow.pop %v805
  %v807 = vsel %vm218, %v806, 0.0
  %808 = vadd.xlane.f32.xlu0 %v807
  %v809 = vpop.xlane.xlu0 %808
  %v810 = vrcp.pop %v809
  %v811 = vmul.f32 %v809, %v810
  %v812 = vsub.f32 1.0, %v811
  %v813 = vmul.f32 %v810, %v812
  %v814 = vadd.f32 %v810, %v813
  %vm815 = vweird.f32 %v809
  %vm816 = vweird.f32 %v810
  %vm817 = vmor %vm815, %vm816
  %v818 = vsel %vm817, %v810, %v814
  %v819 = vand.u32 2147483647, %v809
  %vm820 = vcmp.eq.f32.partialorder %v819, 8.507059e+37
  %v821 = vand.u32 %v809, 2147483648
  %v822 = vor.u32 1.1754944e-38, %v821
  %v823 = vsel %vm820, %v822, %v818
  %v824 = vmul.f32 %v806, %v823
  %825 = vrot.lane.b32.xlu0 %v533, 40
  %v826 = vpop.permute.xlu0 %825
  %v828 = vsel %vm245, %v824, 0
  %v830 = vsel %vm249, %v826, 0
  %832 = vmatpush.msra.mxu0 0.0
  %833 = vmatpush.msra.mxu0 0.0
  %834 = vmatpush.msra.mxu0 0.0
  %835 = vmatpush.msra.mxu0 0.0
  %836 = vmatpush.msra.mxu0 0.0
  %837 = vmatpush.msra.mxu0 0.0
  %838 = vmatpush.msra.mxu0 0.0
  %839 = vmatpush.msra.mxu0 0.0
  %840 = vmatpush.msra.mxu0 0.0
  %841 = vmatpush.msra.mxu0 0.0
  %842 = vmatpush.msra.mxu0 0.0
  %843 = vmatpush.msra.mxu0 0.0
  %844 = vmatpush.msra.mxu0 0.0
  %845 = vmatpush.msra.mxu0 0.0
  %846 = vmatpush.msra.mxu0 0.0
  %847 = vmatpush.msra.mxu0 %v830
  %848 = vmatmul.f32.gmra.mxu0 %v828
  %v849 = vpop.f32.mrf.mxu0
  %v850 = vadd.f32 0.0, %v849
  %851 = vdwg.mxu0
  %853 = vrot.lane.b32.xlu0 %v690, 8
  %v854 = vpop.permute.xlu0 %853
  %857 = vrot.lane.b32.xlu0 %v770, 16
  %v858 = vpop.permute.xlu0 %857
  %861 = vrot.lane.b32.xlu0 %v850, 24
  %v862 = vpop.permute.xlu0 %861
  %v864 = vsel %vm192, %v610, %v854
  %v865 = vsel %vm525, %v864, %v858
  %v866 = vsel %vm527, %v865, %v862
  %v868 = vrot.slane %v866, 3
  %v870 = vsel %vm249, %v528, %v868
  %v872 = vsel %vm94, %v870, 0
  %v874 = vsel %vm94, %v868, 0
  %876 = vmatpush.msra.mxu0 0.0
  %877 = vmatpush.msra.mxu0 0.0
  %878 = vmatpush.msra.mxu0 0.0
  %879 = vmatpush.msra.mxu0 0.0
  %880 = vmatpush.msra.mxu0 0.0
  %881 = vmatpush.msra.mxu0 0.0
  %882 = vmatpush.msra.mxu0 0.0
  %883 = vmatpush.msra.mxu0 0.0
  %884 = vmatpush.msra.mxu0 0.0
  %885 = vmatpush.msra.mxu0 0.0
  %886 = vmatpush.msra.mxu0 0.0
  %887 = vmatpush.msra.mxu0 0.0
  %888 = vmatpush.msra.mxu0 %v68
  %889 = vmatpush.msra.mxu0 %v67
  %890 = vmatpush.msra.mxu0 %v66
  %891 = vmatpush.msra.mxu0 %v65
  %892 = vmatmul.f32.gmra.mxu0 %v872
  %v893 = vpop.f32.mrf.mxu0
  %v894 = vadd.f32 0.0, %v893
  %895 = vmatmul.f32.gmra.mxu0 %v874
  %v896 = vpop.f32.mrf.mxu0
  %v897 = vadd.f32 0.0, %v896
  %898 = vdwg.mxu0
  %v899 = vadd.f32 %v56, %v894
  %v900 = vadd.f32 %v57, %v897
  %v902 = vperm.slane %v69, 0
  %v904 = vadd.f32 %v899, %v902
  %v905 = vadd.f32 %v900, %v902
  %v906 = vsel %vm94, %v904, 0.0
  %907 = vadd.xlane.f32.xlu0 %v906
  %v908 = vpop.xlane.xlu0 %907
  %v909 = vsel %vm98, %v905, 0.0
  %910 = vadd.xlane.f32.xlu0 %v909
  %v911 = vpop.xlane.xlu0 %910
  %v912 = vmul.f32 %v908, %v108
  %v913 = vmul.f32 %v911, %v108
  %v914 = vsub.f32 %v904, %v912
  %v915 = vsub.f32 %v905, %v913
  %v916 = vmul.f32 %v914, %v914
  %v917 = vmul.f32 %v915, %v915
  %v918 = vsel %vm94, %v916, 0.0
  %919 = vadd.xlane.f32.xlu0 %v918
  %v920 = vpop.xlane.xlu0 %919
  %v921 = vsel %vm98, %v917, 0.0
  %922 = vadd.xlane.f32.xlu0 %v921
  %v923 = vpop.xlane.xlu0 %922
  %v924 = vmul.f32 %v920, %v108
  %v925 = vmul.f32 %v923, %v108
  %v926 = vadd.f32 %v924, 1e-05
  %v927 = vadd.f32 %v925, 1e-05
  %v928 = vrsqrt.pop %v926
  %v929 = vmul.f32 %v928, %v926
  %v930 = vmul.f32 %v929, %v928
  %v931 = vmul.f32 0.5, %v930
  %v932 = vsub.f32 1.5, %v931
  %v933 = vmul.f32 %v928, %v932
  %vm934 = vweird.f32 %v926
  %vm935 = vweird.f32 %v928
  %vm936 = vmor %vm934, %vm935
  %v937 = vsel %vm936, %v928, %v933
  %v938 = vrsqrt.pop %v927
  %v939 = vmul.f32 %v938, %v927
  %v940 = vmul.f32 %v939, %v938
  %v941 = vmul.f32 0.5, %v940
  %v942 = vsub.f32 1.5, %v941
  %v943 = vmul.f32 %v938, %v942
  %vm944 = vweird.f32 %v927
  %vm945 = vweird.f32 %v938
  %vm946 = vmor %vm944, %vm945
  %v947 = vsel %vm946, %v938, %v943
  %v948 = vmul.f32 %v914, %v937
  %v949 = vmul.f32 %v915, %v947
  %v951 = vperm.slane %v70, 0
  %v953 = vmul.f32 %v948, %v951
  %v954 = vmul.f32 %v949, %v951
  %v956 = vperm.slane %v71, 0
  %v958 = vadd.f32 %v953, %v956
  %v959 = vadd.f32 %v954, %v956
  %v961 = vperm.slane %v76, 0
  %v964 = vsel %vm94, %v958, 0
  %v967 = vsel %vm94, %v959, 0
  %969 = vmatpush.msra.mxu0 0.0
  %970 = vmatpush.msra.mxu0 0.0
  %971 = vmatpush.msra.mxu0 0.0
  %972 = vmatpush.msra.mxu0 0.0
  %973 = vmatpush.msra.mxu0 0.0
  %974 = vmatpush.msra.mxu0 0.0
  %975 = vmatpush.msra.mxu0 0.0
  %976 = vmatpush.msra.mxu0 0.0
  %977 = vmatpush.msra.mxu0 0.0
  %978 = vmatpush.msra.mxu0 0.0
  %979 = vmatpush.msra.mxu0 0.0
  %980 = vmatpush.msra.mxu0 0.0
  %981 = vmatpush.msra.mxu0 %v75
  %982 = vmatpush.msra.mxu0 %v74
  %983 = vmatpush.msra.mxu0 %v73
  %984 = vmatpush.msra.mxu0 %v72
  %985 = vmatmul.f32.gmra.mxu0 %v964
  %v986 = vpop.f32.mrf.mxu0
  %v987 = vadd.f32 %v961, %v986
  %988 = vmatmul.f32.gmra.mxu0 %v967
  %v989 = vpop.f32.mrf.mxu0
  %v990 = vadd.f32 %v961, %v989
  %991 = vdwg.mxu0
  %v992 = vmul.f32 %v987, %v987
  %v993 = vmul.f32 %v990, %v990
  %v994 = vmul.f32 %v987, %v992
  %v995 = vmul.f32 %v990, %v993
  %v996 = vmul.f32 %v994, 0.044715
  %v997 = vmul.f32 %v995, 0.044715
  %v998 = vadd.f32 %v987, %v996
  %v999 = vadd.f32 %v990, %v997
  %v1000 = vmul.f32 %v998, 0.7978846
  %v1001 = vmul.f32 %v999, 0.7978846
  %v1002 = vtanh.pop %v1000
  %v1003 = vtanh.pop %v1001
  %v1004 = vadd.f32 %v1002, 1.0
  %v1005 = vadd.f32 %v1003, 1.0
  %v1006 = vmul.f32 %v1004, 0.5
  %v1007 = vmul.f32 %v1005, 0.5
  %v1008 = vmul.f32 %v987, %v1006
  %v1009 = vmul.f32 %v990, %v1007
  %v1011 = vperm.slane %v93, 0
  %1013 = vmatpush.msra.mxu0 %v92
  %1014 = vmatpush.msra.mxu0 %v91
  %1015 = vmatpush.msra.mxu0 %v90
  %1016 = vmatpush.msra.mxu0 %v89
  %1017 = vmatpush.msra.mxu0 %v88
  %1018 = vmatpush.msra.mxu0 %v87
  %1019 = vmatpush.msra.mxu0 %v86
  %1020 = vmatpush.msra.mxu0 %v85
  %1021 = vmatpush.msra.mxu0 %v84
  %1022 = vmatpush.msra.mxu0 %v83
  %1023 = vmatpush.msra.mxu0 %v82
  %1024 = vmatpush.msra.mxu0 %v81
  %1025 = vmatpush.msra.mxu0 %v80
  %1026 = vmatpush.msra.mxu0 %v79
  %1027 = vmatpush.msra.mxu0 %v78
  %1028 = vmatpush.msra.mxu0 %v77
  %1029 = vmatmul.f32.gmra.mxu0 %v1008
  %v1030 = vpop.f32.mrf.mxu0
  %v1031 = vadd.f32 %v1011, %v1030
  %1032 = vmatmul.f32.gmra.mxu0 %v1009
  %v1033 = vpop.f32.mrf.mxu0
  %v1034 = vadd.f32 %v1011, %v1033
  %1035 = vdwg.mxu0
  %v1036 = vadd.f32 %v904, %v1031
  %v1037 = vadd.f32 %v905, %v1034
  %s1038 = scalar_lea.vmem %s1, 1
  %v1039 = vld [vmem:[%s1038] sm:$0x1]
  %s1040 = scalar_lea.vmem %s2, 1
  %v1041 = vld [vmem:[%s1040] sm:$0x1]
  %s1042 = scalar_lea.vmem %s3, 32
  %v1043 = vld [vmem:[%s1042] sm:$0xff]
  %v1044 = vld [vmem:[%s1042 + $0x8] sm:$0xff]
  %v1045 = vld [vmem:[%s1042 + $0x10] sm:$0xff]
  %v1046 = vld [vmem:[%s1042 + $0x18] sm:$0xff]
  %s1047 = scalar_lea.vmem %s4, 1
  %v1048 = vld [vmem:[%s1047] sm:$0x1]
  %s1049 = scalar_lea.vmem %s5, 32
  %v1050 = vld [vmem:[%s1049] sm:$0xff]
  %v1051 = vld [vmem:[%s1049 + $0x8] sm:$0xff]
  %v1052 = vld [vmem:[%s1049 + $0x10] sm:$0xff]
  %v1053 = vld [vmem:[%s1049 + $0x18] sm:$0xff]
  %s1054 = scalar_lea.vmem %s6, 1
  %v1055 = vld [vmem:[%s1054] sm:$0x1]
  %s1056 = scalar_lea.vmem %s7, 1
  %v1057 = vld [vmem:[%s1056] sm:$0x1]
  %s1058 = scalar_lea.vmem %s8, 1
  %v1059 = vld [vmem:[%s1058] sm:$0x1]
  %s1060 = scalar_lea.vmem %s9, 32
  %v1061 = vld [vmem:[%s1060] sm:$0xff]
  %v1062 = vld [vmem:[%s1060 + $0x8] sm:$0xff]
  %v1063 = vld [vmem:[%s1060 + $0x10] sm:$0xff]
  %v1064 = vld [vmem:[%s1060 + $0x18] sm:$0xff]
  %s1065 = scalar_lea.vmem %s10, 1
  %v1066 = vld [vmem:[%s1065] sm:$0x1]
  %s1067 = scalar_lea.vmem %s11, 128
  %v1068 = vld [vmem:[%s1067] sm:$0xff]
  %v1069 = vld [vmem:[%s1067 + $0x8] sm:$0xff]
  %v1070 = vld [vmem:[%s1067 + $0x10] sm:$0xff]
  %v1071 = vld [vmem:[%s1067 + $0x18] sm:$0xff]
  %v1072 = vld [vmem:[%s1067 + $0x20] sm:$0xff]
  %v1073 = vld [vmem:[%s1067 + $0x28] sm:$0xff]
  %v1074 = vld [vmem:[%s1067 + $0x30] sm:$0xff]
  %v1075 = vld [vmem:[%s1067 + $0x38] sm:$0xff]
  %v1076 = vld [vmem:[%s1067 + $0x40] sm:$0xff]
  %v1077 = vld [vmem:[%s1067 + $0x48] sm:$0xff]
  %v1078 = vld [vmem:[%s1067 + $0x50] sm:$0xff]
  %v1079 = vld [vmem:[%s1067 + $0x58] sm:$0xff]
  %v1080 = vld [vmem:[%s1067 + $0x60] sm:$0xff]
  %v1081 = vld [vmem:[%s1067 + $0x68] sm:$0xff]
  %v1082 = vld [vmem:[%s1067 + $0x70] sm:$0xff]
  %v1083 = vld [vmem:[%s1067 + $0x78] sm:$0xff]
  %s1084 = scalar_lea.vmem %s12, 1
  %v1085 = vld [vmem:[%s1084] sm:$0x1]
  %v1086 = vsel %vm94, %v1036, 0.0
  %1087 = vadd.xlane.f32.xlu0 %v1086
  %v1088 = vpop.xlane.xlu0 %1087
  %v1089 = vsel %vm98, %v1037, 0.0
  %1090 = vadd.xlane.f32.xlu0 %v1089
  %v1091 = vpop.xlane.xlu0 %1090
  %v1092 = vmul.f32 %v1088, %v108
  %v1093 = vmul.f32 %v1091, %v108
  %v1094 = vsub.f32 %v1036, %v1092
  %v1095 = vsub.f32 %v1037, %v1093
  %v1096 = vmul.f32 %v1094, %v1094
  %v1097 = vmul.f32 %v1095, %v1095
  %v1098 = vsel %vm94, %v1096, 0.0
  %1099 = vadd.xlane.f32.xlu0 %v1098
  %v1100 = vpop.xlane.xlu0 %1099
  %v1101 = vsel %vm98, %v1097, 0.0
  %1102 = vadd.xlane.f32.xlu0 %v1101
  %v1103 = vpop.xlane.xlu0 %1102
  %v1104 = vmul.f32 %v1100, %v108
  %v1105 = vmul.f32 %v1103, %v108
  %v1106 = vadd.f32 %v1104, 1e-05
  %v1107 = vadd.f32 %v1105, 1e-05
  %v1108 = vrsqrt.pop %v1106
  %v1109 = vmul.f32 %v1108, %v1106
  %v1110 = vmul.f32 %v1109, %v1108
  %v1111 = vmul.f32 0.5, %v1110
  %v1112 = vsub.f32 1.5, %v1111
  %v1113 = vmul.f32 %v1108, %v1112
  %vm1114 = vweird.f32 %v1106
  %vm1115 = vweird.f32 %v1108
  %vm1116 = vmor %vm1114, %vm1115
  %v1117 = vsel %vm1116, %v1108, %v1113
  %v1118 = vrsqrt.pop %v1107
  %v1119 = vmul.f32 %v1118, %v1107
  %v1120 = vmul.f32 %v1119, %v1118
  %v1121 = vmul.f32 0.5, %v1120
  %v1122 = vsub.f32 1.5, %v1121
  %v1123 = vmul.f32 %v1118, %v1122
  %vm1124 = vweird.f32 %v1107
  %vm1125 = vweird.f32 %v1118
  %vm1126 = vmor %vm1124, %vm1125
  %v1127 = vsel %vm1126, %v1118, %v1123
  %v1128 = vmul.f32 %v1094, %v1117
  %v1129 = vmul.f32 %v1095, %v1127
  %v1131 = vperm.slane %v1039, 0
  %v1133 = vmul.f32 %v1128, %v1131
  %v1134 = vmul.f32 %v1129, %v1131
  %v1136 = vperm.slane %v1041, 0
  %v1138 = vadd.f32 %v1133, %v1136
  %v1139 = vadd.f32 %v1134, %v1136
  %v1141 = vperm.slane %v1048, 0
  %v1144 = vsel %vm94, %v1138, 0
  %v1147 = vsel %vm94, %v1139, 0
  %1149 = vmatpush.msra.mxu0 0.0
  %1150 = vmatpush.msra.mxu0 0.0
  %1151 = vmatpush.msra.mxu0 0.0
  %1152 = vmatpush.msra.mxu0 0.0
  %1153 = vmatpush.msra.mxu0 0.0
  %1154 = vmatpush.msra.mxu0 0.0
  %1155 = vmatpush.msra.mxu0 0.0
  %1156 = vmatpush.msra.mxu0 0.0
  %1157 = vmatpush.msra.mxu0 0.0
  %1158 = vmatpush.msra.mxu0 0.0
  %1159 = vmatpush.msra.mxu0 0.0
  %1160 = vmatpush.msra.mxu0 0.0
  %1161 = vmatpush.msra.mxu0 %v1046
  %1162 = vmatpush.msra.mxu0 %v1045
  %1163 = vmatpush.msra.mxu0 %v1044
  %1164 = vmatpush.msra.mxu0 %v1043
  %1165 = vmatmul.f32.gmra.mxu0 %v1144
  %v1166 = vpop.f32.mrf.mxu0
  %v1167 = vadd.f32 %v1141, %v1166
  %1168 = vmatmul.f32.gmra.mxu0 %v1147
  %v1169 = vpop.f32.mrf.mxu0
  %v1170 = vadd.f32 %v1141, %v1169
  %1171 = vdwg.mxu0
  %1173 = vrot.lane.b32.xlu0 %v1167, 96
  %v1174 = vpop.permute.xlu0 %1173
  %v1175 = vsel %vm192, %v1167, 0
  %v1177 = vsel %vm192, %v1174, 0
  %1179 = vmatpush.xpose.msra.mxu0 0.0
  %1180 = vmatpush.xpose.msra.mxu0 0.0
  %1181 = vmatpush.xpose.msra.mxu0 0.0
  %1182 = vmatpush.xpose.msra.mxu0 0.0
  %1183 = vmatpush.xpose.msra.mxu0 0.0
  %1184 = vmatpush.xpose.msra.mxu0 0.0
  %1185 = vmatpush.xpose.msra.mxu0 0.0
  %1186 = vmatpush.xpose.msra.mxu0 0.0
  %1187 = vmatpush.xpose.msra.mxu0 0.0
  %1188 = vmatpush.xpose.msra.mxu0 0.0
  %1189 = vmatpush.xpose.msra.mxu0 0.0
  %1190 = vmatpush.xpose.msra.mxu0 0.0
  %1191 = vmatpush.xpose.msra.mxu0 0.0
  %1192 = vmatpush.xpose.msra.mxu0 0.0
  %1193 = vmatpush.xpose.msra.mxu0 0.0
  %1194 = vmatpush.xpose.msra.mxu0 %v1177
  %1195 = vmatmul.f32.gmra.mxu0 %v1175
  %v1196 = vpop.f32.mrf.mxu0
  %v1197 = vadd.f32 0.0, %v1196
  %1198 = vdwg.mxu0
  %v1199 = vmul.f32 %v1197, 0.35355338
  %v1200 = vsel %vm218, %v1199, -inf
  %1201 = vmax.xlane.f32.xlu0 %v1200
  %v1202 = vpop.xlane.xlu0 %1201
  %v1203 = vsub.f32 %v1199, %v1202
  %v1204 = vmul.f32 %v1203, 1.442695
  %v1205 = vpow.pop %v1204
  %v1206 = vsel %vm218, %v1205, 0.0
  %1207 = vadd.xlane.f32.xlu0 %v1206
  %v1208 = vpop.xlane.xlu0 %1207
  %v1209 = vrcp.pop %v1208
  %v1210 = vmul.f32 %v1208, %v1209
  %v1211 = vsub.f32 1.0, %v1210
  %v1212 = vmul.f32 %v1209, %v1211
  %v1213 = vadd.f32 %v1209, %v1212
  %vm1214 = vweird.f32 %v1208
  %vm1215 = vweird.f32 %v1209
  %vm1216 = vmor %vm1214, %vm1215
  %v1217 = vsel %vm1216, %v1209, %v1213
  %v1218 = vand.u32 2147483647, %v1208
  %vm1219 = vcmp.eq.f32.partialorder %v1218, 8.507059e+37
  %v1220 = vand.u32 %v1208, 2147483648
  %v1221 = vor.u32 1.1754944e-38, %v1220
  %v1222 = vsel %vm1219, %v1221, %v1217
  %v1223 = vmul.f32 %v1205, %v1222
  %1224 = vrot.lane.b32.xlu0 %v1167, 64
  %v1225 = vpop.permute.xlu0 %1224
  %v1227 = vsel %vm245, %v1223, 0
  %v1229 = vsel %vm249, %v1225, 0
  %1231 = vmatpush.msra.mxu0 0.0
  %1232 = vmatpush.msra.mxu0 0.0
  %1233 = vmatpush.msra.mxu0 0.0
  %1234 = vmatpush.msra.mxu0 0.0
  %1235 = vmatpush.msra.mxu0 0.0
  %1236 = vmatpush.msra.mxu0 0.0
  %1237 = vmatpush.msra.mxu0 0.0
  %1238 = vmatpush.msra.mxu0 0.0
  %1239 = vmatpush.msra.mxu0 0.0
  %1240 = vmatpush.msra.mxu0 0.0
  %1241 = vmatpush.msra.mxu0 0.0
  %1242 = vmatpush.msra.mxu0 0.0
  %1243 = vmatpush.msra.mxu0 0.0
  %1244 = vmatpush.msra.mxu0 0.0
  %1245 = vmatpush.msra.mxu0 0.0
  %1246 = vmatpush.msra.mxu0 %v1229
  %1247 = vmatmul.f32.gmra.mxu0 %v1227
  %v1248 = vpop.f32.mrf.mxu0
  %v1249 = vadd.f32 0.0, %v1248
  %1250 = vdwg.mxu0
  %1251 = vrot.lane.b32.xlu0 %v1167, 120
  %v1252 = vpop.permute.xlu0 %1251
  %1253 = vrot.lane.b32.xlu0 %v1167, 88
  %v1254 = vpop.permute.xlu0 %1253
  %v1255 = vsel %vm192, %v1252, 0
  %v1257 = vsel %vm192, %v1254, 0
  %1259 = vmatpush.xpose.msra.mxu0 0.0
  %1260 = vmatpush.xpose.msra.mxu0 0.0
  %1261 = vmatpush.xpose.msra.mxu0 0.0
  %1262 = vmatpush.xpose.msra.mxu0 0.0
  %1263 = vmatpush.xpose.msra.mxu0 0.0
  %1264 = vmatpush.xpose.msra.mxu0 0.0
  %1265 = vmatpush.xpose.msra.mxu0 0.0
  %1266 = vmatpush.xpose.msra.mxu0 0.0
  %1267 = vmatpush.xpose.msra.mxu0 0.0
  %1268 = vmatpush.xpose.msra.mxu0 0.0
  %1269 = vmatpush.xpose.msra.mxu0 0.0
  %1270 = vmatpush.xpose.msra.mxu0 0.0
  %1271 = vmatpush.xpose.msra.mxu0 0.0
  %1272 = vmatpush.xpose.msra.mxu0 0.0
  %1273 = vmatpush.xpose.msra.mxu0 0.0
  %1274 = vmatpush.xpose.msra.mxu0 %v1257
  %1275 = vmatmul.f32.gmra.mxu0 %v1255
  %v1276 = vpop.f32.mrf.mxu0
  %v1277 = vadd.f32 0.0, %v1276
  %1278 = vdwg.mxu0
  %v1279 = vmul.f32 %v1277, 0.35355338
  %v1280 = vsel %vm218, %v1279, -inf
  %1281 = vmax.xlane.f32.xlu0 %v1280
  %v1282 = vpop.xlane.xlu0 %1281
  %v1283 = vsub.f32 %v1279, %v1282
  %v1284 = vmul.f32 %v1283, 1.442695
  %v1285 = vpow.pop %v1284
  %v1286 = vsel %vm218, %v1285, 0.0
  %1287 = vadd.xlane.f32.xlu0 %v1286
  %v1288 = vpop.xlane.xlu0 %1287
  %v1289 = vrcp.pop %v1288
  %v1290 = vmul.f32 %v1288, %v1289
  %v1291 = vsub.f32 1.0, %v1290
  %v1292 = vmul.f32 %v1289, %v1291
  %v1293 = vadd.f32 %v1289, %v1292
  %vm1294 = vweird.f32 %v1288
  %vm1295 = vweird.f32 %v1289
  %vm1296 = vmor %vm1294, %vm1295
  %v1297 = vsel %vm1296, %v1289, %v1293
  %v1298 = vand.u32 2147483647, %v1288
  %vm1299 = vcmp.eq.f32.partialorder %v1298, 8.507059e+37
  %v1300 = vand.u32 %v1288, 2147483648
  %v1301 = vor.u32 1.1754944e-38, %v1300
  %v1302 = vsel %vm1299, %v1301, %v1297
  %v1303 = vmul.f32 %v1285, %v1302
  %1304 = vrot.lane.b32.xlu0 %v1167, 56
  %v1305 = vpop.permute.xlu0 %1304
  %v1307 = vsel %vm245, %v1303, 0
  %v1309 = vsel %vm249, %v1305, 0
  %1311 = vmatpush.msra.mxu0 0.0
  %1312 = vmatpush.msra.mxu0 0.0
  %1313 = vmatpush.msra.mxu0 0.0
  %1314 = vmatpush.msra.mxu0 0.0
  %1315 = vmatpush.msra.mxu0 0.0
  %1316 = vmatpush.msra.mxu0 0.0
  %1317 = vmatpush.msra.mxu0 0.0
  %1318 = vmatpush.msra.mxu0 0.0
  %1319 = vmatpush.msra.mxu0 0.0
  %1320 = vmatpush.msra.mxu0 0.0
  %1321 = vmatpush.msra.mxu0 0.0
  %1322 = vmatpush.msra.mxu0 0.0
  %1323 = vmatpush.msra.mxu0 0.0
  %1324 = vmatpush.msra.mxu0 0.0
  %1325 = vmatpush.msra.mxu0 0.0
  %1326 = vmatpush.msra.mxu0 %v1309
  %1327 = vmatmul.f32.gmra.mxu0 %v1307
  %v1328 = vpop.f32.mrf.mxu0
  %v1329 = vadd.f32 0.0, %v1328
  %1330 = vdwg.mxu0
  %1331 = vrot.lane.b32.xlu0 %v1167, 112
  %v1332 = vpop.permute.xlu0 %1331
  %1333 = vrot.lane.b32.xlu0 %v1167, 80
  %v1334 = vpop.permute.xlu0 %1333
  %v1335 = vsel %vm192, %v1332, 0
  %v1337 = vsel %vm192, %v1334, 0
  %1339 = vmatpush.xpose.msra.mxu0 0.0
  %1340 = vmatpush.xpose.msra.mxu0 0.0
  %1341 = vmatpush.xpose.msra.mxu0 0.0
  %1342 = vmatpush.xpose.msra.mxu0 0.0
  %1343 = vmatpush.xpose.msra.mxu0 0.0
  %1344 = vmatpush.xpose.msra.mxu0 0.0
  %1345 = vmatpush.xpose.msra.mxu0 0.0
  %1346 = vmatpush.xpose.msra.mxu0 0.0
  %1347 = vmatpush.xpose.msra.mxu0 0.0
  %1348 = vmatpush.xpose.msra.mxu0 0.0
  %1349 = vmatpush.xpose.msra.mxu0 0.0
  %1350 = vmatpush.xpose.msra.mxu0 0.0
  %1351 = vmatpush.xpose.msra.mxu0 0.0
  %1352 = vmatpush.xpose.msra.mxu0 0.0
  %1353 = vmatpush.xpose.msra.mxu0 0.0
  %1354 = vmatpush.xpose.msra.mxu0 %v1337
  %1355 = vmatmul.f32.gmra.mxu0 %v1335
  %v1356 = vpop.f32.mrf.mxu0
  %v1357 = vadd.f32 0.0, %v1356
  %1358 = vdwg.mxu0
  %v1359 = vmul.f32 %v1357, 0.35355338
  %v1360 = vsel %vm218, %v1359, -inf
  %1361 = vmax.xlane.f32.xlu0 %v1360
  %v1362 = vpop.xlane.xlu0 %1361
  %v1363 = vsub.f32 %v1359, %v1362
  %v1364 = vmul.f32 %v1363, 1.442695
  %v1365 = vpow.pop %v1364
  %v1366 = vsel %vm218, %v1365, 0.0
  %1367 = vadd.xlane.f32.xlu0 %v1366
  %v1368 = vpop.xlane.xlu0 %1367
  %v1369 = vrcp.pop %v1368
  %v1370 = vmul.f32 %v1368, %v1369
  %v1371 = vsub.f32 1.0, %v1370
  %v1372 = vmul.f32 %v1369, %v1371
  %v1373 = vadd.f32 %v1369, %v1372
  %vm1374 = vweird.f32 %v1368
  %vm1375 = vweird.f32 %v1369
  %vm1376 = vmor %vm1374, %vm1375
  %v1377 = vsel %vm1376, %v1369, %v1373
  %v1378 = vand.u32 2147483647, %v1368
  %vm1379 = vcmp.eq.f32.partialorder %v1378, 8.507059e+37
  %v1380 = vand.u32 %v1368, 2147483648
  %v1381 = vor.u32 1.1754944e-38, %v1380
  %v1382 = vsel %vm1379, %v1381, %v1377
  %v1383 = vmul.f32 %v1365, %v1382
  %1384 = vrot.lane.b32.xlu0 %v1167, 48
  %v1385 = vpop.permute.xlu0 %1384
  %v1387 = vsel %vm245, %v1383, 0
  %v1389 = vsel %vm249, %v1385, 0
  %1391 = vmatpush.msra.mxu0 0.0
  %1392 = vmatpush.msra.mxu0 0.0
  %1393 = vmatpush.msra.mxu0 0.0
  %1394 = vmatpush.msra.mxu0 0.0
  %1395 = vmatpush.msra.mxu0 0.0
  %1396 = vmatpush.msra.mxu0 0.0
  %1397 = vmatpush.msra.mxu0 0.0
  %1398 = vmatpush.msra.mxu0 0.0
  %1399 = vmatpush.msra.mxu0 0.0
  %1400 = vmatpush.msra.mxu0 0.0
  %1401 = vmatpush.msra.mxu0 0.0
  %1402 = vmatpush.msra.mxu0 0.0
  %1403 = vmatpush.msra.mxu0 0.0
  %1404 = vmatpush.msra.mxu0 0.0
  %1405 = vmatpush.msra.mxu0 0.0
  %1406 = vmatpush.msra.mxu0 %v1389
  %1407 = vmatmul.f32.gmra.mxu0 %v1387
  %v1408 = vpop.f32.mrf.mxu0
  %v1409 = vadd.f32 0.0, %v1408
  %1410 = vdwg.mxu0
  %1411 = vrot.lane.b32.xlu0 %v1167, 104
  %v1412 = vpop.permute.xlu0 %1411
  %1413 = vrot.lane.b32.xlu0 %v1167, 72
  %v1414 = vpop.permute.xlu0 %1413
  %v1415 = vsel %vm192, %v1412, 0
  %v1417 = vsel %vm192, %v1414, 0
  %1419 = vmatpush.xpose.msra.mxu0 0.0
  %1420 = vmatpush.xpose.msra.mxu0 0.0
  %1421 = vmatpush.xpose.msra.mxu0 0.0
  %1422 = vmatpush.xpose.msra.mxu0 0.0
  %1423 = vmatpush.xpose.msra.mxu0 0.0
  %1424 = vmatpush.xpose.msra.mxu0 0.0
  %1425 = vmatpush.xpose.msra.mxu0 0.0
  %1426 = vmatpush.xpose.msra.mxu0 0.0
  %1427 = vmatpush.xpose.msra.mxu0 0.0
  %1428 = vmatpush.xpose.msra.mxu0 0.0
  %1429 = vmatpush.xpose.msra.mxu0 0.0
  %1430 = vmatpush.xpose.msra.mxu0 0.0
  %1431 = vmatpush.xpose.msra.mxu0 0.0
  %1432 = vmatpush.xpose.msra.mxu0 0.0
  %1433 = vmatpush.xpose.msra.mxu0 0.0
  %1434 = vmatpush.xpose.msra.mxu0 %v1417
  %1435 = vmatmul.f32.gmra.mxu0 %v1415
  %v1436 = vpop.f32.mrf.mxu0
  %v1437 = vadd.f32 0.0, %v1436
  %1438 = vdwg.mxu0
  %v1439 = vmul.f32 %v1437, 0.35355338
  %v1440 = vsel %vm218, %v1439, -inf
  %1441 = vmax.xlane.f32.xlu0 %v1440
  %v1442 = vpop.xlane.xlu0 %1441
  %v1443 = vsub.f32 %v1439, %v1442
  %v1444 = vmul.f32 %v1443, 1.442695
  %v1445 = vpow.pop %v1444
  %v1446 = vsel %vm218, %v1445, 0.0
  %1447 = vadd.xlane.f32.xlu0 %v1446
  %v1448 = vpop.xlane.xlu0 %1447
  %v1449 = vrcp.pop %v1448
  %v1450 = vmul.f32 %v1448, %v1449
  %v1451 = vsub.f32 1.0, %v1450
  %v1452 = vmul.f32 %v1449, %v1451
  %v1453 = vadd.f32 %v1449, %v1452
  %vm1454 = vweird.f32 %v1448
  %vm1455 = vweird.f32 %v1449
  %vm1456 = vmor %vm1454, %vm1455
  %v1457 = vsel %vm1456, %v1449, %v1453
  %v1458 = vand.u32 2147483647, %v1448
  %vm1459 = vcmp.eq.f32.partialorder %v1458, 8.507059e+37
  %v1460 = vand.u32 %v1448, 2147483648
  %v1461 = vor.u32 1.1754944e-38, %v1460
  %v1462 = vsel %vm1459, %v1461, %v1457
  %v1463 = vmul.f32 %v1445, %v1462
  %1464 = vrot.lane.b32.xlu0 %v1167, 40
  %v1465 = vpop.permute.xlu0 %1464
  %v1467 = vsel %vm245, %v1463, 0
  %v1469 = vsel %vm249, %v1465, 0
  %1471 = vmatpush.msra.mxu0 0.0
  %1472 = vmatpush.msra.mxu0 0.0
  %1473 = vmatpush.msra.mxu0 0.0
  %1474 = vmatpush.msra.mxu0 0.0
  %1475 = vmatpush.msra.mxu0 0.0
  %1476 = vmatpush.msra.mxu0 0.0
  %1477 = vmatpush.msra.mxu0 0.0
  %1478 = vmatpush.msra.mxu0 0.0
  %1479 = vmatpush.msra.mxu0 0.0
  %1480 = vmatpush.msra.mxu0 0.0
  %1481 = vmatpush.msra.mxu0 0.0
  %1482 = vmatpush.msra.mxu0 0.0
  %1483 = vmatpush.msra.mxu0 0.0
  %1484 = vmatpush.msra.mxu0 0.0
  %1485 = vmatpush.msra.mxu0 0.0
  %1486 = vmatpush.msra.mxu0 %v1469
  %1487 = vmatmul.f32.gmra.mxu0 %v1467
  %v1488 = vpop.f32.mrf.mxu0
  %v1489 = vadd.f32 0.0, %v1488
  %1490 = vdwg.mxu0
  %1492 = vrot.lane.b32.xlu0 %v1329, 8
  %v1493 = vpop.permute.xlu0 %1492
  %1496 = vrot.lane.b32.xlu0 %v1409, 16
  %v1497 = vpop.permute.xlu0 %1496
  %1500 = vrot.lane.b32.xlu0 %v1489, 24
  %v1501 = vpop.permute.xlu0 %1500
  %v1503 = vsel %vm192, %v1249, %v1493
  %v1504 = vsel %vm525, %v1503, %v1497
  %v1505 = vsel %vm527, %v1504, %v1501
  %v1507 = vrot.slane %v1167, 5
  %v1508 = vrot.slane %v1170, 5
  %v1509 = vsel %vm530, %v1507, %v1508
  %1510 = vrot.lane.b32.xlu0 %v1509, 96
  %v1511 = vpop.permute.xlu0 %1510
  %v1512 = vsel %vm192, %v1509, 0
  %v1514 = vsel %vm192, %v1511, 0
  %1516 = vmatpush.xpose.msra.mxu0 0.0
  %1517 = vmatpush.xpose.msra.mxu0 0.0
  %1518 = vmatpush.xpose.msra.mxu0 0.0
  %1519 = vmatpush.xpose.msra.mxu0 0.0
  %1520 = vmatpush.xpose.msra.mxu0 0.0
  %1521 = vmatpush.xpose.msra.mxu0 0.0
  %1522 = vmatpush.xpose.msra.mxu0 0.0
  %1523 = vmatpush.xpose.msra.mxu0 0.0
  %1524 = vmatpush.xpose.msra.mxu0 0.0
  %1525 = vmatpush.xpose.msra.mxu0 0.0
  %1526 = vmatpush.xpose.msra.mxu0 0.0
  %1527 = vmatpush.xpose.msra.mxu0 0.0
  %1528 = vmatpush.xpose.msra.mxu0 0.0
  %1529 = vmatpush.xpose.msra.mxu0 0.0
  %1530 = vmatpush.xpose.msra.mxu0 0.0
  %1531 = vmatpush.xpose.msra.mxu0 %v1514
  %1532 = vmatmul.f32.gmra.mxu0 %v1512
  %v1533 = vpop.f32.mrf.mxu0
  %v1534 = vadd.f32 0.0, %v1533
  %1535 = vdwg.mxu0
  %v1536 = vmul.f32 %v1534, 0.35355338
  %v1537 = vsel %vm218, %v1536, -inf
  %1538 = vmax.xlane.f32.xlu0 %v1537
  %v1539 = vpop.xlane.xlu0 %1538
  %v1540 = vsub.f32 %v1536, %v1539
  %v1541 = vmul.f32 %v1540, 1.442695
  %v1542 = vpow.pop %v1541
  %v1543 = vsel %vm218, %v1542, 0.0
  %1544 = vadd.xlane.f32.xlu0 %v1543
  %v1545 = vpop.xlane.xlu0 %1544
  %v1546 = vrcp.pop %v1545
  %v1547 = vmul.f32 %v1545, %v1546
  %v1548 = vsub.f32 1.0, %v1547
  %v1549 = vmul.f32 %v1546, %v1548
  %v1550 = vadd.f32 %v1546, %v1549
  %vm1551 = vweird.f32 %v1545
  %vm1552 = vweird.f32 %v1546
  %vm1553 = vmor %vm1551, %vm1552
  %v1554 = vsel %vm1553, %v1546, %v1550
  %v1555 = vand.u32 2147483647, %v1545
  %vm1556 = vcmp.eq.f32.partialorder %v1555, 8.507059e+37
  %v1557 = vand.u32 %v1545, 2147483648
  %v1558 = vor.u32 1.1754944e-38, %v1557
  %v1559 = vsel %vm1556, %v1558, %v1554
  %v1560 = vmul.f32 %v1542, %v1559
  %1561 = vrot.lane.b32.xlu0 %v1509, 64
  %v1562 = vpop.permute.xlu0 %1561
  %v1564 = vsel %vm245, %v1560, 0
  %v1566 = vsel %vm249, %v1562, 0
  %1568 = vmatpush.msra.mxu0 0.0
  %1569 = vmatpush.msra.mxu0 0.0
  %1570 = vmatpush.msra.mxu0 0.0
  %1571 = vmatpush.msra.mxu0 0.0
  %1572 = vmatpush.msra.mxu0 0.0
  %1573 = vmatpush.msra.mxu0 0.0
  %1574 = vmatpush.msra.mxu0 0.0
  %1575 = vmatpush.msra.mxu0 0.0
  %1576 = vmatpush.msra.mxu0 0.0
  %1577 = vmatpush.msra.mxu0 0.0
  %1578 = vmatpush.msra.mxu0 0.0
  %1579 = vmatpush.msra.mxu0 0.0
  %1580 = vmatpush.msra.mxu0 0.0
  %1581 = vmatpush.msra.mxu0 0.0
  %1582 = vmatpush.msra.mxu0 0.0
  %1583 = vmatpush.msra.mxu0 %v1566
  %1584 = vmatmul.f32.gmra.mxu0 %v1564
  %v1585 = vpop.f32.mrf.mxu0
  %v1586 = vadd.f32 0.0, %v1585
  %1587 = vdwg.mxu0
  %1588 = vrot.lane.b32.xlu0 %v1509, 120
  %v1589 = vpop.permute.xlu0 %1588
  %1590 = vrot.lane.b32.xlu0 %v1509, 88
  %v1591 = vpop.permute.xlu0 %1590
  %v1592 = vsel %vm192, %v1589, 0
  %v1594 = vsel %vm192, %v1591, 0
  %1596 = vmatpush.xpose.msra.mxu0 0.0
  %1597 = vmatpush.xpose.msra.mxu0 0.0
  %1598 = vmatpush.xpose.msra.mxu0 0.0
  %1599 = vmatpush.xpose.msra.mxu0 0.0
  %1600 = vmatpush.xpose.msra.mxu0 0.0
  %1601 = vmatpush.xpose.msra.mxu0 0.0
  %1602 = vmatpush.xpose.msra.mxu0 0.0
  %1603 = vmatpush.xpose.msra.mxu0 0.0
  %1604 = vmatpush.xpose.msra.mxu0 0.0
  %1605 = vmatpush.xpose.msra.mxu0 0.0
  %1606 = vmatpush.xpose.msra.mxu0 0.0
  %1607 = vmatpush.xpose.msra.mxu0 0.0
  %1608 = vmatpush.xpose.msra.mxu0 0.0
  %1609 = vmatpush.xpose.msra.mxu0 0.0
  %1610 = vmatpush.xpose.msra.mxu0 0.0
  %1611 = vmatpush.xpose.msra.mxu0 %v1594
  %1612 = vmatmul.f32.gmra.mxu0 %v1592
  %v1613 = vpop.f32.mrf.mxu0
  %v1614 = vadd.f32 0.0, %v1613
  %1615 = vdwg.mxu0
  %v1616 = vmul.f32 %v1614, 0.35355338
  %v1617 = vsel %vm218, %v1616, -inf
  %1618 = vmax.xlane.f32.xlu0 %v1617
  %v1619 = vpop.xlane.xlu0 %1618
  %v1620 = vsub.f32 %v1616, %v1619
  %v1621 = vmul.f32 %v1620, 1.442695
  %v1622 = vpow.pop %v1621
  %v1623 = vsel %vm218, %v1622, 0.0
  %1624 = vadd.xlane.f32.xlu0 %v1623
  %v1625 = vpop.xlane.xlu0 %1624
  %v1626 = vrcp.pop %v1625
  %v1627 = vmul.f32 %v1625, %v1626
  %v1628 = vsub.f32 1.0, %v1627
  %v1629 = vmul.f32 %v1626, %v1628
  %v1630 = vadd.f32 %v1626, %v1629
  %vm1631 = vweird.f32 %v1625
  %vm1632 = vweird.f32 %v1626
  %vm1633 = vmor %vm1631, %vm1632
  %v1634 = vsel %vm1633, %v1626, %v1630
  %v1635 = vand.u32 2147483647, %v1625
  %vm1636 = vcmp.eq.f32.partialorder %v1635, 8.507059e+37
  %v1637 = vand.u32 %v1625, 2147483648
  %v1638 = vor.u32 1.1754944e-38, %v1637
  %v1639 = vsel %vm1636, %v1638, %v1634
  %v1640 = vmul.f32 %v1622, %v1639
  %1641 = vrot.lane.b32.xlu0 %v1509, 56
  %v1642 = vpop.permute.xlu0 %1641
  %v1644 = vsel %vm245, %v1640, 0
  %v1646 = vsel %vm249, %v1642, 0
  %1648 = vmatpush.msra.mxu0 0.0
  %1649 = vmatpush.msra.mxu0 0.0
  %1650 = vmatpush.msra.mxu0 0.0
  %1651 = vmatpush.msra.mxu0 0.0
  %1652 = vmatpush.msra.mxu0 0.0
  %1653 = vmatpush.msra.mxu0 0.0
  %1654 = vmatpush.msra.mxu0 0.0
  %1655 = vmatpush.msra.mxu0 0.0
  %1656 = vmatpush.msra.mxu0 0.0
  %1657 = vmatpush.msra.mxu0 0.0
  %1658 = vmatpush.msra.mxu0 0.0
  %1659 = vmatpush.msra.mxu0 0.0
  %1660 = vmatpush.msra.mxu0 0.0
  %1661 = vmatpush.msra.mxu0 0.0
  %1662 = vmatpush.msra.mxu0 0.0
  %1663 = vmatpush.msra.mxu0 %v1646
  %1664 = vmatmul.f32.gmra.mxu0 %v1644
  %v1665 = vpop.f32.mrf.mxu0
  %v1666 = vadd.f32 0.0, %v1665
  %1667 = vdwg.mxu0
  %1668 = vrot.lane.b32.xlu0 %v1509, 112
  %v1669 = vpop.permute.xlu0 %1668
  %1670 = vrot.lane.b32.xlu0 %v1509, 80
  %v1671 = vpop.permute.xlu0 %1670
  %v1672 = vsel %vm192, %v1669, 0
  %v1674 = vsel %vm192, %v1671, 0
  %1676 = vmatpush.xpose.msra.mxu0 0.0
  %1677 = vmatpush.xpose.msra.mxu0 0.0
  %1678 = vmatpush.xpose.msra.mxu0 0.0
  %1679 = vmatpush.xpose.msra.mxu0 0.0
  %1680 = vmatpush.xpose.msra.mxu0 0.0
  %1681 = vmatpush.xpose.msra.mxu0 0.0
  %1682 = vmatpush.xpose.msra.mxu0 0.0
  %1683 = vmatpush.xpose.msra.mxu0 0.0
  %1684 = vmatpush.xpose.msra.mxu0 0.0
  %1685 = vmatpush.xpose.msra.mxu0 0.0
  %1686 = vmatpush.xpose.msra.mxu0 0.0
  %1687 = vmatpush.xpose.msra.mxu0 0.0
  %1688 = vmatpush.xpose.msra.mxu0 0.0
  %1689 = vmatpush.xpose.msra.mxu0 0.0
  %1690 = vmatpush.xpose.msra.mxu0 0.0
  %1691 = vmatpush.xpose.msra.mxu0 %v1674
  %1692 = vmatmul.f32.gmra.mxu0 %v1672
  %v1693 = vpop.f32.mrf.mxu0
  %v1694 = vadd.f32 0.0, %v1693
  %1695 = vdwg.mxu0
  %v1696 = vmul.f32 %v1694, 0.35355338
  %v1697 = vsel %vm218, %v1696, -inf
  %1698 = vmax.xlane.f32.xlu0 %v1697
  %v1699 = vpop.xlane.xlu0 %1698
  %v1700 = vsub.f32 %v1696, %v1699
  %v1701 = vmul.f32 %v1700, 1.442695
  %v1702 = vpow.pop %v1701
  %v1703 = vsel %vm218, %v1702, 0.0
  %1704 = vadd.xlane.f32.xlu0 %v1703
  %v1705 = vpop.xlane.xlu0 %1704
  %v1706 = vrcp.pop %v1705
  %v1707 = vmul.f32 %v1705, %v1706
  %v1708 = vsub.f32 1.0, %v1707
  %v1709 = vmul.f32 %v1706, %v1708
  %v1710 = vadd.f32 %v1706, %v1709
  %vm1711 = vweird.f32 %v1705
  %vm1712 = vweird.f32 %v1706
  %vm1713 = vmor %vm1711, %vm1712
  %v1714 = vsel %vm1713, %v1706, %v1710
  %v1715 = vand.u32 2147483647, %v1705
  %vm1716 = vcmp.eq.f32.partialorder %v1715, 8.507059e+37
  %v1717 = vand.u32 %v1705, 2147483648
  %v1718 = vor.u32 1.1754944e-38, %v1717
  %v1719 = vsel %vm1716, %v1718, %v1714
  %v1720 = vmul.f32 %v1702, %v1719
  %1721 = vrot.lane.b32.xlu0 %v1509, 48
  %v1722 = vpop.permute.xlu0 %1721
  %v1724 = vsel %vm245, %v1720, 0
  %v1726 = vsel %vm249, %v1722, 0
  %1728 = vmatpush.msra.mxu0 0.0
  %1729 = vmatpush.msra.mxu0 0.0
  %1730 = vmatpush.msra.mxu0 0.0
  %1731 = vmatpush.msra.mxu0 0.0
  %1732 = vmatpush.msra.mxu0 0.0
  %1733 = vmatpush.msra.mxu0 0.0
  %1734 = vmatpush.msra.mxu0 0.0
  %1735 = vmatpush.msra.mxu0 0.0
  %1736 = vmatpush.msra.mxu0 0.0
  %1737 = vmatpush.msra.mxu0 0.0
  %1738 = vmatpush.msra.mxu0 0.0
  %1739 = vmatpush.msra.mxu0 0.0
  %1740 = vmatpush.msra.mxu0 0.0
  %1741 = vmatpush.msra.mxu0 0.0
  %1742 = vmatpush.msra.mxu0 0.0
  %1743 = vmatpush.msra.mxu0 %v1726
  %1744 = vmatmul.f32.gmra.mxu0 %v1724
  %v1745 = vpop.f32.mrf.mxu0
  %v1746 = vadd.f32 0.0, %v1745
  %1747 = vdwg.mxu0
  %1748 = vrot.lane.b32.xlu0 %v1509, 104
  %v1749 = vpop.permute.xlu0 %1748
  %1750 = vrot.lane.b32.xlu0 %v1509, 72
  %v1751 = vpop.permute.xlu0 %1750
  %v1752 = vsel %vm192, %v1749, 0
  %v1754 = vsel %vm192, %v1751, 0
  %1756 = vmatpush.xpose.msra.mxu0 0.0
  %1757 = vmatpush.xpose.msra.mxu0 0.0
  %1758 = vmatpush.xpose.msra.mxu0 0.0
  %1759 = vmatpush.xpose.msra.mxu0 0.0
  %1760 = vmatpush.xpose.msra.mxu0 0.0
  %1761 = vmatpush.xpose.msra.mxu0 0.0
  %1762 = vmatpush.xpose.msra.mxu0 0.0
  %1763 = vmatpush.xpose.msra.mxu0 0.0
  %1764 = vmatpush.xpose.msra.mxu0 0.0
  %1765 = vmatpush.xpose.msra.mxu0 0.0
  %1766 = vmatpush.xpose.msra.mxu0 0.0
  %1767 = vmatpush.xpose.msra.mxu0 0.0
  %1768 = vmatpush.xpose.msra.mxu0 0.0
  %1769 = vmatpush.xpose.msra.mxu0 0.0
  %1770 = vmatpush.xpose.msra.mxu0 0.0
  %1771 = vmatpush.xpose.msra.mxu0 %v1754
  %1772 = vmatmul.f32.gmra.mxu0 %v1752
  %v1773 = vpop.f32.mrf.mxu0
  %v1774 = vadd.f32 0.0, %v1773
  %1775 = vdwg.mxu0
  %v1776 = vmul.f32 %v1774, 0.35355338
  %v1777 = vsel %vm218, %v1776, -inf
  %1778 = vmax.xlane.f32.xlu0 %v1777
  %v1779 = vpop.xlane.xlu0 %1778
  %v1780 = vsub.f32 %v1776, %v1779
  %v1781 = vmul.f32 %v1780, 1.442695
  %v1782 = vpow.pop %v1781
  %v1783 = vsel %vm218, %v1782, 0.0
  %1784 = vadd.xlane.f32.xlu0 %v1783
  %v1785 = vpop.xlane.xlu0 %1784
  %v1786 = vrcp.pop %v1785
  %v1787 = vmul.f32 %v1785, %v1786
  %v1788 = vsub.f32 1.0, %v1787
  %v1789 = vmul.f32 %v1786, %v1788
  %v1790 = vadd.f32 %v1786, %v1789
  %vm1791 = vweird.f32 %v1785
  %vm1792 = vweird.f32 %v1786
  %vm1793 = vmor %vm1791, %vm1792
  %v1794 = vsel %vm1793, %v1786, %v1790
  %v1795 = vand.u32 2147483647, %v1785
  %vm1796 = vcmp.eq.f32.partialorder %v1795, 8.507059e+37
  %v1797 = vand.u32 %v1785, 2147483648
  %v1798 = vor.u32 1.1754944e-38, %v1797
  %v1799 = vsel %vm1796, %v1798, %v1794
  %v1800 = vmul.f32 %v1782, %v1799
  %1801 = vrot.lane.b32.xlu0 %v1509, 40
  %v1802 = vpop.permute.xlu0 %1801
  %v1804 = vsel %vm245, %v1800, 0
  %v1806 = vsel %vm249, %v1802, 0
  %1808 = vmatpush.msra.mxu0 0.0
  %1809 = vmatpush.msra.mxu0 0.0
  %1810 = vmatpush.msra.mxu0 0.0
  %1811 = vmatpush.msra.mxu0 0.0
  %1812 = vmatpush.msra.mxu0 0.0
  %1813 = vmatpush.msra.mxu0 0.0
  %1814 = vmatpush.msra.mxu0 0.0
  %1815 = vmatpush.msra.mxu0 0.0
  %1816 = vmatpush.msra.mxu0 0.0
  %1817 = vmatpush.msra.mxu0 0.0
  %1818 = vmatpush.msra.mxu0 0.0
  %1819 = vmatpush.msra.mxu0 0.0
  %1820 = vmatpush.msra.mxu0 0.0
  %1821 = vmatpush.msra.mxu0 0.0
  %1822 = vmatpush.msra.mxu0 0.0
  %1823 = vmatpush.msra.mxu0 %v1806
  %1824 = vmatmul.f32.gmra.mxu0 %v1804
  %v1825 = vpop.f32.mrf.mxu0
  %v1826 = vadd.f32 0.0, %v1825
  %1827 = vdwg.mxu0
  %1829 = vrot.lane.b32.xlu0 %v1666, 8
  %v1830 = vpop.permute.xlu0 %1829
  %1833 = vrot.lane.b32.xlu0 %v1746, 16
  %v1834 = vpop.permute.xlu0 %1833
  %1837 = vrot.lane.b32.xlu0 %v1826, 24
  %v1838 = vpop.permute.xlu0 %1837
  %v1840 = vsel %vm192, %v1586, %v1830
  %v1841 = vsel %vm525, %v1840, %v1834
  %v1842 = vsel %vm527, %v1841, %v1838
  %v1844 = vrot.slane %v1842, 3
  %v1846 = vsel %vm249, %v1505, %v1844
  %v1848 = vsel %vm94, %v1846, 0
  %v1850 = vsel %vm94, %v1844, 0
  %1852 = vmatpush.msra.mxu0 0.0
  %1853 = vmatpush.msra.mxu0 0.0
  %1854 = vmatpush.msra.mxu0 0.0
  %1855 = vmatpush.msra.mxu0 0.0
  %1856 = vmatpush.msra.mxu0 0.0
  %1857 = vmatpush.msra.mxu0 0.0
  %1858 = vmatpush.msra.mxu0 0.0
  %1859 = vmatpush.msra.mxu0 0.0
  %1860 = vmatpush.msra.mxu0 0.0
  %1861 = vmatpush.msra.mxu0 0.0
  %1862 = vmatpush.msra.mxu0 0.0
  %1863 = vmatpush.msra.mxu0 0.0
  %1864 = vmatpush.msra.mxu0 %v1053
  %1865 = vmatpush.msra.mxu0 %v1052
  %1866 = vmatpush.msra.mxu0 %v1051
  %1867 = vmatpush.msra.mxu0 %v1050
  %1868 = vmatmul.f32.gmra.mxu0 %v1848
  %v1869 = vpop.f32.mrf.mxu0
  %v1870 = vadd.f32 0.0, %v1869
  %1871 = vmatmul.f32.gmra.mxu0 %v1850
  %v1872 = vpop.f32.mrf.mxu0
  %v1873 = vadd.f32 0.0, %v1872
  %1874 = vdwg.mxu0
  %v1875 = vadd.f32 %v1036, %v1870
  %v1876 = vadd.f32 %v1037, %v1873
  %v1878 = vperm.slane %v1055, 0
  %v1880 = vadd.f32 %v1875, %v1878
  %v1881 = vadd.f32 %v1876, %v1878
  %v1882 = vsel %vm94, %v1880, 0.0
  %1883 = vadd.xlane.f32.xlu0 %v1882
  %v1884 = vpop.xlane.xlu0 %1883
  %v1885 = vsel %vm98, %v1881, 0.0
  %1886 = vadd.xlane.f32.xlu0 %v1885
  %v1887 = vpop.xlane.xlu0 %1886
  %v1888 = vmul.f32 %v1884, %v108
  %v1889 = vmul.f32 %v1887, %v108
  %v1890 = vsub.f32 %v1880, %v1888
  %v1891 = vsub.f32 %v1881, %v1889
  %v1892 = vmul.f32 %v1890, %v1890
  %v1893 = vmul.f32 %v1891, %v1891
  %v1894 = vsel %vm94, %v1892, 0.0
  %1895 = vadd.xlane.f32.xlu0 %v1894
  %v1896 = vpop.xlane.xlu0 %1895
  %v1897 = vsel %vm98, %v1893, 0.0
  %1898 = vadd.xlane.f32.xlu0 %v1897
  %v1899 = vpop.xlane.xlu0 %1898
  %v1900 = vmul.f32 %v1896, %v108
  %v1901 = vmul.f32 %v1899, %v108
  %v1902 = vadd.f32 %v1900, 1e-05
  %v1903 = vadd.f32 %v1901, 1e-05
  %v1904 = vrsqrt.pop %v1902
  %v1905 = vmul.f32 %v1904, %v1902
  %v1906 = vmul.f32 %v1905, %v1904
  %v1907 = vmul.f32 0.5, %v1906
  %v1908 = vsub.f32 1.5, %v1907
  %v1909 = vmul.f32 %v1904, %v1908
  %vm1910 = vweird.f32 %v1902
  %vm1911 = vweird.f32 %v1904
  %vm1912 = vmor %vm1910, %vm1911
  %v1913 = vsel %vm1912, %v1904, %v1909
  %v1914 = vrsqrt.pop %v1903
  %v1915 = vmul.f32 %v1914, %v1903
  %v1916 = vmul.f32 %v1915, %v1914
  %v1917 = vmul.f32 0.5, %v1916
  %v1918 = vsub.f32 1.5, %v1917
  %v1919 = vmul.f32 %v1914, %v1918
  %vm1920 = vweird.f32 %v1903
  %vm1921 = vweird.f32 %v1914
  %vm1922 = vmor %vm1920, %vm1921
  %v1923 = vsel %vm1922, %v1914, %v1919
  %v1924 = vmul.f32 %v1890, %v1913
  %v1925 = vmul.f32 %v1891, %v1923
  %v1927 = vperm.slane %v1057, 0
  %v1929 = vmul.f32 %v1924, %v1927
  %v1930 = vmul.f32 %v1925, %v1927
  %v1932 = vperm.slane %v1059, 0
  %v1934 = vadd.f32 %v1929, %v1932
  %v1935 = vadd.f32 %v1930, %v1932
  %v1937 = vperm.slane %v1066, 0
  %v1940 = vsel %vm94, %v1934, 0
  %v1943 = vsel %vm94, %v1935, 0
  %1945 = vmatpush.msra.mxu0 0.0
  %1946 = vmatpush.msra.mxu0 0.0
  %1947 = vmatpush.msra.mxu0 0.0
  %1948 = vmatpush.msra.mxu0 0.0
  %1949 = vmatpush.msra.mxu0 0.0
  %1950 = vmatpush.msra.mxu0 0.0
  %1951 = vmatpush.msra.mxu0 0.0
  %1952 = vmatpush.msra.mxu0 0.0
  %1953 = vmatpush.msra.mxu0 0.0
  %1954 = vmatpush.msra.mxu0 0.0
  %1955 = vmatpush.msra.mxu0 0.0
  %1956 = vmatpush.msra.mxu0 0.0
  %1957 = vmatpush.msra.mxu0 %v1064
  %1958 = vmatpush.msra.mxu0 %v1063
  %1959 = vmatpush.msra.mxu0 %v1062
  %1960 = vmatpush.msra.mxu0 %v1061
  %1961 = vmatmul.f32.gmra.mxu0 %v1940
  %v1962 = vpop.f32.mrf.mxu0
  %v1963 = vadd.f32 %v1937, %v1962
  %1964 = vmatmul.f32.gmra.mxu0 %v1943
  %v1965 = vpop.f32.mrf.mxu0
  %v1966 = vadd.f32 %v1937, %v1965
  %1967 = vdwg.mxu0
  %v1968 = vmul.f32 %v1963, %v1963
  %v1969 = vmul.f32 %v1966, %v1966
  %v1970 = vmul.f32 %v1963, %v1968
  %v1971 = vmul.f32 %v1966, %v1969
  %v1972 = vmul.f32 %v1970, 0.044715
  %v1973 = vmul.f32 %v1971, 0.044715
  %v1974 = vadd.f32 %v1963, %v1972
  %v1975 = vadd.f32 %v1966, %v1973
  %v1976 = vmul.f32 %v1974, 0.7978846
  %v1977 = vmul.f32 %v1975, 0.7978846
  %v1978 = vtanh.pop %v1976
  %v1979 = vtanh.pop %v1977
  %v1980 = vadd.f32 %v1978, 1.0
  %v1981 = vadd.f32 %v1979, 1.0
  %v1982 = vmul.f32 %v1980, 0.5
  %v1983 = vmul.f32 %v1981, 0.5
  %v1984 = vmul.f32 %v1963, %v1982
  %v1985 = vmul.f32 %v1966, %v1983
  %v1987 = vperm.slane %v1085, 0
  %1989 = vmatpush.msra.mxu0 %v1083
  %1990 = vmatpush.msra.mxu0 %v1082
  %1991 = vmatpush.msra.mxu0 %v1081
  %1992 = vmatpush.msra.mxu0 %v1080
  %1993 = vmatpush.msra.mxu0 %v1079
  %1994 = vmatpush.msra.mxu0 %v1078
  %1995 = vmatpush.msra.mxu0 %v1077
  %1996 = vmatpush.msra.mxu0 %v1076
  %1997 = vmatpush.msra.mxu0 %v1075
  %1998 = vmatpush.msra.mxu0 %v1074
  %1999 = vmatpush.msra.mxu0 %v1073
  %2000 = vmatpush.msra.mxu0 %v1072
  %2001 = vmatpush.msra.mxu0 %v1071
  %2002 = vmatpush.msra.mxu0 %v1070
  %2003 = vmatpush.msra.mxu0 %v1069
  %2004 = vmatpush.msra.mxu0 %v1068
  %2005 = vmatmul.f32.gmra.mxu0 %v1984
  %v2006 = vpop.f32.mrf.mxu0
  %v2007 = vadd.f32 %v1987, %v2006
  %2008 = vmatmul.f32.gmra.mxu0 %v1985
  %v2009 = vpop.f32.mrf.mxu0
  %v2010 = vadd.f32 %v1987, %v2009
  %2011 = vdwg.mxu0
  %v2012 = vadd.f32 %v1880, %v2007
  %v2013 = vadd.f32 %v1881, %v2010
  %v2014 = vld [vmem:[%s13] sm:$0x1]
  %v2015 = vld [vmem:[%s14] sm:$0x1]
  %v2016 = vsel %vm94, %v2012, 0.0
  %2017 = vadd.xlane.f32.xlu0 %v2016
  %v2018 = vpop.xlane.xlu0 %2017
  %v2019 = vsel %vm98, %v2013, 0.0
  %2020 = vadd.xlane.f32.xlu0 %v2019
  %v2021 = vpop.xlane.xlu0 %2020
  %v2022 = vmul.f32 %v2018, %v108
  %v2023 = vmul.f32 %v2021, %v108
  %v2024 = vsub.f32 %v2012, %v2022
  %v2025 = vsub.f32 %v2013, %v2023
  %v2026 = vmul.f32 %v2024, %v2024
  %v2027 = vmul.f32 %v2025, %v2025
  %v2028 = vsel %vm94, %v2026, 0.0
  %2029 = vadd.xlane.f32.xlu0 %v2028
  %v2030 = vpop.xlane.xlu0 %2029
  %v2031 = vsel %vm98, %v2027, 0.0
  %2032 = vadd.xlane.f32.xlu0 %v2031
  %v2033 = vpop.xlane.xlu0 %2032
  %v2034 = vmul.f32 %v2030, %v108
  %v2035 = vmul.f32 %v2033, %v108
  %v2036 = vadd.f32 %v2034, 1e-05
  %v2037 = vadd.f32 %v2035, 1e-05
  %v2038 = vrsqrt.pop %v2036
  %v2039 = vmul.f32 %v2038, %v2036
  %v2040 = vmul.f32 %v2039, %v2038
  %v2041 = vmul.f32 0.5, %v2040
  %v2042 = vsub.f32 1.5, %v2041
  %v2043 = vmul.f32 %v2038, %v2042
  %vm2044 = vweird.f32 %v2036
  %vm2045 = vweird.f32 %v2038
  %vm2046 = vmor %vm2044, %vm2045
  %v2047 = vsel %vm2046, %v2038, %v2043
  %v2048 = vrsqrt.pop %v2037
  %v2049 = vmul.f32 %v2048, %v2037
  %v2050 = vmul.f32 %v2049, %v2048
  %v2051 = vmul.f32 0.5, %v2050
  %v2052 = vsub.f32 1.5, %v2051
  %v2053 = vmul.f32 %v2048, %v2052
  %vm2054 = vweird.f32 %v2037
  %vm2055 = vweird.f32 %v2048
  %vm2056 = vmor %vm2054, %vm2055
  %v2057 = vsel %vm2056, %v2048, %v2053
  %v2058 = vmul.f32 %v2024, %v2047
  %v2059 = vmul.f32 %v2025, %v2057
  %v2061 = vperm.slane %v2014, 0
  %v2063 = vmul.f32 %v2058, %v2061
  %v2064 = vmul.f32 %v2059, %v2061
  %v2066 = vperm.slane %v2015, 0
  %v2068 = vadd.f32 %v2063, %v2066
  %v2069 = vadd.f32 %v2064, %v2066
  %v2070 = vld [vmem:[%s15] sm:$0xff]
  %v2071 = vld [vmem:[%s15 + $0x8] sm:$0xff]
  %v2072 = vld [vmem:[%s15 + $0x10] sm:$0xff]
  %v2073 = vld [vmem:[%s15 + $0x18] sm:$0xff]
  %v2074 = vld [vmem:[%s16] sm:$0x1]
  %v2076 = vperm.slane %v2074, 0
  %v2079 = vsel %vm94, %v2068, 0
  %v2082 = vsel %vm94, %v2069, 0
  %2084 = vmatpush.msra.mxu0 0.0
  %2085 = vmatpush.msra.mxu0 0.0
  %2086 = vmatpush.msra.mxu0 0.0
  %2087 = vmatpush.msra.mxu0 0.0
  %2088 = vmatpush.msra.mxu0 0.0
  %2089 = vmatpush.msra.mxu0 0.0
  %2090 = vmatpush.msra.mxu0 0.0
  %2091 = vmatpush.msra.mxu0 0.0
  %2092 = vmatpush.msra.mxu0 0.0
  %2093 = vmatpush.msra.mxu0 0.0
  %2094 = vmatpush.msra.mxu0 0.0
  %2095 = vmatpush.msra.mxu0 0.0
  %2096 = vmatpush.msra.mxu0 %v2073
  %2097 = vmatpush.msra.mxu0 %v2072
  %2098 = vmatpush.msra.mxu0 %v2071
  %2099 = vmatpush.msra.mxu0 %v2070
  %2100 = vmatmul.f32.gmra.mxu0 %v2079
  %v2101 = vpop.f32.mrf.mxu0
  %v2102 = vadd.f32 %v2076, %v2101
  %2103 = vmatmul.f32.gmra.mxu0 %v2082
  %v2104 = vpop.f32.mrf.mxu0
  %v2105 = vadd.f32 %v2076, %v2104
  %2106 = vdwg.mxu0
  %2107 = vst.msk [vmem:[%s17] sm:$0xff] %vm94, %v2102
  %2108 = vst.msk [vmem:[%s17 + $0x8] sm:$0x3] %vm98, %v2105
  // Predicated region
  $region70: #{_lambda_.4} parent=0 // pred_check
    _
  $region71: #{_lambda_.4} parent=0 // pred_check_branch
    %2110 = sbr.rel (0) target = $region73
  $region72: #{_lambda_.4} parent=0 // pred_region
    _
  $region73: #{_lambda_.4} parent=0 // pred_fallthru
    _
  // Predicated region
  $region74: #{_lambda_.4} parent=0 // pred_check
    _
  $region75: #{_lambda_.4} parent=0 // pred_check_branch
    %2112 = sbr.rel (0) target = $region77
  $region76: #{_lambda_.4} parent=0 // pred_region
    _
  $region77: #{_lambda_.4} parent=0 // pred_fallthru
    _

// kernel: _lambda_.5
$region0: #{_lambda_.5}
  #allocation0 [shape = 'u32[]', space=smem, size = 0x4, offset = 0x4, fixed_abs, tag = 'smem constant byte address 0x4 - core index']
  #allocation1 [shape = 'u32[72,128]{1,0:T(1,128)}', space=vmem, size = 0x9000, scoped, tag = 'internal scratch']
  %s0 = inlined_call_operand.vmem [shape: f32[34,32], index: 0, kind: input, shape index: {}]
  %s1 = inlined_call_operand.vmem [shape: f32[17,32], index: 1, kind: input, shape index: {}]
  %s2 = inlined_call_operand.vmem [shape: f32[1,1,32], index: 2, kind: input, shape index: {}]
  %s3 = inlined_call_operand.vmem [shape: f32[1,1,32], index: 3, kind: input, shape index: {}]
  %s4 = inlined_call_operand.vmem [shape: f32[1,32,96], index: 4, kind: input, shape index: {}]
  %s5 = inlined_call_operand.vmem [shape: f32[1,1,96], index: 5, kind: input, shape index: {}]
  %s6 = inlined_call_operand.vmem [shape: f32[1,32,32], index: 6, kind: input, shape index: {}]
  %s7 = inlined_call_operand.vmem [shape: f32[1,1,32], index: 7, kind: input, shape index: {}]
  %s8 = inlined_call_operand.vmem [shape: f32[1,1,32], index: 8, kind: input, shape index: {}]
  %s9 = inlined_call_operand.vmem [shape: f32[1,1,32], index: 9, kind: input, shape index: {}]
  %s10 = inlined_call_operand.vmem [shape: f32[1,32,128], index: 10, kind: input, shape index: {}]
  %s11 = inlined_call_operand.vmem [shape: f32[1,1,128], index: 11, kind: input, shape index: {}]
  %s12 = inlined_call_operand.vmem [shape: f32[1,128,32], index: 12, kind: input, shape index: {}]
  %s13 = inlined_call_operand.vmem [shape: f32[1,1,32], index: 13, kind: input, shape index: {}]
  %s14 = inlined_call_operand.vmem [shape: f32[1,32], index: 14, kind: input, shape index: {}]
  %s15 = inlined_call_operand.vmem [shape: f32[1,32], index: 15, kind: input, shape index: {}]
  %s16 = inlined_call_operand.vmem [shape: f32[32,16], index: 16, kind: input, shape index: {}]
  %s17 = inlined_call_operand.vmem [shape: f32[1,16], index: 17, kind: input, shape index: {}]
  %s18 = inlined_call_operand.vmem [shape: f32[32,16], index: 18, kind: input, shape index: {}]
  %s19 = inlined_call_operand.vmem [shape: f32[32,1], index: 19, kind: input, shape index: {}]
  %s20 = inlined_call_operand.hbm [shape: f32[32,16], index: 20, kind: output, shape index: {0}]
  %s21 = inlined_call_operand.hbm [shape: f32[1,1], index: 21, kind: output, shape index: {1}]
  %s22 = inlined_call_operand.hbm [shape: f32[1,1], index: 22, kind: output, shape index: {2}]
  %23 = xla_tuple %s20, %s21, %s22
  %s24 = sld [smem:[#allocation0]]
  $region106: #{_lambda_.5} parent=0
    _
  %s26 = ssub.s32 1, %s24
  %s27 = scalar_select 0, %s26, %s24
  $region1: #{_lambda_.5} parent=0
    #allocation2 [shape = 'u8[16384]{0}', space=vmem, size = 0x4000, scoped, tag = 'output window, operand 0, single buffered']
    #allocation3 [shape = 's32[1]{0}', space=sflag, size = 0x4, scoped, tag = 'scoped memory for _lambda_.5']
    #allocation4 [shape = 'u8[512]{0}', space=vmem, size = 0x400, scoped, tag = 'output window, operand 1, single buffered']
    #allocation5 [shape = 's32[1]{0}', space=sflag, size = 0x4, scoped, tag = 'scoped memory for _lambda_.5']
    #allocation6 [shape = 'u8[512]{0}', space=vmem, size = 0x400, scoped, tag = 'output window, operand 2, single buffered']
    %28 = vsyncpa [#allocation3], 0
    %29 = vsyncpa [#allocation5], 0
    // Predicated region
    $region2: #{_lambda_.5} parent=1 // pred_check
      _
    $region3: #{_lambda_.5} parent=1 // pred_check_branch
      %31 = sbr.rel (0) target = $region5
    $region4: #{_lambda_.5} parent=1 // pred_region
      _
    $region5: #{_lambda_.5} parent=1 // pred_fallthru
      _
    // Predicated region
    $region6: #{_lambda_.5} parent=1 // pred_check
      _
    $region7: #{_lambda_.5} parent=1 // pred_check_branch
      %33 = sbr.rel (0) target = $region9
    $region8: #{_lambda_.5} parent=1 // pred_region
      _
    $region9: #{_lambda_.5} parent=1 // pred_fallthru
      _
    // Predicated region
    $region10: #{_lambda_.5} parent=1 // pred_check
      _
    $region11: #{_lambda_.5} parent=1 // pred_check_branch
      %35 = sbr.rel (0) target = $region13
    $region12: #{_lambda_.5} parent=1 // pred_region
      _
    $region13: #{_lambda_.5} parent=1 // pred_fallthru
      _
    // Predicated region
    $region14: #{_lambda_.5} parent=1 // pred_check
      _
    $region15: #{_lambda_.5} parent=1 // pred_check_branch
      %37 = sbr.rel (0) target = $region17
    $region16: #{_lambda_.5} parent=1 // pred_region
      _
    $region17: #{_lambda_.5} parent=1 // pred_fallthru
      _
    // Predicated region
    $region18: #{_lambda_.5} parent=1 // pred_check
      _
    $region19: #{_lambda_.5} parent=1 // pred_check_branch
      %39 = sbr.rel (0) target = $region21
    $region20: #{_lambda_.5} parent=1 // pred_region
      _
    $region21: #{_lambda_.5} parent=1 // pred_fallthru
      _
    // Predicated region
    $region22: #{_lambda_.5} parent=1 // pred_check
      _
    $region23: #{_lambda_.5} parent=1 // pred_check_branch
      %41 = sbr.rel (0) target = $region25
    $region24: #{_lambda_.5} parent=1 // pred_region
      _
    $region25: #{_lambda_.5} parent=1 // pred_fallthru
      _
    // Predicated region
    $region26: #{_lambda_.5} parent=1 // pred_check
      _
    $region27: #{_lambda_.5} parent=1 // pred_check_branch
      %43 = sbr.rel (0) target = $region29
    $region28: #{_lambda_.5} parent=1 // pred_region
      _
    $region29: #{_lambda_.5} parent=1 // pred_fallthru
      _
    // Predicated region
    $region30: #{_lambda_.5} parent=1 // pred_check
      _
    $region31: #{_lambda_.5} parent=1 // pred_check_branch
      %45 = sbr.rel (0) target = $region33
    $region32: #{_lambda_.5} parent=1 // pred_region
      _
    $region33: #{_lambda_.5} parent=1 // pred_fallthru
      _
    // Predicated region
    $region34: #{_lambda_.5} parent=1 // pred_check
      _
    $region35: #{_lambda_.5} parent=1 // pred_check_branch
      %47 = sbr.rel (0) target = $region37
    $region36: #{_lambda_.5} parent=1 // pred_region
      _
    $region37: #{_lambda_.5} parent=1 // pred_fallthru
      _
    // Predicated region
    $region38: #{_lambda_.5} parent=1 // pred_check
      _
    $region39: #{_lambda_.5} parent=1 // pred_check_branch
      %49 = sbr.rel (0) target = $region41
    $region40: #{_lambda_.5} parent=1 // pred_region
      _
    $region41: #{_lambda_.5} parent=1 // pred_fallthru
      _
    // Predicated region
    $region42: #{_lambda_.5} parent=1 // pred_check
      _
    $region43: #{_lambda_.5} parent=1 // pred_check_branch
      %51 = sbr.rel (0) target = $region45
    $region44: #{_lambda_.5} parent=1 // pred_region
      _
    $region45: #{_lambda_.5} parent=1 // pred_fallthru
      _
    // Predicated region
    $region46: #{_lambda_.5} parent=1 // pred_check
      _
    $region47: #{_lambda_.5} parent=1 // pred_check_branch
      %53 = sbr.rel (0) target = $region49
    $region48: #{_lambda_.5} parent=1 // pred_region
      _
    $region49: #{_lambda_.5} parent=1 // pred_fallthru
      _
    // Predicated region
    $region50: #{_lambda_.5} parent=1 // pred_check
      _
    $region51: #{_lambda_.5} parent=1 // pred_check_branch
      %55 = sbr.rel (0) target = $region53
    $region52: #{_lambda_.5} parent=1 // pred_region
      _
    $region53: #{_lambda_.5} parent=1 // pred_fallthru
      _
    // Predicated region
    $region54: #{_lambda_.5} parent=1 // pred_check
      _
    $region55: #{_lambda_.5} parent=1 // pred_check_branch
      %57 = sbr.rel (0) target = $region57
    $region56: #{_lambda_.5} parent=1 // pred_region
      _
    $region57: #{_lambda_.5} parent=1 // pred_fallthru
      _
    // Predicated region
    $region58: #{_lambda_.5} parent=1 // pred_check
      _
    $region59: #{_lambda_.5} parent=1 // pred_check_branch
      %59 = sbr.rel (0) target = $region61
    $region60: #{_lambda_.5} parent=1 // pred_region
      _
    $region61: #{_lambda_.5} parent=1 // pred_fallthru
      _
    // Predicated region
    $region62: #{_lambda_.5} parent=1 // pred_check
      _
    $region63: #{_lambda_.5} parent=1 // pred_check_branch
      %61 = sbr.rel (0) target = $region65
    $region64: #{_lambda_.5} parent=1 // pred_region
      _
    $region65: #{_lambda_.5} parent=1 // pred_fallthru
      _
    // Predicated region
    $region66: #{_lambda_.5} parent=1 // pred_check
      _
    $region67: #{_lambda_.5} parent=1 // pred_check_branch
      %63 = sbr.rel (0) target = $region69
    $region68: #{_lambda_.5} parent=1 // pred_region
      _
    $region69: #{_lambda_.5} parent=1 // pred_fallthru
      _
    // Predicated region
    $region70: #{_lambda_.5} parent=1 // pred_check
      _
    $region71: #{_lambda_.5} parent=1 // pred_check_branch
      %65 = sbr.rel (0) target = $region73
    $region72: #{_lambda_.5} parent=1 // pred_region
      _
    $region73: #{_lambda_.5} parent=1 // pred_fallthru
      _
    // Predicated region
    $region74: #{_lambda_.5} parent=1 // pred_check
      _
    $region75: #{_lambda_.5} parent=1 // pred_check_branch
      %67 = sbr.rel (0) target = $region77
    $region76: #{_lambda_.5} parent=1 // pred_region
      _
    $region77: #{_lambda_.5} parent=1 // pred_fallthru
      _
    // Predicated region
    $region78: #{_lambda_.5} parent=1 // pred_check
      _
    $region79: #{_lambda_.5} parent=1 // pred_check_branch
      %69 = sbr.rel (0) target = $region81
    $region80: #{_lambda_.5} parent=1 // pred_region
      _
    $region81: #{_lambda_.5} parent=1 // pred_fallthru
      _
    %v70 = vld [vmem:[%s1] sm:$0xff]
    %v71 = vld [vmem:[%s1 + $0x8] sm:$0xff]
    %v72 = vld [vmem:[%s1 + $0x10] sm:$0x1]
    %vm76 = vcmask 1040384
    %v77 = vrot.slane %v70, 7
    %v78 = vrot.slane %v71, 7
    %v79 = vsel %vm76, %v77, %v78
    %v80 = vrot.slane %v72, 7
    %v81 = vsel %vm76, %v78, %v80
    %v85 = vsel %vm76, %v72, %v77
    %v86 = vld [vmem:[%s0] sm:$0xff]
    %v87 = vld [vmem:[%s0 + $0x8] sm:$0xff]
    %v88 = vld [vmem:[%s0 + $0x10] sm:$0xff]
    %v89 = vld [vmem:[%s0 + $0x18] sm:$0xff]
    %v90 = vld [vmem:[%s0 + $0x20] sm:$0x3]
    %v91 = vadd.f32 %v86, %v70
    %v92 = vadd.f32 %v87, %v71
    %v93 = vadd.f32 %v88, %v85
    %v94 = vadd.f32 %v89, %v79
    %v95 = vadd.f32 %v90, %v81
    %v96 = vld [vmem:[%s2] sm:$0x1]
    %v97 = vld [vmem:[%s3] sm:$0x1]
    %v98 = vld [vmem:[%s4] sm:$0xff]
    %v99 = vld [vmem:[%s4 + $0x8] sm:$0xff]
    %v100 = vld [vmem:[%s4 + $0x10] sm:$0xff]
    %v101 = vld [vmem:[%s4 + $0x18] sm:$0xff]
    %v102 = vld [vmem:[%s5] sm:$0x1]
    %v103 = vld [vmem:[%s6] sm:$0xff]
    %v104 = vld [vmem:[%s6 + $0x8] sm:$0xff]
    %v105 = vld [vmem:[%s6 + $0x10] sm:$0xff]
    %v106 = vld [vmem:[%s6 + $0x18] sm:$0xff]
    %v107 = vld [vmem:[%s7] sm:$0x1]
    %v108 = vld [vmem:[%s8] sm:$0x1]
    %v109 = vld [vmem:[%s9] sm:$0x1]
    %v110 = vld [vmem:[%s10] sm:$0xff]
    %v111 = vld [vmem:[%s10 + $0x8] sm:$0xff]
    %v112 = vld [vmem:[%s10 + $0x10] sm:$0xff]
    %v113 = vld [vmem:[%s10 + $0x18] sm:$0xff]
    %v114 = vld [vmem:[%s11] sm:$0x1]
    %v115 = vld [vmem:[%s12] sm:$0xff]
    %v116 = vld [vmem:[%s12 + $0x8] sm:$0xff]
    %v117 = vld [vmem:[%s12 + $0x10] sm:$0xff]
    %v118 = vld [vmem:[%s12 + $0x18] sm:$0xff]
    %v119 = vld [vmem:[%s12 + $0x20] sm:$0xff]
    %v120 = vld [vmem:[%s12 + $0x28] sm:$0xff]
    %v121 = vld [vmem:[%s12 + $0x30] sm:$0xff]
    %v122 = vld [vmem:[%s12 + $0x38] sm:$0xff]
    %v123 = vld [vmem:[%s12 + $0x40] sm:$0xff]
    %v124 = vld [vmem:[%s12 + $0x48] sm:$0xff]
    %v125 = vld [vmem:[%s12 + $0x50] sm:$0xff]
    %v126 = vld [vmem:[%s12 + $0x58] sm:$0xff]
    %v127 = vld [vmem:[%s12 + $0x60] sm:$0xff]
    %v128 = vld [vmem:[%s12 + $0x68] sm:$0xff]
    %v129 = vld [vmem:[%s12 + $0x70] sm:$0xff]
    %v130 = vld [vmem:[%s12 + $0x78] sm:$0xff]
    %v131 = vld [vmem:[%s13] sm:$0x1]
    %vm132 = vcmask 261120
    %v133 = vsel %vm132, %v91, 0.0
    %134 = vadd.xlane.f32.xlu0 %v133
    %v135 = vpop.xlane.xlu0 %134
    %v136 = vsel %vm132, %v92, 0.0
    %137 = vadd.xlane.f32.xlu0 %v136
    %v138 = vpop.xlane.xlu0 %137
    %v139 = vsel %vm132, %v93, 0.0
    %140 = vadd.xlane.f32.xlu0 %v139
    %v141 = vpop.xlane.xlu0 %140
    %v142 = vsel %vm132, %v94, 0.0
    %143 = vadd.xlane.f32.xlu0 %v142
    %v144 = vpop.xlane.xlu0 %143
    %vm145 = vcmask 254976
    %v146 = vsel %vm145, %v95, 0.0
    %147 = vadd.xlane.f32.xlu0 %v146
    %v148 = vpop.xlane.xlu0 %147
    %v149 = vrcp.pop 32.0
    %v150 = vmul.f32 32.0, %v149
    %v151 = vsub.f32 1.0, %v150
    %v152 = vmul.f32 %v149, %v151
    %v153 = vadd.f32 %v149, %v152
    %vm154 = vweird.f32 %v149
    %v155 = vsel %vm154, %v149, %v153
    %v156 = vmul.f32 %v135, %v155
    %v157 = vmul.f32 %v138, %v155
    %v158 = vmul.f32 %v141, %v155
    %v159 = vmul.f32 %v144, %v155
    %v160 = vmul.f32 %v148, %v155
    %v161 = vsub.f32 %v91, %v156
    %v162 = vsub.f32 %v92, %v157
    %v163 = vsub.f32 %v93, %v158
    %v164 = vsub.f32 %v94, %v159
    %v165 = vsub.f32 %v95, %v160
    %v166 = vmul.f32 %v161, %v161
    %v167 = vmul.f32 %v162, %v162
    %v168 = vmul.f32 %v163, %v163
    %v169 = vmul.f32 %v164, %v164
    %v170 = vmul.f32 %v165, %v165
    %v171 = vsel %vm132, %v166, 0.0
    %172 = vadd.xlane.f32.xlu0 %v171
    %v173 = vpop.xlane.xlu0 %172
    %v174 = vsel %vm132, %v167, 0.0
    %175 = vadd.xlane.f32.xlu0 %v174
    %v176 = vpop.xlane.xlu0 %175
    %v177 = vsel %vm132, %v168, 0.0
    %178 = vadd.xlane.f32.xlu0 %v177
    %v179 = vpop.xlane.xlu0 %178
    %v180 = vsel %vm132, %v169, 0.0
    %181 = vadd.xlane.f32.xlu0 %v180
    %v182 = vpop.xlane.xlu0 %181
    %v183 = vsel %vm145, %v170, 0.0
    %184 = vadd.xlane.f32.xlu0 %v183
    %v185 = vpop.xlane.xlu0 %184
    %v186 = vmul.f32 %v173, %v155
    %v187 = vmul.f32 %v176, %v155
    %v188 = vmul.f32 %v179, %v155
    %v189 = vmul.f32 %v182, %v155
    %v190 = vmul.f32 %v185, %v155
    %v191 = vadd.f32 %v186, 1e-05
    %v192 = vadd.f32 %v187, 1e-05
    %v193 = vadd.f32 %v188, 1e-05
    %v194 = vadd.f32 %v189, 1e-05
    %v195 = vadd.f32 %v190, 1e-05
    %v196 = vrsqrt.pop %v191
    %v197 = vmul.f32 %v196, %v191
    %v198 = vmul.f32 %v197, %v196
    %v199 = vmul.f32 0.5, %v198
    %v200 = vsub.f32 1.5, %v199
    %v201 = vmul.f32 %v196, %v200
    %vm202 = vweird.f32 %v191
    %vm203 = vweird.f32 %v196
    %vm204 = vmor %vm202, %vm203
    %v205 = vsel %vm204, %v196, %v201
    %v206 = vrsqrt.pop %v192
    %v207 = vmul.f32 %v206, %v192
    %v208 = vmul.f32 %v207, %v206
    %v209 = vmul.f32 0.5, %v208
    %v210 = vsub.f32 1.5, %v209
    %v211 = vmul.f32 %v206, %v210
    %vm212 = vweird.f32 %v192
    %vm213 = vweird.f32 %v206
    %vm214 = vmor %vm212, %vm213
    %v215 = vsel %vm214, %v206, %v211
    %v216 = vrsqrt.pop %v193
    %v217 = vmul.f32 %v216, %v193
    %v218 = vmul.f32 %v217, %v216
    %v219 = vmul.f32 0.5, %v218
    %v220 = vsub.f32 1.5, %v219
    %v221 = vmul.f32 %v216, %v220
    %vm222 = vweird.f32 %v193
    %vm223 = vweird.f32 %v216
    %vm224 = vmor %vm222, %vm223
    %v225 = vsel %vm224, %v216, %v221
    %v226 = vrsqrt.pop %v194
    %v227 = vmul.f32 %v226, %v194
    %v228 = vmul.f32 %v227, %v226
    %v229 = vmul.f32 0.5, %v228
    %v230 = vsub.f32 1.5, %v229
    %v231 = vmul.f32 %v226, %v230
    %vm232 = vweird.f32 %v194
    %vm233 = vweird.f32 %v226
    %vm234 = vmor %vm232, %vm233
    %v235 = vsel %vm234, %v226, %v231
    %v236 = vrsqrt.pop %v195
    %v237 = vmul.f32 %v236, %v195
    %v238 = vmul.f32 %v237, %v236
    %v239 = vmul.f32 0.5, %v238
    %v240 = vsub.f32 1.5, %v239
    %v241 = vmul.f32 %v236, %v240
    %vm242 = vweird.f32 %v195
    %vm243 = vweird.f32 %v236
    %vm244 = vmor %vm242, %vm243
    %v245 = vsel %vm244, %v236, %v241
    %v246 = vmul.f32 %v161, %v205
    %v247 = vmul.f32 %v162, %v215
    %v248 = vmul.f32 %v163, %v225
    %v249 = vmul.f32 %v164, %v235
    %v250 = vmul.f32 %v165, %v245
    %v252 = vperm.slane %v96, 0
    %v254 = vmul.f32 %v246, %v252
    %v255 = vmul.f32 %v247, %v252
    %v256 = vmul.f32 %v248, %v252
    %v257 = vmul.f32 %v249, %v252
    %v258 = vmul.f32 %v250, %v252
    %v260 = vperm.slane %v97, 0
    %v262 = vadd.f32 %v254, %v260
    %v263 = vadd.f32 %v255, %v260
    %v264 = vadd.f32 %v256, %v260
    %v265 = vadd.f32 %v257, %v260
    %v266 = vadd.f32 %v258, %v260
    %v268 = vperm.slane %v102, 0
    %v271 = vsel %vm132, %v262, 0
    %v274 = vsel %vm132, %v263, 0
    %v277 = vsel %vm132, %v264, 0
    %v280 = vsel %vm132, %v265, 0
    %v283 = vsel %vm132, %v266, 0
    %285 = vmatpush.msra.mxu0 0.0
    %286 = vmatpush.msra.mxu0 0.0
    %287 = vmatpush.msra.mxu0 0.0
    %288 = vmatpush.msra.mxu0 0.0
    %289 = vmatpush.msra.mxu0 0.0
    %290 = vmatpush.msra.mxu0 0.0
    %291 = vmatpush.msra.mxu0 0.0
    %292 = vmatpush.msra.mxu0 0.0
    %293 = vmatpush.msra.mxu0 0.0
    %294 = vmatpush.msra.mxu0 0.0
    %295 = vmatpush.msra.mxu0 0.0
    %296 = vmatpush.msra.mxu0 0.0
    %297 = vmatpush.msra.mxu0 %v101
    %298 = vmatpush.msra.mxu0 %v100
    %299 = vmatpush.msra.mxu0 %v99
    %300 = vmatpush.msra.mxu0 %v98
    %301 = vmatmul.f32.gmra.mxu0 %v271
    %v302 = vpop.f32.mrf.mxu0
    %v303 = vadd.f32 %v268, %v302
    %304 = vmatmul.f32.gmra.mxu0 %v274
    %v305 = vpop.f32.mrf.mxu0
    %v306 = vadd.f32 %v268, %v305
    %307 = vmatmul.f32.gmra.mxu0 %v277
    %v308 = vpop.f32.mrf.mxu0
    %v309 = vadd.f32 %v268, %v308
    %310 = vmatmul.f32.gmra.mxu0 %v280
    %v311 = vpop.f32.mrf.mxu0
    %v312 = vadd.f32 %v268, %v311
    %313 = vmatmul.f32.gmra.mxu0 %v283
    %v314 = vpop.f32.mrf.mxu0
    %v315 = vadd.f32 %v268, %v314
    %316 = vdwg.mxu0
    %320 = vrot.lane.b32.xlu0 %v303, 96
    %v321 = vpop.permute.xlu0 %320
    %322 = vrot.lane.b32.xlu0 %v306, 96
    %v323 = vpop.permute.xlu0 %322
    %324 = vrot.lane.b32.xlu0 %v309, 96
    %v325 = vpop.permute.xlu0 %324
    %vm326 = vcmask 64512
    %v327 = vsel %vm326, %v303, 0
    %v329 = vsel %vm326, %v306, 0
    %v331 = vsel %vm326, %v309, 0
    %v333 = vsel %vm326, %v321, 0
    %v335 = vsel %vm326, %v323, 0
    %v337 = vsel %vm326, %v325, 0
    %339 = vmatpush.xpose.msra.mxu0 0.0
    %340 = vmatpush.xpose.msra.mxu0 0.0
    %341 = vmatpush.xpose.msra.mxu0 0.0
    %342 = vmatpush.xpose.msra.mxu0 0.0
    %343 = vmatpush.xpose.msra.mxu0 0.0
    %344 = vmatpush.xpose.msra.mxu0 0.0
    %345 = vmatpush.xpose.msra.mxu0 0.0
    %346 = vmatpush.xpose.msra.mxu0 0.0
    %347 = vmatpush.xpose.msra.mxu0 0.0
    %348 = vmatpush.xpose.msra.mxu0 0.0
    %349 = vmatpush.xpose.msra.mxu0 0.0
    %350 = vmatpush.xpose.msra.mxu0 0.0
    %351 = vmatpush.xpose.msra.mxu0 0.0
    %352 = vmatpush.xpose.msra.mxu0 %v337
    %353 = vmatpush.xpose.msra.mxu0 %v335
    %354 = vmatpush.xpose.msra.mxu0 %v333
    %355 = vmatmul.f32.gmra.mxu0 %v327
    %v356 = vpop.f32.mrf.mxu0
    %v357 = vadd.f32 0.0, %v356
    %358 = vmatmul.f32.gmra.mxu0 %v329
    %v359 = vpop.f32.mrf.mxu0
    %v360 = vadd.f32 0.0, %v359
    %361 = vmatmul.f32.gmra.mxu0 %v331
    %v362 = vpop.f32.mrf.mxu0
    %v363 = vadd.f32 0.0, %v362
    %364 = vdwg.mxu0
    %v365 = vmul.f32 %v357, 0.35355338
    %v366 = vmul.f32 %v360, 0.35355338
    %v367 = vmul.f32 %v363, 0.35355338
    %vm368 = vcmask 138240
    %v369 = vsel %vm368, %v365, -inf
    %370 = vmax.xlane.f32.xlu0 %v369
    %v371 = vpop.xlane.xlu0 %370
    %v372 = vsel %vm368, %v366, -inf
    %373 = vmax.xlane.f32.xlu0 %v372
    %v374 = vpop.xlane.xlu0 %373
    %vm375 = vcmask 131072
    %v376 = vsel %vm375, %v367, -inf
    %377 = vmax.xlane.f32.xlu0 %v376
    %v378 = vpop.xlane.xlu0 %377
    %v379 = vsub.f32 %v365, %v371
    %v380 = vsub.f32 %v366, %v374
    %v381 = vsub.f32 %v367, %v378
    %v382 = vmul.f32 %v379, 1.442695
    %v383 = vpow.pop %v382
    %v384 = vmul.f32 %v380, 1.442695
    %v385 = vpow.pop %v384
    %v386 = vmul.f32 %v381, 1.442695
    %v387 = vpow.pop %v386
    %v388 = vsel %vm368, %v383, 0.0
    %389 = vadd.xlane.f32.xlu0 %v388
    %v390 = vpop.xlane.xlu0 %389
    %v391 = vsel %vm368, %v385, 0.0
    %392 = vadd.xlane.f32.xlu0 %v391
    %v393 = vpop.xlane.xlu0 %392
    %v394 = vsel %vm375, %v387, 0.0
    %395 = vadd.xlane.f32.xlu0 %v394
    %v396 = vpop.xlane.xlu0 %395
    %v397 = vrcp.pop %v390
    %v398 = vmul.f32 %v390, %v397
    %v399 = vsub.f32 1.0, %v398
    %v400 = vmul.f32 %v397, %v399
    %v401 = vadd.f32 %v397, %v400
    %vm402 = vweird.f32 %v390
    %vm403 = vweird.f32 %v397
    %vm404 = vmor %vm402, %vm403
    %v405 = vsel %vm404, %v397, %v401
    %v406 = vand.u32 2147483647, %v390
    %vm407 = vcmp.eq.f32.partialorder %v406, 8.507059e+37
    %v408 = vand.u32 %v390, 2147483648
    %v409 = vor.u32 1.1754944e-38, %v408
    %v410 = vsel %vm407, %v409, %v405
    %v411 = vmul.f32 %v383, %v410
    %v412 = vrcp.pop %v393
    %v413 = vmul.f32 %v393, %v412
    %v414 = vsub.f32 1.0, %v413
    %v415 = vmul.f32 %v412, %v414
    %v416 = vadd.f32 %v412, %v415
    %vm417 = vweird.f32 %v393
    %vm418 = vweird.f32 %v412
    %vm419 = vmor %vm417, %vm418
    %v420 = vsel %vm419, %v412, %v416
    %v421 = vand.u32 2147483647, %v393
    %vm422 = vcmp.eq.f32.partialorder %v421, 8.507059e+37
    %v423 = vand.u32 %v393, 2147483648
    %v424 = vor.u32 1.1754944e-38, %v423
    %v425 = vsel %vm422, %v424, %v420
    %v426 = vmul.f32 %v385, %v425
    %v427 = vrcp.pop %v396
    %v428 = vmul.f32 %v396, %v427
    %v429 = vsub.f32 1.0, %v428
    %v430 = vmul.f32 %v427, %v429
    %v431 = vadd.f32 %v427, %v430
    %vm432 = vweird.f32 %v396
    %vm433 = vweird.f32 %v427
    %vm434 = vmor %vm432, %vm433
    %v435 = vsel %vm434, %v427, %v431
    %v436 = vand.u32 2147483647, %v396
    %vm437 = vcmp.eq.f32.partialorder %v436, 8.507059e+37
    %v438 = vand.u32 %v396, 2147483648
    %v439 = vor.u32 1.1754944e-38, %v438
    %v440 = vsel %vm437, %v439, %v435
    %v441 = vmul.f32 %v387, %v440
    %442 = vrot.lane.b32.xlu0 %v303, 64
    %v443 = vpop.permute.xlu0 %442
    %444 = vrot.lane.b32.xlu0 %v306, 64
    %v445 = vpop.permute.xlu0 %444
    %446 = vrot.lane.b32.xlu0 %v309, 64
    %v447 = vpop.permute.xlu0 %446
    %v451 = vsel %vm368, %v411, 0
    %v454 = vsel %vm368, %v426, 0
    %v457 = vsel %vm368, %v441, 0
    %v459 = vsel %vm76, %v447, 0
    %461 = vmatpush.msra.mxu0 0.0
    %462 = vmatpush.msra.mxu0 0.0
    %463 = vmatpush.msra.mxu0 0.0
    %464 = vmatpush.msra.mxu0 0.0
    %465 = vmatpush.msra.mxu0 0.0
    %466 = vmatpush.msra.mxu0 0.0
    %467 = vmatpush.msra.mxu0 0.0
    %468 = vmatpush.msra.mxu0 0.0
    %469 = vmatpush.msra.mxu0 0.0
    %470 = vmatpush.msra.mxu0 0.0
    %471 = vmatpush.msra.mxu0 0.0
    %472 = vmatpush.msra.mxu0 0.0
    %473 = vmatpush.msra.mxu0 0.0
    %474 = vmatpush.msra.mxu0 %v459
    %475 = vmatpush.msra.mxu0 %v445
    %476 = vmatpush.msra.mxu0 %v443
    %477 = vmatmul.f32.gmra.mxu0 %v451
    %v478 = vpop.f32.mrf.mxu0
    %v479 = vadd.f32 0.0, %v478
    %480 = vmatmul.f32.gmra.mxu0 %v454
    %v481 = vpop.f32.mrf.mxu0
    %v482 = vadd.f32 0.0, %v481
    %483 = vmatmul.f32.gmra.mxu0 %v457
    %v484 = vpop.f32.mrf.mxu0
    %v485 = vadd.f32 0.0, %v484
    %486 = vdwg.mxu0
    %487 = vrot.lane.b32.xlu0 %v303, 120
    %v488 = vpop.permute.xlu0 %487
    %489 = vrot.lane.b32.xlu0 %v306, 120
    %v490 = vpop.permute.xlu0 %489
    %491 = vrot.lane.b32.xlu0 %v309, 120
    %v492 = vpop.permute.xlu0 %491
    %493 = vrot.lane.b32.xlu0 %v303, 88
    %v494 = vpop.permute.xlu0 %493
    %495 = vrot.lane.b32.xlu0 %v306, 88
    %v496 = vpop.permute.xlu0 %495
    %497 = vrot.lane.b32.xlu0 %v309, 88
    %v498 = vpop.permute.xlu0 %497
    %v499 = vsel %vm326, %v488, 0
    %v501 = vsel %vm326, %v490, 0
    %v503 = vsel %vm326, %v492, 0
    %v505 = vsel %vm326, %v494, 0
    %v507 = vsel %vm326, %v496, 0
    %v509 = vsel %vm326, %v498, 0
    %511 = vmatpush.xpose.msra.mxu0 0.0
    %512 = vmatpush.xpose.msra.mxu0 0.0
    %513 = vmatpush.xpose.msra.mxu0 0.0
    %514 = vmatpush.xpose.msra.mxu0 0.0
    %515 = vmatpush.xpose.msra.mxu0 0.0
    %516 = vmatpush.xpose.msra.mxu0 0.0
    %517 = vmatpush.xpose.msra.mxu0 0.0
    %518 = vmatpush.xpose.msra.mxu0 0.0
    %519 = vmatpush.xpose.msra.mxu0 0.0
    %520 = vmatpush.xpose.msra.mxu0 0.0
    %521 = vmatpush.xpose.msra.mxu0 0.0
    %522 = vmatpush.xpose.msra.mxu0 0.0
    %523 = vmatpush.xpose.msra.mxu0 0.0
    %524 = vmatpush.xpose.msra.mxu0 %v509
    %525 = vmatpush.xpose.msra.mxu0 %v507
    %526 = vmatpush.xpose.msra.mxu0 %v505
    %527 = vmatmul.f32.gmra.mxu0 %v499
    %v528 = vpop.f32.mrf.mxu0
    %v529 = vadd.f32 0.0, %v528
    %530 = vmatmul.f32.gmra.mxu0 %v501
    %v531 = vpop.f32.mrf.mxu0
    %v532 = vadd.f32 0.0, %v531
    %533 = vmatmul.f32.gmra.mxu0 %v503
    %v534 = vpop.f32.mrf.mxu0
    %v535 = vadd.f32 0.0, %v534
    %536 = vdwg.mxu0
    %v537 = vmul.f32 %v529, 0.35355338
    %v538 = vmul.f32 %v532, 0.35355338
    %v539 = vmul.f32 %v535, 0.35355338
    %v540 = vsel %vm368, %v537, -inf
    %541 = vmax.xlane.f32.xlu0 %v540
    %v542 = vpop.xlane.xlu0 %541
    %v543 = vsel %vm368, %v538, -inf
    %544 = vmax.xlane.f32.xlu0 %v543
    %v545 = vpop.xlane.xlu0 %544
    %v546 = vsel %vm375, %v539, -inf
    %547 = vmax.xlane.f32.xlu0 %v546
    %v548 = vpop.xlane.xlu0 %547
    %v549 = vsub.f32 %v537, %v542
    %v550 = vsub.f32 %v538, %v545
    %v551 = vsub.f32 %v539, %v548
    %v552 = vmul.f32 %v549, 1.442695
    %v553 = vpow.pop %v552
    %v554 = vmul.f32 %v550, 1.442695
    %v555 = vpow.pop %v554
    %v556 = vmul.f32 %v551, 1.442695
    %v557 = vpow.pop %v556
    %v558 = vsel %vm368, %v553, 0.0
    %559 = vadd.xlane.f32.xlu0 %v558
    %v560 = vpop.xlane.xlu0 %559
    %v561 = vsel %vm368, %v555, 0.0
    %562 = vadd.xlane.f32.xlu0 %v561
    %v563 = vpop.xlane.xlu0 %562
    %v564 = vsel %vm375, %v557, 0.0
    %565 = vadd.xlane.f32.xlu0 %v564
    %v566 = vpop.xlane.xlu0 %565
    %v567 = vrcp.pop %v560
    %v568 = vmul.f32 %v560, %v567
    %v569 = vsub.f32 1.0, %v568
    %v570 = vmul.f32 %v567, %v569
    %v571 = vadd.f32 %v567, %v570
    %vm572 = vweird.f32 %v560
    %vm573 = vweird.f32 %v567
    %vm574 = vmor %vm572, %vm573
    %v575 = vsel %vm574, %v567, %v571
    %v576 = vand.u32 2147483647, %v560
    %vm577 = vcmp.eq.f32.partialorder %v576, 8.507059e+37
    %v578 = vand.u32 %v560, 2147483648
    %v579 = vor.u32 1.1754944e-38, %v578
    %v580 = vsel %vm577, %v579, %v575
    %v581 = vmul.f32 %v553, %v580
    %v582 = vrcp.pop %v563
    %v583 = vmul.f32 %v563, %v582
    %v584 = vsub.f32 1.0, %v583
    %v585 = vmul.f32 %v582, %v584
    %v586 = vadd.f32 %v582, %v585
    %vm587 = vweird.f32 %v563
    %vm588 = vweird.f32 %v582
    %vm589 = vmor %vm587, %vm588
    %v590 = vsel %vm589, %v582, %v586
    %v591 = vand.u32 2147483647, %v563
    %vm592 = vcmp.eq.f32.partialorder %v591, 8.507059e+37
    %v593 = vand.u32 %v563, 2147483648
    %v594 = vor.u32 1.1754944e-38, %v593
    %v595 = vsel %vm592, %v594, %v590
    %v596 = vmul.f32 %v555, %v595
    %v597 = vrcp.pop %v566
    %v598 = vmul.f32 %v566, %v597
    %v599 = vsub.f32 1.0, %v598
    %v600 = vmul.f32 %v597, %v599
    %v601 = vadd.f32 %v597, %v600
    %vm602 = vweird.f32 %v566
    %vm603 = vweird.f32 %v597
    %vm604 = vmor %vm602, %vm603
    %v605 = vsel %vm604, %v597, %v601
    %v606 = vand.u32 2147483647, %v566
    %vm607 = vcmp.eq.f32.partialorder %v606, 8.507059e+37
    %v608 = vand.u32 %v566, 2147483648
    %v609 = vor.u32 1.1754944e-38, %v608
    %v610 = vsel %vm607, %v609, %v605
    %v611 = vmul.f32 %v557, %v610
    %612 = vrot.lane.b32.xlu0 %v303, 56
    %v613 = vpop.permute.xlu0 %612
    %614 = vrot.lane.b32.xlu0 %v306, 56
    %v615 = vpop.permute.xlu0 %614
    %616 = vrot.lane.b32.xlu0 %v309, 56
    %v617 = vpop.permute.xlu0 %616
    %v621 = vsel %vm368, %v581, 0
    %v624 = vsel %vm368, %v596, 0
    %v627 = vsel %vm368, %v611, 0
    %v629 = vsel %vm76, %v617, 0
    %631 = vmatpush.msra.mxu0 0.0
    %632 = vmatpush.msra.mxu0 0.0
    %633 = vmatpush.msra.mxu0 0.0
    %634 = vmatpush.msra.mxu0 0.0
    %635 = vmatpush.msra.mxu0 0.0
    %636 = vmatpush.msra.mxu0 0.0
    %637 = vmatpush.msra.mxu0 0.0
    %638 = vmatpush.msra.mxu0 0.0
    %639 = vmatpush.msra.mxu0 0.0
    %640 = vmatpush.msra.mxu0 0.0
    %641 = vmatpush.msra.mxu0 0.0
    %642 = vmatpush.msra.mxu0 0.0
    %643 = vmatpush.msra.mxu0 0.0
    %644 = vmatpush.msra.mxu0 %v629
    %645 = vmatpush.msra.mxu0 %v615
    %646 = vmatpush.msra.mxu0 %v613
    %647 = vmatmul.f32.gmra.mxu0 %v621
    %v648 = vpop.f32.mrf.mxu0
    %v649 = vadd.f32 0.0, %v648
    %650 = vmatmul.f32.gmra.mxu0 %v624
    %v651 = vpop.f32.mrf.mxu0
    %v652 = vadd.f32 0.0, %v651
    %653 = vmatmul.f32.gmra.mxu0 %v627
    %v654 = vpop.f32.mrf.mxu0
    %v655 = vadd.f32 0.0, %v654
    %656 = vdwg.mxu0
    %657 = vrot.lane.b32.xlu0 %v303, 112
    %v658 = vpop.permute.xlu0 %657
    %659 = vrot.lane.b32.xlu0 %v306, 112
    %v660 = vpop.permute.xlu0 %659
    %661 = vrot.lane.b32.xlu0 %v309, 112
    %v662 = vpop.permute.xlu0 %661
    %663 = vrot.lane.b32.xlu0 %v303, 80
    %v664 = vpop.permute.xlu0 %663
    %665 = vrot.lane.b32.xlu0 %v306, 80
    %v666 = vpop.permute.xlu0 %665
    %667 = vrot.lane.b32.xlu0 %v309, 80
    %v668 = vpop.permute.xlu0 %667
    %v669 = vsel %vm326, %v658, 0
    %v671 = vsel %vm326, %v660, 0
    %v673 = vsel %vm326, %v662, 0
    %v675 = vsel %vm326, %v664, 0
    %v677 = vsel %vm326, %v666, 0
    %v679 = vsel %vm326, %v668, 0
    %681 = vmatpush.xpose.msra.mxu0 0.0
    %682 = vmatpush.xpose.msra.mxu0 0.0
    %683 = vmatpush.xpose.msra.mxu0 0.0
    %684 = vmatpush.xpose.msra.mxu0 0.0
    %685 = vmatpush.xpose.msra.mxu0 0.0
    %686 = vmatpush.xpose.msra.mxu0 0.0
    %687 = vmatpush.xpose.msra.mxu0 0.0
    %688 = vmatpush.xpose.msra.mxu0 0.0
    %689 = vmatpush.xpose.msra.mxu0 0.0
    %690 = vmatpush.xpose.msra.mxu0 0.0
    %691 = vmatpush.xpose.msra.mxu0 0.0
    %692 = vmatpush.xpose.msra.mxu0 0.0
    %693 = vmatpush.xpose.msra.mxu0 0.0
    %694 = vmatpush.xpose.msra.mxu0 %v679
    %695 = vmatpush.xpose.msra.mxu0 %v677
    %696 = vmatpush.xpose.msra.mxu0 %v675
    %697 = vmatmul.f32.gmra.mxu0 %v669
    %v698 = vpop.f32.mrf.mxu0
    %v699 = vadd.f32 0.0, %v698
    %700 = vmatmul.f32.gmra.mxu0 %v671
    %v701 = vpop.f32.mrf.mxu0
    %v702 = vadd.f32 0.0, %v701
    %703 = vmatmul.f32.gmra.mxu0 %v673
    %v704 = vpop.f32.mrf.mxu0
    %v705 = vadd.f32 0.0, %v704
    %706 = vdwg.mxu0
    %v707 = vmul.f32 %v699, 0.35355338
    %v708 = vmul.f32 %v702, 0.35355338
    %v709 = vmul.f32 %v705, 0.35355338
    %v710 = vsel %vm368, %v707, -inf
    %711 = vmax.xlane.f32.xlu0 %v710
    %v712 = vpop.xlane.xlu0 %711
    %v713 = vsel %vm368, %v708, -inf
    %714 = vmax.xlane.f32.xlu0 %v713
    %v715 = vpop.xlane.xlu0 %714
    %v716 = vsel %vm375, %v709, -inf
    %717 = vmax.xlane.f32.xlu0 %v716
    %v718 = vpop.xlane.xlu0 %717
    %v719 = vsub.f32 %v707, %v712
    %v720 = vsub.f32 %v708, %v715
    %v721 = vsub.f32 %v709, %v718
    %v722 = vmul.f32 %v719, 1.442695
    %v723 = vpow.pop %v722
    %v724 = vmul.f32 %v720, 1.442695
    %v725 = vpow.pop %v724
    %v726 = vmul.f32 %v721, 1.442695
    %v727 = vpow.pop %v726
    %v728 = vsel %vm368, %v723, 0.0
    %729 = vadd.xlane.f32.xlu0 %v728
    %v730 = vpop.xlane.xlu0 %729
    %v731 = vsel %vm368, %v725, 0.0
    %732 = vadd.xlane.f32.xlu0 %v731
    %v733 = vpop.xlane.xlu0 %732
    %v734 = vsel %vm375, %v727, 0.0
    %735 = vadd.xlane.f32.xlu0 %v734
    %v736 = vpop.xlane.xlu0 %735
    %v737 = vrcp.pop %v730
    %v738 = vmul.f32 %v730, %v737
    %v739 = vsub.f32 1.0, %v738
    %v740 = vmul.f32 %v737, %v739
    %v741 = vadd.f32 %v737, %v740
    %vm742 = vweird.f32 %v730
    %vm743 = vweird.f32 %v737
    %vm744 = vmor %vm742, %vm743
    %v745 = vsel %vm744, %v737, %v741
    %v746 = vand.u32 2147483647, %v730
    %vm747 = vcmp.eq.f32.partialorder %v746, 8.507059e+37
    %v748 = vand.u32 %v730, 2147483648
    %v749 = vor.u32 1.1754944e-38, %v748
    %v750 = vsel %vm747, %v749, %v745
    %v751 = vmul.f32 %v723, %v750
    %v752 = vrcp.pop %v733
    %v753 = vmul.f32 %v733, %v752
    %v754 = vsub.f32 1.0, %v753
    %v755 = vmul.f32 %v752, %v754
    %v756 = vadd.f32 %v752, %v755
    %vm757 = vweird.f32 %v733
    %vm758 = vweird.f32 %v752
    %vm759 = vmor %vm757, %vm758
    %v760 = vsel %vm759, %v752, %v756
    %v761 = vand.u32 2147483647, %v733
    %vm762 = vcmp.eq.f32.partialorder %v761, 8.507059e+37
    %v763 = vand.u32 %v733, 2147483648
    %v764 = vor.u32 1.1754944e-38, %v763
    %v765 = vsel %vm762, %v764, %v760
    %v766 = vmul.f32 %v725, %v765
    %v767 = vrcp.pop %v736
    %v768 = vmul.f32 %v736, %v767
    %v769 = vsub.f32 1.0, %v768
    %v770 = vmul.f32 %v767, %v769
    %v771 = vadd.f32 %v767, %v770
    %vm772 = vweird.f32 %v736
    %vm773 = vweird.f32 %v767
    %vm774 = vmor %vm772, %vm773
    %v775 = vsel %vm774, %v767, %v771
    %v776 = vand.u32 2147483647, %v736
    %vm777 = vcmp.eq.f32.partialorder %v776, 8.507059e+37
    %v778 = vand.u32 %v736, 2147483648
    %v779 = vor.u32 1.1754944e-38, %v778
    %v780 = vsel %vm777, %v779, %v775
    %v781 = vmul.f32 %v727, %v780
    %782 = vrot.lane.b32.xlu0 %v303, 48
    %v783 = vpop.permute.xlu0 %782
    %784 = vrot.lane.b32.xlu0 %v306, 48
    %v785 = vpop.permute.xlu0 %784
    %786 = vrot.lane.b32.xlu0 %v309, 48
    %v787 = vpop.permute.xlu0 %786
    %v791 = vsel %vm368, %v751, 0
    %v794 = vsel %vm368, %v766, 0
    %v797 = vsel %vm368, %v781, 0
    %v799 = vsel %vm76, %v787, 0
    %801 = vmatpush.msra.mxu0 0.0
    %802 = vmatpush.msra.mxu0 0.0
    %803 = vmatpush.msra.mxu0 0.0
    %804 = vmatpush.msra.mxu0 0.0
    %805 = vmatpush.msra.mxu0 0.0
    %806 = vmatpush.msra.mxu0 0.0
    %807 = vmatpush.msra.mxu0 0.0
    %808 = vmatpush.msra.mxu0 0.0
    %809 = vmatpush.msra.mxu0 0.0
    %810 = vmatpush.msra.mxu0 0.0
    %811 = vmatpush.msra.mxu0 0.0
    %812 = vmatpush.msra.mxu0 0.0
    %813 = vmatpush.msra.mxu0 0.0
    %814 = vmatpush.msra.mxu0 %v799
    %815 = vmatpush.msra.mxu0 %v785
    %816 = vmatpush.msra.mxu0 %v783
    %817 = vmatmul.f32.gmra.mxu0 %v791
    %v818 = vpop.f32.mrf.mxu0
    %v819 = vadd.f32 0.0, %v818
    %820 = vmatmul.f32.gmra.mxu0 %v794
    %v821 = vpop.f32.mrf.mxu0
    %v822 = vadd.f32 0.0, %v821
    %823 = vmatmul.f32.gmra.mxu0 %v797
    %v824 = vpop.f32.mrf.mxu0
    %v825 = vadd.f32 0.0, %v824
    %826 = vdwg.mxu0
    %827 = vrot.lane.b32.xlu0 %v303, 104
    %v828 = vpop.permute.xlu0 %827
    %829 = vrot.lane.b32.xlu0 %v306, 104
    %v830 = vpop.permute.xlu0 %829
    %831 = vrot.lane.b32.xlu0 %v309, 104
    %v832 = vpop.permute.xlu0 %831
    %833 = vrot.lane.b32.xlu0 %v303, 72
    %v834 = vpop.permute.xlu0 %833
    %835 = vrot.lane.b32.xlu0 %v306, 72
    %v836 = vpop.permute.xlu0 %835
    %837 = vrot.lane.b32.xlu0 %v309, 72
    %v838 = vpop.permute.xlu0 %837
    %v839 = vsel %vm326, %v828, 0
    %v841 = vsel %vm326, %v830, 0
    %v843 = vsel %vm326, %v832, 0
    %v845 = vsel %vm326, %v834, 0
    %v847 = vsel %vm326, %v836, 0
    %v849 = vsel %vm326, %v838, 0
    %851 = vmatpush.xpose.msra.mxu0 0.0
    %852 = vmatpush.xpose.msra.mxu0 0.0
    %853 = vmatpush.xpose.msra.mxu0 0.0
    %854 = vmatpush.xpose.msra.mxu0 0.0
    %855 = vmatpush.xpose.msra.mxu0 0.0
    %856 = vmatpush.xpose.msra.mxu0 0.0
    %857 = vmatpush.xpose.msra.mxu0 0.0
    %858 = vmatpush.xpose.msra.mxu0 0.0
    %859 = vmatpush.xpose.msra.mxu0 0.0
    %860 = vmatpush.xpose.msra.mxu0 0.0
    %861 = vmatpush.xpose.msra.mxu0 0.0
    %862 = vmatpush.xpose.msra.mxu0 0.0
    %863 = vmatpush.xpose.msra.mxu0 0.0
    %864 = vmatpush.xpose.msra.mxu0 %v849
    %865 = vmatpush.xpose.msra.mxu0 %v847
    %866 = vmatpush.xpose.msra.mxu0 %v845
    %867 = vmatmul.f32.gmra.mxu0 %v839
    %v868 = vpop.f32.mrf.mxu0
    %v869 = vadd.f32 0.0, %v868
    %870 = vmatmul.f32.gmra.mxu0 %v841
    %v871 = vpop.f32.mrf.mxu0
    %v872 = vadd.f32 0.0, %v871
    %873 = vmatmul.f32.gmra.mxu0 %v843
    %v874 = vpop.f32.mrf.mxu0
    %v875 = vadd.f32 0.0, %v874
    %876 = vdwg.mxu0
    %v877 = vmul.f32 %v869, 0.35355338
    %v878 = vmul.f32 %v872, 0.35355338
    %v879 = vmul.f32 %v875, 0.35355338
    %v880 = vsel %vm368, %v877, -inf
    %881 = vmax.xlane.f32.xlu0 %v880
    %v882 = vpop.xlane.xlu0 %881
    %v883 = vsel %vm368, %v878, -inf
    %884 = vmax.xlane.f32.xlu0 %v883
    %v885 = vpop.xlane.xlu0 %884
    %v886 = vsel %vm375, %v879, -inf
    %887 = vmax.xlane.f32.xlu0 %v886
    %v888 = vpop.xlane.xlu0 %887
    %v889 = vsub.f32 %v877, %v882
    %v890 = vsub.f32 %v878, %v885
    %v891 = vsub.f32 %v879, %v888
    %v892 = vmul.f32 %v889, 1.442695
    %v893 = vpow.pop %v892
    %v894 = vmul.f32 %v890, 1.442695
    %v895 = vpow.pop %v894
    %v896 = vmul.f32 %v891, 1.442695
    %v897 = vpow.pop %v896
    %v898 = vsel %vm368, %v893, 0.0
    %899 = vadd.xlane.f32.xlu0 %v898
    %v900 = vpop.xlane.xlu0 %899
    %v901 = vsel %vm368, %v895, 0.0
    %902 = vadd.xlane.f32.xlu0 %v901
    %v903 = vpop.xlane.xlu0 %902
    %v904 = vsel %vm375, %v897, 0.0
    %905 = vadd.xlane.f32.xlu0 %v904
    %v906 = vpop.xlane.xlu0 %905
    %v907 = vrcp.pop %v900
    %v908 = vmul.f32 %v900, %v907
    %v909 = vsub.f32 1.0, %v908
    %v910 = vmul.f32 %v907, %v909
    %v911 = vadd.f32 %v907, %v910
    %vm912 = vweird.f32 %v900
    %vm913 = vweird.f32 %v907
    %vm914 = vmor %vm912, %vm913
    %v915 = vsel %vm914, %v907, %v911
    %v916 = vand.u32 2147483647, %v900
    %vm917 = vcmp.eq.f32.partialorder %v916, 8.507059e+37
    %v918 = vand.u32 %v900, 2147483648
    %v919 = vor.u32 1.1754944e-38, %v918
    %v920 = vsel %vm917, %v919, %v915
    %v921 = vmul.f32 %v893, %v920
    %v922 = vrcp.pop %v903
    %v923 = vmul.f32 %v903, %v922
    %v924 = vsub.f32 1.0, %v923
    %v925 = vmul.f32 %v922, %v924
    %v926 = vadd.f32 %v922, %v925
    %vm927 = vweird.f32 %v903
    %vm928 = vweird.f32 %v922
    %vm929 = vmor %vm927, %vm928
    %v930 = vsel %vm929, %v922, %v926
    %v931 = vand.u32 2147483647, %v903
    %vm932 = vcmp.eq.f32.partialorder %v931, 8.507059e+37
    %v933 = vand.u32 %v903, 2147483648
    %v934 = vor.u32 1.1754944e-38, %v933
    %v935 = vsel %vm932, %v934, %v930
    %v936 = vmul.f32 %v895, %v935
    %v937 = vrcp.pop %v906
    %v938 = vmul.f32 %v906, %v937
    %v939 = vsub.f32 1.0, %v938
    %v940 = vmul.f32 %v937, %v939
    %v941 = vadd.f32 %v937, %v940
    %vm942 = vweird.f32 %v906
    %vm943 = vweird.f32 %v937
    %vm944 = vmor %vm942, %vm943
    %v945 = vsel %vm944, %v937, %v941
    %v946 = vand.u32 2147483647, %v906
    %vm947 = vcmp.eq.f32.partialorder %v946, 8.507059e+37
    %v948 = vand.u32 %v906, 2147483648
    %v949 = vor.u32 1.1754944e-38, %v948
    %v950 = vsel %vm947, %v949, %v945
    %v951 = vmul.f32 %v897, %v950
    %952 = vrot.lane.b32.xlu0 %v303, 40
    %v953 = vpop.permute.xlu0 %952
    %954 = vrot.lane.b32.xlu0 %v306, 40
    %v955 = vpop.permute.xlu0 %954
    %956 = vrot.lane.b32.xlu0 %v309, 40
    %v957 = vpop.permute.xlu0 %956
    %v961 = vsel %vm368, %v921, 0
    %v964 = vsel %vm368, %v936, 0
    %v967 = vsel %vm368, %v951, 0
    %v969 = vsel %vm76, %v957, 0
    %971 = vmatpush.msra.mxu0 0.0
    %972 = vmatpush.msra.mxu0 0.0
    %973 = vmatpush.msra.mxu0 0.0
    %974 = vmatpush.msra.mxu0 0.0
    %975 = vmatpush.msra.mxu0 0.0
    %976 = vmatpush.msra.mxu0 0.0
    %977 = vmatpush.msra.mxu0 0.0
    %978 = vmatpush.msra.mxu0 0.0
    %979 = vmatpush.msra.mxu0 0.0
    %980 = vmatpush.msra.mxu0 0.0
    %981 = vmatpush.msra.mxu0 0.0
    %982 = vmatpush.msra.mxu0 0.0
    %983 = vmatpush.msra.mxu0 0.0
    %984 = vmatpush.msra.mxu0 %v969
    %985 = vmatpush.msra.mxu0 %v955
    %986 = vmatpush.msra.mxu0 %v953
    %987 = vmatmul.f32.gmra.mxu0 %v961
    %v988 = vpop.f32.mrf.mxu0
    %v989 = vadd.f32 0.0, %v988
    %990 = vmatmul.f32.gmra.mxu0 %v964
    %v991 = vpop.f32.mrf.mxu0
    %v992 = vadd.f32 0.0, %v991
    %993 = vmatmul.f32.gmra.mxu0 %v967
    %v994 = vpop.f32.mrf.mxu0
    %v995 = vadd.f32 0.0, %v994
    %996 = vdwg.mxu0
    %1000 = vrot.lane.b32.xlu0 %v649, 8
    %v1001 = vpop.permute.xlu0 %1000
    %1002 = vrot.lane.b32.xlu0 %v652, 8
    %v1003 = vpop.permute.xlu0 %1002
    %1004 = vrot.lane.b32.xlu0 %v655, 8
    %v1005 = vpop.permute.xlu0 %1004
    %1012 = vrot.lane.b32.xlu0 %v819, 16
    %v1013 = vpop.permute.xlu0 %1012
    %1014 = vrot.lane.b32.xlu0 %v822, 16
    %v1015 = vpop.permute.xlu0 %1014
    %1016 = vrot.lane.b32.xlu0 %v825, 16
    %v1017 = vpop.permute.xlu0 %1016
    %1024 = vrot.lane.b32.xlu0 %v989, 24
    %v1025 = vpop.permute.xlu0 %1024
    %1026 = vrot.lane.b32.xlu0 %v992, 24
    %v1027 = vpop.permute.xlu0 %1026
    %1028 = vrot.lane.b32.xlu0 %v995, 24
    %v1029 = vpop.permute.xlu0 %1028
    %v1033 = vsel %vm326, %v479, %v1001
    %v1034 = vsel %vm326, %v482, %v1003
    %v1035 = vsel %vm326, %v485, %v1005
    %vm1036 = vcmask 130048
    %v1037 = vsel %vm1036, %v1033, %v1013
    %v1038 = vsel %vm1036, %v1034, %v1015
    %v1039 = vsel %vm1036, %v1035, %v1017
    %vm1040 = vcmask 195584
    %v1041 = vsel %vm1040, %v1037, %v1025
    %v1042 = vsel %vm1040, %v1038, %v1027
    %v1043 = vsel %vm1040, %v1039, %v1029
    %vm1046 = vcmask 1046528
    %v1047 = vrot.slane %v309, 1
    %v1048 = vrot.slane %v312, 1
    %v1049 = vsel %vm1046, %v1047, %v1048
    %v1050 = vrot.slane %v315, 1
    %v1051 = vsel %vm1046, %v1048, %v1050
    %1052 = vrot.lane.b32.xlu0 %v1049, 96
    %v1053 = vpop.permute.xlu0 %1052
    %1054 = vrot.lane.b32.xlu0 %v1051, 96
    %v1055 = vpop.permute.xlu0 %1054
    %1056 = vrot.lane.b32.xlu0 %v1050, 96
    %v1057 = vpop.permute.xlu0 %1056
    %v1058 = vsel %vm326, %v1049, 0
    %v1060 = vsel %vm326, %v1051, 0
    %v1062 = vsel %vm326, %v1050, 0
    %v1064 = vsel %vm326, %v1053, 0
    %v1066 = vsel %vm326, %v1055, 0
    %v1068 = vsel %vm326, %v1057, 0
    %1070 = vmatpush.xpose.msra.mxu0 0.0
    %1071 = vmatpush.xpose.msra.mxu0 0.0
    %1072 = vmatpush.xpose.msra.mxu0 0.0
    %1073 = vmatpush.xpose.msra.mxu0 0.0
    %1074 = vmatpush.xpose.msra.mxu0 0.0
    %1075 = vmatpush.xpose.msra.mxu0 0.0
    %1076 = vmatpush.xpose.msra.mxu0 0.0
    %1077 = vmatpush.xpose.msra.mxu0 0.0
    %1078 = vmatpush.xpose.msra.mxu0 0.0
    %1079 = vmatpush.xpose.msra.mxu0 0.0
    %1080 = vmatpush.xpose.msra.mxu0 0.0
    %1081 = vmatpush.xpose.msra.mxu0 0.0
    %1082 = vmatpush.xpose.msra.mxu0 0.0
    %1083 = vmatpush.xpose.msra.mxu0 %v1068
    %1084 = vmatpush.xpose.msra.mxu0 %v1066
    %1085 = vmatpush.xpose.msra.mxu0 %v1064
    %1086 = vmatmul.f32.gmra.mxu0 %v1058
    %v1087 = vpop.f32.mrf.mxu0
    %v1088 = vadd.f32 0.0, %v1087
    %1089 = vmatmul.f32.gmra.mxu0 %v1060
    %v1090 = vpop.f32.mrf.mxu0
    %v1091 = vadd.f32 0.0, %v1090
    %1092 = vmatmul.f32.gmra.mxu0 %v1062
    %v1093 = vpop.f32.mrf.mxu0
    %v1094 = vadd.f32 0.0, %v1093
    %1095 = vdwg.mxu0
    %v1096 = vmul.f32 %v1088, 0.35355338
    %v1097 = vmul.f32 %v1091, 0.35355338
    %v1098 = vmul.f32 %v1094, 0.35355338
    %v1099 = vsel %vm368, %v1096, -inf
    %1100 = vmax.xlane.f32.xlu0 %v1099
    %v1101 = vpop.xlane.xlu0 %1100
    %v1102 = vsel %vm368, %v1097, -inf
    %1103 = vmax.xlane.f32.xlu0 %v1102
    %v1104 = vpop.xlane.xlu0 %1103
    %v1105 = vsel %vm375, %v1098, -inf
    %1106 = vmax.xlane.f32.xlu0 %v1105
    %v1107 = vpop.xlane.xlu0 %1106
    %v1108 = vsub.f32 %v1096, %v1101
    %v1109 = vsub.f32 %v1097, %v1104
    %v1110 = vsub.f32 %v1098, %v1107
    %v1111 = vmul.f32 %v1108, 1.442695
    %v1112 = vpow.pop %v1111
    %v1113 = vmul.f32 %v1109, 1.442695
    %v1114 = vpow.pop %v1113
    %v1115 = vmul.f32 %v1110, 1.442695
    %v1116 = vpow.pop %v1115
    %v1117 = vsel %vm368, %v1112, 0.0
    %1118 = vadd.xlane.f32.xlu0 %v1117
    %v1119 = vpop.xlane.xlu0 %1118
    %v1120 = vsel %vm368, %v1114, 0.0
    %1121 = vadd.xlane.f32.xlu0 %v1120
    %v1122 = vpop.xlane.xlu0 %1121
    %v1123 = vsel %vm375, %v1116, 0.0
    %1124 = vadd.xlane.f32.xlu0 %v1123
    %v1125 = vpop.xlane.xlu0 %1124
    %v1126 = vrcp.pop %v1119
    %v1127 = vmul.f32 %v1119, %v1126
    %v1128 = vsub.f32 1.0, %v1127
    %v1129 = vmul.f32 %v1126, %v1128
    %v1130 = vadd.f32 %v1126, %v1129
    %vm1131 = vweird.f32 %v1119
    %vm1132 = vweird.f32 %v1126
    %vm1133 = vmor %vm1131, %vm1132
    %v1134 = vsel %vm1133, %v1126, %v1130
    %v1135 = vand.u32 2147483647, %v1119
    %vm1136 = vcmp.eq.f32.partialorder %v1135, 8.507059e+37
    %v1137 = vand.u32 %v1119, 2147483648
    %v1138 = vor.u32 1.1754944e-38, %v1137
    %v1139 = vsel %vm1136, %v1138, %v1134
    %v1140 = vmul.f32 %v1112, %v1139
    %v1141 = vrcp.pop %v1122
    %v1142 = vmul.f32 %v1122, %v1141
    %v1143 = vsub.f32 1.0, %v1142
    %v1144 = vmul.f32 %v1141, %v1143
    %v1145 = vadd.f32 %v1141, %v1144
    %vm1146 = vweird.f32 %v1122
    %vm1147 = vweird.f32 %v1141
    %vm1148 = vmor %vm1146, %vm1147
    %v1149 = vsel %vm1148, %v1141, %v1145
    %v1150 = vand.u32 2147483647, %v1122
    %vm1151 = vcmp.eq.f32.partialorder %v1150, 8.507059e+37
    %v1152 = vand.u32 %v1122, 2147483648
    %v1153 = vor.u32 1.1754944e-38, %v1152
    %v1154 = vsel %vm1151, %v1153, %v1149
    %v1155 = vmul.f32 %v1114, %v1154
    %v1156 = vrcp.pop %v1125
    %v1157 = vmul.f32 %v1125, %v1156
    %v1158 = vsub.f32 1.0, %v1157
    %v1159 = vmul.f32 %v1156, %v1158
    %v1160 = vadd.f32 %v1156, %v1159
    %vm1161 = vweird.f32 %v1125
    %vm1162 = vweird.f32 %v1156
    %vm1163 = vmor %vm1161, %vm1162
    %v1164 = vsel %vm1163, %v1156, %v1160
    %v1165 = vand.u32 2147483647, %v1125
    %vm1166 = vcmp.eq.f32.partialorder %v1165, 8.507059e+37
    %v1167 = vand.u32 %v1125, 2147483648
    %v1168 = vor.u32 1.1754944e-38, %v1167
    %v1169 = vsel %vm1166, %v1168, %v1164
    %v1170 = vmul.f32 %v1116, %v1169
    %1171 = vrot.lane.b32.xlu0 %v1049, 64
    %v1172 = vpop.permute.xlu0 %1171
    %1173 = vrot.lane.b32.xlu0 %v1051, 64
    %v1174 = vpop.permute.xlu0 %1173
    %1175 = vrot.lane.b32.xlu0 %v1050, 64
    %v1176 = vpop.permute.xlu0 %1175
    %v1180 = vsel %vm368, %v1140, 0
    %v1183 = vsel %vm368, %v1155, 0
    %v1186 = vsel %vm368, %v1170, 0
    %v1188 = vsel %vm76, %v1176, 0
    %1190 = vmatpush.msra.mxu0 0.0
    %1191 = vmatpush.msra.mxu0 0.0
    %1192 = vmatpush.msra.mxu0 0.0
    %1193 = vmatpush.msra.mxu0 0.0
    %1194 = vmatpush.msra.mxu0 0.0
    %1195 = vmatpush.msra.mxu0 0.0
    %1196 = vmatpush.msra.mxu0 0.0
    %1197 = vmatpush.msra.mxu0 0.0
    %1198 = vmatpush.msra.mxu0 0.0
    %1199 = vmatpush.msra.mxu0 0.0
    %1200 = vmatpush.msra.mxu0 0.0
    %1201 = vmatpush.msra.mxu0 0.0
    %1202 = vmatpush.msra.mxu0 0.0
    %1203 = vmatpush.msra.mxu0 %v1188
    %1204 = vmatpush.msra.mxu0 %v1174
    %1205 = vmatpush.msra.mxu0 %v1172
    %1206 = vmatmul.f32.gmra.mxu0 %v1180
    %v1207 = vpop.f32.mrf.mxu0
    %v1208 = vadd.f32 0.0, %v1207
    %1209 = vmatmul.f32.gmra.mxu0 %v1183
    %v1210 = vpop.f32.mrf.mxu0
    %v1211 = vadd.f32 0.0, %v1210
    %1212 = vmatmul.f32.gmra.mxu0 %v1186
    %v1213 = vpop.f32.mrf.mxu0
    %v1214 = vadd.f32 0.0, %v1213
    %1215 = vdwg.mxu0
    %1216 = vrot.lane.b32.xlu0 %v1049, 120
    %v1217 = vpop.permute.xlu0 %1216
    %1218 = vrot.lane.b32.xlu0 %v1051, 120
    %v1219 = vpop.permute.xlu0 %1218
    %1220 = vrot.lane.b32.xlu0 %v1050, 120
    %v1221 = vpop.permute.xlu0 %1220
    %1222 = vrot.lane.b32.xlu0 %v1049, 88
    %v1223 = vpop.permute.xlu0 %1222
    %1224 = vrot.lane.b32.xlu0 %v1051, 88
    %v1225 = vpop.permute.xlu0 %1224
    %1226 = vrot.lane.b32.xlu0 %v1050, 88
    %v1227 = vpop.permute.xlu0 %1226
    %v1228 = vsel %vm326, %v1217, 0
    %v1230 = vsel %vm326, %v1219, 0
    %v1232 = vsel %vm326, %v1221, 0
    %v1234 = vsel %vm326, %v1223, 0
    %v1236 = vsel %vm326, %v1225, 0
    %v1238 = vsel %vm326, %v1227, 0
    %1240 = vmatpush.xpose.msra.mxu0 0.0
    %1241 = vmatpush.xpose.msra.mxu0 0.0
    %1242 = vmatpush.xpose.msra.mxu0 0.0
    %1243 = vmatpush.xpose.msra.mxu0 0.0
    %1244 = vmatpush.xpose.msra.mxu0 0.0
    %1245 = vmatpush.xpose.msra.mxu0 0.0
    %1246 = vmatpush.xpose.msra.mxu0 0.0
    %1247 = vmatpush.xpose.msra.mxu0 0.0
    %1248 = vmatpush.xpose.msra.mxu0 0.0
    %1249 = vmatpush.xpose.msra.mxu0 0.0
    %1250 = vmatpush.xpose.msra.mxu0 0.0
    %1251 = vmatpush.xpose.msra.mxu0 0.0
    %1252 = vmatpush.xpose.msra.mxu0 0.0
    %1253 = vmatpush.xpose.msra.mxu0 %v1238
    %1254 = vmatpush.xpose.msra.mxu0 %v1236
    %1255 = vmatpush.xpose.msra.mxu0 %v1234
    %1256 = vmatmul.f32.gmra.mxu0 %v1228
    %v1257 = vpop.f32.mrf.mxu0
    %v1258 = vadd.f32 0.0, %v1257
    %1259 = vmatmul.f32.gmra.mxu0 %v1230
    %v1260 = vpop.f32.mrf.mxu0
    %v1261 = vadd.f32 0.0, %v1260
    %1262 = vmatmul.f32.gmra.mxu0 %v1232
    %v1263 = vpop.f32.mrf.mxu0
    %v1264 = vadd.f32 0.0, %v1263
    %1265 = vdwg.mxu0
    %v1266 = vmul.f32 %v1258, 0.35355338
    %v1267 = vmul.f32 %v1261, 0.35355338
    %v1268 = vmul.f32 %v1264, 0.35355338
    %v1269 = vsel %vm368, %v1266, -inf
    %1270 = vmax.xlane.f32.xlu0 %v1269
    %v1271 = vpop.xlane.xlu0 %1270
    %v1272 = vsel %vm368, %v1267, -inf
    %1273 = vmax.xlane.f32.xlu0 %v1272
    %v1274 = vpop.xlane.xlu0 %1273
    %v1275 = vsel %vm375, %v1268, -inf
    %1276 = vmax.xlane.f32.xlu0 %v1275
    %v1277 = vpop.xlane.xlu0 %1276
    %v1278 = vsub.f32 %v1266, %v1271
    %v1279 = vsub.f32 %v1267, %v1274
    %v1280 = vsub.f32 %v1268, %v1277
    %v1281 = vmul.f32 %v1278, 1.442695
    %v1282 = vpow.pop %v1281
    %v1283 = vmul.f32 %v1279, 1.442695
    %v1284 = vpow.pop %v1283
    %v1285 = vmul.f32 %v1280, 1.442695
    %v1286 = vpow.pop %v1285
    %v1287 = vsel %vm368, %v1282, 0.0
    %1288 = vadd.xlane.f32.xlu0 %v1287
    %v1289 = vpop.xlane.xlu0 %1288
    %v1290 = vsel %vm368, %v1284, 0.0
    %1291 = vadd.xlane.f32.xlu0 %v1290
    %v1292 = vpop.xlane.xlu0 %1291
    %v1293 = vsel %vm375, %v1286, 0.0
    %1294 = vadd.xlane.f32.xlu0 %v1293
    %v1295 = vpop.xlane.xlu0 %1294
    %v1296 = vrcp.pop %v1289
    %v1297 = vmul.f32 %v1289, %v1296
    %v1298 = vsub.f32 1.0, %v1297
    %v1299 = vmul.f32 %v1296, %v1298
    %v1300 = vadd.f32 %v1296, %v1299
    %vm1301 = vweird.f32 %v1289
    %vm1302 = vweird.f32 %v1296
    %vm1303 = vmor %vm1301, %vm1302
    %v1304 = vsel %vm1303, %v1296, %v1300
    %v1305 = vand.u32 2147483647, %v1289
    %vm1306 = vcmp.eq.f32.partialorder %v1305, 8.507059e+37
    %v1307 = vand.u32 %v1289, 2147483648
    %v1308 = vor.u32 1.1754944e-38, %v1307
    %v1309 = vsel %vm1306, %v1308, %v1304
    %v1310 = vmul.f32 %v1282, %v1309
    %v1311 = vrcp.pop %v1292
    %v1312 = vmul.f32 %v1292, %v1311
    %v1313 = vsub.f32 1.0, %v1312
    %v1314 = vmul.f32 %v1311, %v1313
    %v1315 = vadd.f32 %v1311, %v1314
    %vm1316 = vweird.f32 %v1292
    %vm1317 = vweird.f32 %v1311
    %vm1318 = vmor %vm1316, %vm1317
    %v1319 = vsel %vm1318, %v1311, %v1315
    %v1320 = vand.u32 2147483647, %v1292
    %vm1321 = vcmp.eq.f32.partialorder %v1320, 8.507059e+37
    %v1322 = vand.u32 %v1292, 2147483648
    %v1323 = vor.u32 1.1754944e-38, %v1322
    %v1324 = vsel %vm1321, %v1323, %v1319
    %v1325 = vmul.f32 %v1284, %v1324
    %v1326 = vrcp.pop %v1295
    %v1327 = vmul.f32 %v1295, %v1326
    %v1328 = vsub.f32 1.0, %v1327
    %v1329 = vmul.f32 %v1326, %v1328
    %v1330 = vadd.f32 %v1326, %v1329
    %vm1331 = vweird.f32 %v1295
    %vm1332 = vweird.f32 %v1326
    %vm1333 = vmor %vm1331, %vm1332
    %v1334 = vsel %vm1333, %v1326, %v1330
    %v1335 = vand.u32 2147483647, %v1295
    %vm1336 = vcmp.eq.f32.partialorder %v1335, 8.507059e+37
    %v1337 = vand.u32 %v1295, 2147483648
    %v1338 = vor.u32 1.1754944e-38, %v1337
    %v1339 = vsel %vm1336, %v1338, %v1334
    %v1340 = vmul.f32 %v1286, %v1339
    %1341 = vrot.lane.b32.xlu0 %v1049, 56
    %v1342 = vpop.permute.xlu0 %1341
    %1343 = vrot.lane.b32.xlu0 %v1051, 56
    %v1344 = vpop.permute.xlu0 %1343
    %1345 = vrot.lane.b32.xlu0 %v1050, 56
    %v1346 = vpop.permute.xlu0 %1345
    %v1350 = vsel %vm368, %v1310, 0
    %v1353 = vsel %vm368, %v1325, 0
    %v1356 = vsel %vm368, %v1340, 0
    %v1358 = vsel %vm76, %v1346, 0
    %1360 = vmatpush.msra.mxu0 0.0
    %1361 = vmatpush.msra.mxu0 0.0
    %1362 = vmatpush.msra.mxu0 0.0
    %1363 = vmatpush.msra.mxu0 0.0
    %1364 = vmatpush.msra.mxu0 0.0
    %1365 = vmatpush.msra.mxu0 0.0
    %1366 = vmatpush.msra.mxu0 0.0
    %1367 = vmatpush.msra.mxu0 0.0
    %1368 = vmatpush.msra.mxu0 0.0
    %1369 = vmatpush.msra.mxu0 0.0
    %1370 = vmatpush.msra.mxu0 0.0
    %1371 = vmatpush.msra.mxu0 0.0
    %1372 = vmatpush.msra.mxu0 0.0
    %1373 = vmatpush.msra.mxu0 %v1358
    %1374 = vmatpush.msra.mxu0 %v1344
    %1375 = vmatpush.msra.mxu0 %v1342
    %1376 = vmatmul.f32.gmra.mxu0 %v1350
    %v1377 = vpop.f32.mrf.mxu0
    %v1378 = vadd.f32 0.0, %v1377
    %1379 = vmatmul.f32.gmra.mxu0 %v1353
    %v1380 = vpop.f32.mrf.mxu0
    %v1381 = vadd.f32 0.0, %v1380
    %1382 = vmatmul.f32.gmra.mxu0 %v1356
    %v1383 = vpop.f32.mrf.mxu0
    %v1384 = vadd.f32 0.0, %v1383
    %1385 = vdwg.mxu0
    %1386 = vrot.lane.b32.xlu0 %v1049, 112
    %v1387 = vpop.permute.xlu0 %1386
    %1388 = vrot.lane.b32.xlu0 %v1051, 112
    %v1389 = vpop.permute.xlu0 %1388
    %1390 = vrot.lane.b32.xlu0 %v1050, 112
    %v1391 = vpop.permute.xlu0 %1390
    %1392 = vrot.lane.b32.xlu0 %v1049, 80
    %v1393 = vpop.permute.xlu0 %1392
    %1394 = vrot.lane.b32.xlu0 %v1051, 80
    %v1395 = vpop.permute.xlu0 %1394
    %1396 = vrot.lane.b32.xlu0 %v1050, 80
    %v1397 = vpop.permute.xlu0 %1396
    %v1398 = vsel %vm326, %v1387, 0
    %v1400 = vsel %vm326, %v1389, 0
    %v1402 = vsel %vm326, %v1391, 0
    %v1404 = vsel %vm326, %v1393, 0
    %v1406 = vsel %vm326, %v1395, 0
    %v1408 = vsel %vm326, %v1397, 0
    %1410 = vmatpush.xpose.msra.mxu0 0.0
    %1411 = vmatpush.xpose.msra.mxu0 0.0
    %1412 = vmatpush.xpose.msra.mxu0 0.0
    %1413 = vmatpush.xpose.msra.mxu0 0.0
    %1414 = vmatpush.xpose.msra.mxu0 0.0
    %1415 = vmatpush.xpose.msra.mxu0 0.0
    %1416 = vmatpush.xpose.msra.mxu0 0.0
    %1417 = vmatpush.xpose.msra.mxu0 0.0
    %1418 = vmatpush.xpose.msra.mxu0 0.0
    %1419 = vmatpush.xpose.msra.mxu0 0.0
    %1420 = vmatpush.xpose.msra.mxu0 0.0
    %1421 = vmatpush.xpose.msra.mxu0 0.0
    %1422 = vmatpush.xpose.msra.mxu0 0.0
    %1423 = vmatpush.xpose.msra.mxu0 %v1408
    %1424 = vmatpush.xpose.msra.mxu0 %v1406
    %1425 = vmatpush.xpose.msra.mxu0 %v1404
    %1426 = vmatmul.f32.gmra.mxu0 %v1398
    %v1427 = vpop.f32.mrf.mxu0
    %v1428 = vadd.f32 0.0, %v1427
    %1429 = vmatmul.f32.gmra.mxu0 %v1400
    %v1430 = vpop.f32.mrf.mxu0
    %v1431 = vadd.f32 0.0, %v1430
    %1432 = vmatmul.f32.gmra.mxu0 %v1402
    %v1433 = vpop.f32.mrf.mxu0
    %v1434 = vadd.f32 0.0, %v1433
    %1435 = vdwg.mxu0
    %v1436 = vmul.f32 %v1428, 0.35355338
    %v1437 = vmul.f32 %v1431, 0.35355338
    %v1438 = vmul.f32 %v1434, 0.35355338
    %v1439 = vsel %vm368, %v1436, -inf
    %1440 = vmax.xlane.f32.xlu0 %v1439
    %v1441 = vpop.xlane.xlu0 %1440
    %v1442 = vsel %vm368, %v1437, -inf
    %1443 = vmax.xlane.f32.xlu0 %v1442
    %v1444 = vpop.xlane.xlu0 %1443
    %v1445 = vsel %vm375, %v1438, -inf
    %1446 = vmax.xlane.f32.xlu0 %v1445
    %v1447 = vpop.xlane.xlu0 %1446
    %v1448 = vsub.f32 %v1436, %v1441
    %v1449 = vsub.f32 %v1437, %v1444
    %v1450 = vsub.f32 %v1438, %v1447
    %v1451 = vmul.f32 %v1448, 1.442695
    %v1452 = vpow.pop %v1451
    %v1453 = vmul.f32 %v1449, 1.442695
    %v1454 = vpow.pop %v1453
    %v1455 = vmul.f32 %v1450, 1.442695
    %v1456 = vpow.pop %v1455
    %v1457 = vsel %vm368, %v1452, 0.0
    %1458 = vadd.xlane.f32.xlu0 %v1457
    %v1459 = vpop.xlane.xlu0 %1458
    %v1460 = vsel %vm368, %v1454, 0.0
    %1461 = vadd.xlane.f32.xlu0 %v1460
    %v1462 = vpop.xlane.xlu0 %1461
    %v1463 = vsel %vm375, %v1456, 0.0
    %1464 = vadd.xlane.f32.xlu0 %v1463
    %v1465 = vpop.xlane.xlu0 %1464
    %v1466 = vrcp.pop %v1459
    %v1467 = vmul.f32 %v1459, %v1466
    %v1468 = vsub.f32 1.0, %v1467
    %v1469 = vmul.f32 %v1466, %v1468
    %v1470 = vadd.f32 %v1466, %v1469
    %vm1471 = vweird.f32 %v1459
    %vm1472 = vweird.f32 %v1466
    %vm1473 = vmor %vm1471, %vm1472
    %v1474 = vsel %vm1473, %v1466, %v1470
    %v1475 = vand.u32 2147483647, %v1459
    %vm1476 = vcmp.eq.f32.partialorder %v1475, 8.507059e+37
    %v1477 = vand.u32 %v1459, 2147483648
    %v1478 = vor.u32 1.1754944e-38, %v1477
    %v1479 = vsel %vm1476, %v1478, %v1474
    %v1480 = vmul.f32 %v1452, %v1479
    %v1481 = vrcp.pop %v1462
    %v1482 = vmul.f32 %v1462, %v1481
    %v1483 = vsub.f32 1.0, %v1482
    %v1484 = vmul.f32 %v1481, %v1483
    %v1485 = vadd.f32 %v1481, %v1484
    %vm1486 = vweird.f32 %v1462
    %vm1487 = vweird.f32 %v1481
    %vm1488 = vmor %vm1486, %vm1487
    %v1489 = vsel %vm1488, %v1481, %v1485
    %v1490 = vand.u32 2147483647, %v1462
    %vm1491 = vcmp.eq.f32.partialorder %v1490, 8.507059e+37
    %v1492 = vand.u32 %v1462, 2147483648
    %v1493 = vor.u32 1.1754944e-38, %v1492
    %v1494 = vsel %vm1491, %v1493, %v1489
    %v1495 = vmul.f32 %v1454, %v1494
    %v1496 = vrcp.pop %v1465
    %v1497 = vmul.f32 %v1465, %v1496
    %v1498 = vsub.f32 1.0, %v1497
    %v1499 = vmul.f32 %v1496, %v1498
    %v1500 = vadd.f32 %v1496, %v1499
    %vm1501 = vweird.f32 %v1465
    %vm1502 = vweird.f32 %v1496
    %vm1503 = vmor %vm1501, %vm1502
    %v1504 = vsel %vm1503, %v1496, %v1500
    %v1505 = vand.u32 2147483647, %v1465
    %vm1506 = vcmp.eq.f32.partialorder %v1505, 8.507059e+37
    %v1507 = vand.u32 %v1465, 2147483648
    %v1508 = vor.u32 1.1754944e-38, %v1507
    %v1509 = vsel %vm1506, %v1508, %v1504
    %v1510 = vmul.f32 %v1456, %v1509
    %1511 = vrot.lane.b32.xlu0 %v1049, 48
    %v1512 = vpop.permute.xlu0 %1511
    %1513 = vrot.lane.b32.xlu0 %v1051, 48
    %v1514 = vpop.permute.xlu0 %1513
    %1515 = vrot.lane.b32.xlu0 %v1050, 48
    %v1516 = vpop.permute.xlu0 %1515
    %v1520 = vsel %vm368, %v1480, 0
    %v1523 = vsel %vm368, %v1495, 0
    %v1526 = vsel %vm368, %v1510, 0
    %v1528 = vsel %vm76, %v1516, 0
    %1530 = vmatpush.msra.mxu0 0.0
    %1531 = vmatpush.msra.mxu0 0.0
    %1532 = vmatpush.msra.mxu0 0.0
    %1533 = vmatpush.msra.mxu0 0.0
    %1534 = vmatpush.msra.mxu0 0.0
    %1535 = vmatpush.msra.mxu0 0.0
    %1536 = vmatpush.msra.mxu0 0.0
    %1537 = vmatpush.msra.mxu0 0.0
    %1538 = vmatpush.msra.mxu0 0.0
    %1539 = vmatpush.msra.mxu0 0.0
    %1540 = vmatpush.msra.mxu0 0.0
    %1541 = vmatpush.msra.mxu0 0.0
    %1542 = vmatpush.msra.mxu0 0.0
    %1543 = vmatpush.msra.mxu0 %v1528
    %1544 = vmatpush.msra.mxu0 %v1514
    %1545 = vmatpush.msra.mxu0 %v1512
    %1546 = vmatmul.f32.gmra.mxu0 %v1520
    %v1547 = vpop.f32.mrf.mxu0
    %v1548 = vadd.f32 0.0, %v1547
    %1549 = vmatmul.f32.gmra.mxu0 %v1523
    %v1550 = vpop.f32.mrf.mxu0
    %v1551 = vadd.f32 0.0, %v1550
    %1552 = vmatmul.f32.gmra.mxu0 %v1526
    %v1553 = vpop.f32.mrf.mxu0
    %v1554 = vadd.f32 0.0, %v1553
    %1555 = vdwg.mxu0
    %1556 = vrot.lane.b32.xlu0 %v1049, 104
    %v1557 = vpop.permute.xlu0 %1556
    %1558 = vrot.lane.b32.xlu0 %v1051, 104
    %v1559 = vpop.permute.xlu0 %1558
    %1560 = vrot.lane.b32.xlu0 %v1050, 104
    %v1561 = vpop.permute.xlu0 %1560
    %1562 = vrot.lane.b32.xlu0 %v1049, 72
    %v1563 = vpop.permute.xlu0 %1562
    %1564 = vrot.lane.b32.xlu0 %v1051, 72
    %v1565 = vpop.permute.xlu0 %1564
    %1566 = vrot.lane.b32.xlu0 %v1050, 72
    %v1567 = vpop.permute.xlu0 %1566
    %v1568 = vsel %vm326, %v1557, 0
    %v1570 = vsel %vm326, %v1559, 0
    %v1572 = vsel %vm326, %v1561, 0
    %v1574 = vsel %vm326, %v1563, 0
    %v1576 = vsel %vm326, %v1565, 0
    %v1578 = vsel %vm326, %v1567, 0
    %1580 = vmatpush.xpose.msra.mxu0 0.0
    %1581 = vmatpush.xpose.msra.mxu0 0.0
    %1582 = vmatpush.xpose.msra.mxu0 0.0
    %1583 = vmatpush.xpose.msra.mxu0 0.0
    %1584 = vmatpush.xpose.msra.mxu0 0.0
    %1585 = vmatpush.xpose.msra.mxu0 0.0
    %1586 = vmatpush.xpose.msra.mxu0 0.0
    %1587 = vmatpush.xpose.msra.mxu0 0.0
    %1588 = vmatpush.xpose.msra.mxu0 0.0
    %1589 = vmatpush.xpose.msra.mxu0 0.0
    %1590 = vmatpush.xpose.msra.mxu0 0.0
    %1591 = vmatpush.xpose.msra.mxu0 0.0
    %1592 = vmatpush.xpose.msra.mxu0 0.0
    %1593 = vmatpush.xpose.msra.mxu0 %v1578
    %1594 = vmatpush.xpose.msra.mxu0 %v1576
    %1595 = vmatpush.xpose.msra.mxu0 %v1574
    %1596 = vmatmul.f32.gmra.mxu0 %v1568
    %v1597 = vpop.f32.mrf.mxu0
    %v1598 = vadd.f32 0.0, %v1597
    %1599 = vmatmul.f32.gmra.mxu0 %v1570
    %v1600 = vpop.f32.mrf.mxu0
    %v1601 = vadd.f32 0.0, %v1600
    %1602 = vmatmul.f32.gmra.mxu0 %v1572
    %v1603 = vpop.f32.mrf.mxu0
    %v1604 = vadd.f32 0.0, %v1603
    %1605 = vdwg.mxu0
    %v1606 = vmul.f32 %v1598, 0.35355338
    %v1607 = vmul.f32 %v1601, 0.35355338
    %v1608 = vmul.f32 %v1604, 0.35355338
    %v1609 = vsel %vm368, %v1606, -inf
    %1610 = vmax.xlane.f32.xlu0 %v1609
    %v1611 = vpop.xlane.xlu0 %1610
    %v1612 = vsel %vm368, %v1607, -inf
    %1613 = vmax.xlane.f32.xlu0 %v1612
    %v1614 = vpop.xlane.xlu0 %1613
    %v1615 = vsel %vm375, %v1608, -inf
    %1616 = vmax.xlane.f32.xlu0 %v1615
    %v1617 = vpop.xlane.xlu0 %1616
    %v1618 = vsub.f32 %v1606, %v1611
    %v1619 = vsub.f32 %v1607, %v1614
    %v1620 = vsub.f32 %v1608, %v1617
    %v1621 = vmul.f32 %v1618, 1.442695
    %v1622 = vpow.pop %v1621
    %v1623 = vmul.f32 %v1619, 1.442695
    %v1624 = vpow.pop %v1623
    %v1625 = vmul.f32 %v1620, 1.442695
    %v1626 = vpow.pop %v1625
    %v1627 = vsel %vm368, %v1622, 0.0
    %1628 = vadd.xlane.f32.xlu0 %v1627
    %v1629 = vpop.xlane.xlu0 %1628
    %v1630 = vsel %vm368, %v1624, 0.0
    %1631 = vadd.xlane.f32.xlu0 %v1630
    %v1632 = vpop.xlane.xlu0 %1631
    %v1633 = vsel %vm375, %v1626, 0.0
    %1634 = vadd.xlane.f32.xlu0 %v1633
    %v1635 = vpop.xlane.xlu0 %1634
    %v1636 = vrcp.pop %v1629
    %v1637 = vmul.f32 %v1629, %v1636
    %v1638 = vsub.f32 1.0, %v1637
    %v1639 = vmul.f32 %v1636, %v1638
    %v1640 = vadd.f32 %v1636, %v1639
    %vm1641 = vweird.f32 %v1629
    %vm1642 = vweird.f32 %v1636
    %vm1643 = vmor %vm1641, %vm1642
    %v1644 = vsel %vm1643, %v1636, %v1640
    %v1645 = vand.u32 2147483647, %v1629
    %vm1646 = vcmp.eq.f32.partialorder %v1645, 8.507059e+37
    %v1647 = vand.u32 %v1629, 2147483648
    %v1648 = vor.u32 1.1754944e-38, %v1647
    %v1649 = vsel %vm1646, %v1648, %v1644
    %v1650 = vmul.f32 %v1622, %v1649
    %v1651 = vrcp.pop %v1632
    %v1652 = vmul.f32 %v1632, %v1651
    %v1653 = vsub.f32 1.0, %v1652
    %v1654 = vmul.f32 %v1651, %v1653
    %v1655 = vadd.f32 %v1651, %v1654
    %vm1656 = vweird.f32 %v1632
    %vm1657 = vweird.f32 %v1651
    %vm1658 = vmor %vm1656, %vm1657
    %v1659 = vsel %vm1658, %v1651, %v1655
    %v1660 = vand.u32 2147483647, %v1632
    %vm1661 = vcmp.eq.f32.partialorder %v1660, 8.507059e+37
    %v1662 = vand.u32 %v1632, 2147483648
    %v1663 = vor.u32 1.1754944e-38, %v1662
    %v1664 = vsel %vm1661, %v1663, %v1659
    %v1665 = vmul.f32 %v1624, %v1664
    %v1666 = vrcp.pop %v1635
    %v1667 = vmul.f32 %v1635, %v1666
    %v1668 = vsub.f32 1.0, %v1667
    %v1669 = vmul.f32 %v1666, %v1668
    %v1670 = vadd.f32 %v1666, %v1669
    %vm1671 = vweird.f32 %v1635
    %vm1672 = vweird.f32 %v1666
    %vm1673 = vmor %vm1671, %vm1672
    %v1674 = vsel %vm1673, %v1666, %v1670
    %v1675 = vand.u32 2147483647, %v1635
    %vm1676 = vcmp.eq.f32.partialorder %v1675, 8.507059e+37
    %v1677 = vand.u32 %v1635, 2147483648
    %v1678 = vor.u32 1.1754944e-38, %v1677
    %v1679 = vsel %vm1676, %v1678, %v1674
    %v1680 = vmul.f32 %v1626, %v1679
    %1681 = vrot.lane.b32.xlu0 %v1049, 40
    %v1682 = vpop.permute.xlu0 %1681
    %1683 = vrot.lane.b32.xlu0 %v1051, 40
    %v1684 = vpop.permute.xlu0 %1683
    %1685 = vrot.lane.b32.xlu0 %v1050, 40
    %v1686 = vpop.permute.xlu0 %1685
    %v1690 = vsel %vm368, %v1650, 0
    %v1693 = vsel %vm368, %v1665, 0
    %v1696 = vsel %vm368, %v1680, 0
    %v1698 = vsel %vm76, %v1686, 0
    %1700 = vmatpush.msra.mxu0 0.0
    %1701 = vmatpush.msra.mxu0 0.0
    %1702 = vmatpush.msra.mxu0 0.0
    %1703 = vmatpush.msra.mxu0 0.0
    %1704 = vmatpush.msra.mxu0 0.0
    %1705 = vmatpush.msra.mxu0 0.0
    %1706 = vmatpush.msra.mxu0 0.0
    %1707 = vmatpush.msra.mxu0 0.0
    %1708 = vmatpush.msra.mxu0 0.0
    %1709 = vmatpush.msra.mxu0 0.0
    %1710 = vmatpush.msra.mxu0 0.0
    %1711 = vmatpush.msra.mxu0 0.0
    %1712 = vmatpush.msra.mxu0 0.0
    %1713 = vmatpush.msra.mxu0 %v1698
    %1714 = vmatpush.msra.mxu0 %v1684
    %1715 = vmatpush.msra.mxu0 %v1682
    %1716 = vmatmul.f32.gmra.mxu0 %v1690
    %v1717 = vpop.f32.mrf.mxu0
    %v1718 = vadd.f32 0.0, %v1717
    %1719 = vmatmul.f32.gmra.mxu0 %v1693
    %v1720 = vpop.f32.mrf.mxu0
    %v1721 = vadd.f32 0.0, %v1720
    %1722 = vmatmul.f32.gmra.mxu0 %v1696
    %v1723 = vpop.f32.mrf.mxu0
    %v1724 = vadd.f32 0.0, %v1723
    %1725 = vdwg.mxu0
    %1729 = vrot.lane.b32.xlu0 %v1378, 8
    %v1730 = vpop.permute.xlu0 %1729
    %1731 = vrot.lane.b32.xlu0 %v1381, 8
    %v1732 = vpop.permute.xlu0 %1731
    %1733 = vrot.lane.b32.xlu0 %v1384, 8
    %v1734 = vpop.permute.xlu0 %1733
    %1741 = vrot.lane.b32.xlu0 %v1548, 16
    %v1742 = vpop.permute.xlu0 %1741
    %1743 = vrot.lane.b32.xlu0 %v1551, 16
    %v1744 = vpop.permute.xlu0 %1743
    %1745 = vrot.lane.b32.xlu0 %v1554, 16
    %v1746 = vpop.permute.xlu0 %1745
    %1753 = vrot.lane.b32.xlu0 %v1718, 24
    %v1754 = vpop.permute.xlu0 %1753
    %1755 = vrot.lane.b32.xlu0 %v1721, 24
    %v1756 = vpop.permute.xlu0 %1755
    %1757 = vrot.lane.b32.xlu0 %v1724, 24
    %v1758 = vpop.permute.xlu0 %1757
    %v1762 = vsel %vm326, %v1208, %v1730
    %v1763 = vsel %vm326, %v1211, %v1732
    %v1764 = vsel %vm326, %v1214, %v1734
    %v1765 = vsel %vm1036, %v1762, %v1742
    %v1766 = vsel %vm1036, %v1763, %v1744
    %v1767 = vsel %vm1036, %v1764, %v1746
    %v1768 = vsel %vm1040, %v1765, %v1754
    %v1769 = vsel %vm1040, %v1766, %v1756
    %v1770 = vsel %vm1040, %v1767, %v1758
    %v1774 = vrot.slane %v1768, 7
    %v1775 = vrot.slane %v1769, 7
    %v1776 = vsel %vm76, %v1774, %v1775
    %v1777 = vrot.slane %v1770, 7
    %v1778 = vsel %vm76, %v1775, %v1777
    %v1780 = vsel %vm76, %v1043, %v1774
    %v1782 = vsel %vm132, %v1041, 0
    %v1785 = vsel %vm132, %v1042, 0
    %v1788 = vsel %vm132, %v1780, 0
    %v1790 = vsel %vm132, %v1776, 0
    %v1792 = vsel %vm132, %v1778, 0
    %1794 = vmatpush.msra.mxu0 0.0
    %1795 = vmatpush.msra.mxu0 0.0
    %1796 = vmatpush.msra.mxu0 0.0
    %1797 = vmatpush.msra.mxu0 0.0
    %1798 = vmatpush.msra.mxu0 0.0
    %1799 = vmatpush.msra.mxu0 0.0
    %1800 = vmatpush.msra.mxu0 0.0
    %1801 = vmatpush.msra.mxu0 0.0
    %1802 = vmatpush.msra.mxu0 0.0
    %1803 = vmatpush.msra.mxu0 0.0
    %1804 = vmatpush.msra.mxu0 0.0
    %1805 = vmatpush.msra.mxu0 0.0
    %1806 = vmatpush.msra.mxu0 %v106
    %1807 = vmatpush.msra.mxu0 %v105
    %1808 = vmatpush.msra.mxu0 %v104
    %1809 = vmatpush.msra.mxu0 %v103
    %1810 = vmatmul.f32.gmra.mxu0 %v1782
    %v1811 = vpop.f32.mrf.mxu0
    %v1812 = vadd.f32 0.0, %v1811
    %1813 = vmatmul.f32.gmra.mxu0 %v1785
    %v1814 = vpop.f32.mrf.mxu0
    %v1815 = vadd.f32 0.0, %v1814
    %1816 = vmatmul.f32.gmra.mxu0 %v1788
    %v1817 = vpop.f32.mrf.mxu0
    %v1818 = vadd.f32 0.0, %v1817
    %1819 = vmatmul.f32.gmra.mxu0 %v1790
    %v1820 = vpop.f32.mrf.mxu0
    %v1821 = vadd.f32 0.0, %v1820
    %1822 = vmatmul.f32.gmra.mxu0 %v1792
    %v1823 = vpop.f32.mrf.mxu0
    %v1824 = vadd.f32 0.0, %v1823
    %1825 = vdwg.mxu0
    %v1826 = vadd.f32 %v91, %v1812
    %v1827 = vadd.f32 %v92, %v1815
    %v1828 = vadd.f32 %v93, %v1818
    %v1829 = vadd.f32 %v94, %v1821
    %v1830 = vadd.f32 %v95, %v1824
    %v1832 = vperm.slane %v107, 0
    %v1834 = vadd.f32 %v1826, %v1832
    %v1835 = vadd.f32 %v1827, %v1832
    %v1836 = vadd.f32 %v1828, %v1832
    %v1837 = vadd.f32 %v1829, %v1832
    %v1838 = vadd.f32 %v1830, %v1832
    %v1839 = vsel %vm132, %v1834, 0.0
    %1840 = vadd.xlane.f32.xlu0 %v1839
    %v1841 = vpop.xlane.xlu0 %1840
    %v1842 = vsel %vm132, %v1835, 0.0
    %1843 = vadd.xlane.f32.xlu0 %v1842
    %v1844 = vpop.xlane.xlu0 %1843
    %v1845 = vsel %vm132, %v1836, 0.0
    %1846 = vadd.xlane.f32.xlu0 %v1845
    %v1847 = vpop.xlane.xlu0 %1846
    %v1848 = vsel %vm132, %v1837, 0.0
    %1849 = vadd.xlane.f32.xlu0 %v1848
    %v1850 = vpop.xlane.xlu0 %1849
    %v1851 = vsel %vm145, %v1838, 0.0
    %1852 = vadd.xlane.f32.xlu0 %v1851
    %v1853 = vpop.xlane.xlu0 %1852
    %v1854 = vmul.f32 %v1841, %v155
    %v1855 = vmul.f32 %v1844, %v155
    %v1856 = vmul.f32 %v1847, %v155
    %v1857 = vmul.f32 %v1850, %v155
    %v1858 = vmul.f32 %v1853, %v155
    %v1859 = vsub.f32 %v1834, %v1854
    %v1860 = vsub.f32 %v1835, %v1855
    %v1861 = vsub.f32 %v1836, %v1856
    %v1862 = vsub.f32 %v1837, %v1857
    %v1863 = vsub.f32 %v1838, %v1858
    %v1864 = vmul.f32 %v1859, %v1859
    %v1865 = vmul.f32 %v1860, %v1860
    %v1866 = vmul.f32 %v1861, %v1861
    %v1867 = vmul.f32 %v1862, %v1862
    %v1868 = vmul.f32 %v1863, %v1863
    %v1869 = vsel %vm132, %v1864, 0.0
    %1870 = vadd.xlane.f32.xlu0 %v1869
    %v1871 = vpop.xlane.xlu0 %1870
    %v1872 = vsel %vm132, %v1865, 0.0
    %1873 = vadd.xlane.f32.xlu0 %v1872
    %v1874 = vpop.xlane.xlu0 %1873
    %v1875 = vsel %vm132, %v1866, 0.0
    %1876 = vadd.xlane.f32.xlu0 %v1875
    %v1877 = vpop.xlane.xlu0 %1876
    %v1878 = vsel %vm132, %v1867, 0.0
    %1879 = vadd.xlane.f32.xlu0 %v1878
    %v1880 = vpop.xlane.xlu0 %1879
    %v1881 = vsel %vm145, %v1868, 0.0
    %1882 = vadd.xlane.f32.xlu0 %v1881
    %v1883 = vpop.xlane.xlu0 %1882
    %v1884 = vmul.f32 %v1871, %v155
    %v1885 = vmul.f32 %v1874, %v155
    %v1886 = vmul.f32 %v1877, %v155
    %v1887 = vmul.f32 %v1880, %v155
    %v1888 = vmul.f32 %v1883, %v155
    %v1889 = vadd.f32 %v1884, 1e-05
    %v1890 = vadd.f32 %v1885, 1e-05
    %v1891 = vadd.f32 %v1886, 1e-05
    %v1892 = vadd.f32 %v1887, 1e-05
    %v1893 = vadd.f32 %v1888, 1e-05
    %v1894 = vrsqrt.pop %v1889
    %v1895 = vmul.f32 %v1894, %v1889
    %v1896 = vmul.f32 %v1895, %v1894
    %v1897 = vmul.f32 0.5, %v1896
    %v1898 = vsub.f32 1.5, %v1897
    %v1899 = vmul.f32 %v1894, %v1898
    %vm1900 = vweird.f32 %v1889
    %vm1901 = vweird.f32 %v1894
    %vm1902 = vmor %vm1900, %vm1901
    %v1903 = vsel %vm1902, %v1894, %v1899
    %v1904 = vrsqrt.pop %v1890
    %v1905 = vmul.f32 %v1904, %v1890
    %v1906 = vmul.f32 %v1905, %v1904
    %v1907 = vmul.f32 0.5, %v1906
    %v1908 = vsub.f32 1.5, %v1907
    %v1909 = vmul.f32 %v1904, %v1908
    %vm1910 = vweird.f32 %v1890
    %vm1911 = vweird.f32 %v1904
    %vm1912 = vmor %vm1910, %vm1911
    %v1913 = vsel %vm1912, %v1904, %v1909
    %v1914 = vrsqrt.pop %v1891
    %v1915 = vmul.f32 %v1914, %v1891
    %v1916 = vmul.f32 %v1915, %v1914
    %v1917 = vmul.f32 0.5, %v1916
    %v1918 = vsub.f32 1.5, %v1917
    %v1919 = vmul.f32 %v1914, %v1918
    %vm1920 = vweird.f32 %v1891
    %vm1921 = vweird.f32 %v1914
    %vm1922 = vmor %vm1920, %vm1921
    %v1923 = vsel %vm1922, %v1914, %v1919
    %v1924 = vrsqrt.pop %v1892
    %v1925 = vmul.f32 %v1924, %v1892
    %v1926 = vmul.f32 %v1925, %v1924
    %v1927 = vmul.f32 0.5, %v1926
    %v1928 = vsub.f32 1.5, %v1927
    %v1929 = vmul.f32 %v1924, %v1928
    %vm1930 = vweird.f32 %v1892
    %vm1931 = vweird.f32 %v1924
    %vm1932 = vmor %vm1930, %vm1931
    %v1933 = vsel %vm1932, %v1924, %v1929
    %v1934 = vrsqrt.pop %v1893
    %v1935 = vmul.f32 %v1934, %v1893
    %v1936 = vmul.f32 %v1935, %v1934
    %v1937 = vmul.f32 0.5, %v1936
    %v1938 = vsub.f32 1.5, %v1937
    %v1939 = vmul.f32 %v1934, %v1938
    %vm1940 = vweird.f32 %v1893
    %vm1941 = vweird.f32 %v1934
    %vm1942 = vmor %vm1940, %vm1941
    %v1943 = vsel %vm1942, %v1934, %v1939
    %v1944 = vmul.f32 %v1859, %v1903
    %v1945 = vmul.f32 %v1860, %v1913
    %v1946 = vmul.f32 %v1861, %v1923
    %v1947 = vmul.f32 %v1862, %v1933
    %v1948 = vmul.f32 %v1863, %v1943
    %v1950 = vperm.slane %v108, 0
    %v1952 = vmul.f32 %v1944, %v1950
    %v1953 = vmul.f32 %v1945, %v1950
    %v1954 = vmul.f32 %v1946, %v1950
    %v1955 = vmul.f32 %v1947, %v1950
    %v1956 = vmul.f32 %v1948, %v1950
    %v1958 = vperm.slane %v109, 0
    %v1960 = vadd.f32 %v1952, %v1958
    %v1961 = vadd.f32 %v1953, %v1958
    %v1962 = vadd.f32 %v1954, %v1958
    %v1963 = vadd.f32 %v1955, %v1958
    %v1964 = vadd.f32 %v1956, %v1958
    %v1966 = vperm.slane %v114, 0
    %v1969 = vsel %vm132, %v1960, 0
    %v1972 = vsel %vm132, %v1961, 0
    %v1975 = vsel %vm132, %v1962, 0
    %v1978 = vsel %vm132, %v1963, 0
    %v1981 = vsel %vm132, %v1964, 0
    %1983 = vmatpush.msra.mxu0 0.0
    %1984 = vmatpush.msra.mxu0 0.0
    %1985 = vmatpush.msra.mxu0 0.0
    %1986 = vmatpush.msra.mxu0 0.0
    %1987 = vmatpush.msra.mxu0 0.0
    %1988 = vmatpush.msra.mxu0 0.0
    %1989 = vmatpush.msra.mxu0 0.0
    %1990 = vmatpush.msra.mxu0 0.0
    %1991 = vmatpush.msra.mxu0 0.0
    %1992 = vmatpush.msra.mxu0 0.0
    %1993 = vmatpush.msra.mxu0 0.0
    %1994 = vmatpush.msra.mxu0 0.0
    %1995 = vmatpush.msra.mxu0 %v113
    %1996 = vmatpush.msra.mxu0 %v112
    %1997 = vmatpush.msra.mxu0 %v111
    %1998 = vmatpush.msra.mxu0 %v110
    %1999 = vmatmul.f32.gmra.mxu0 %v1969
    %v2000 = vpop.f32.mrf.mxu0
    %v2001 = vadd.f32 %v1966, %v2000
    %2002 = vmatmul.f32.gmra.mxu0 %v1972
    %v2003 = vpop.f32.mrf.mxu0
    %v2004 = vadd.f32 %v1966, %v2003
    %2005 = vmatmul.f32.gmra.mxu0 %v1975
    %v2006 = vpop.f32.mrf.mxu0
    %v2007 = vadd.f32 %v1966, %v2006
    %2008 = vmatmul.f32.gmra.mxu0 %v1978
    %v2009 = vpop.f32.mrf.mxu0
    %v2010 = vadd.f32 %v1966, %v2009
    %2011 = vmatmul.f32.gmra.mxu0 %v1981
    %v2012 = vpop.f32.mrf.mxu0
    %v2013 = vadd.f32 %v1966, %v2012
    %2014 = vdwg.mxu0
    %v2015 = vmul.f32 %v2001, %v2001
    %v2016 = vmul.f32 %v2004, %v2004
    %v2017 = vmul.f32 %v2007, %v2007
    %v2018 = vmul.f32 %v2010, %v2010
    %v2019 = vmul.f32 %v2013, %v2013
    %v2020 = vmul.f32 %v2001, %v2015
    %v2021 = vmul.f32 %v2004, %v2016
    %v2022 = vmul.f32 %v2007, %v2017
    %v2023 = vmul.f32 %v2010, %v2018
    %v2024 = vmul.f32 %v2013, %v2019
    %v2025 = vmul.f32 %v2020, 0.044715
    %v2026 = vmul.f32 %v2021, 0.044715
    %v2027 = vmul.f32 %v2022, 0.044715
    %v2028 = vmul.f32 %v2023, 0.044715
    %v2029 = vmul.f32 %v2024, 0.044715
    %v2030 = vadd.f32 %v2001, %v2025
    %v2031 = vadd.f32 %v2004, %v2026
    %v2032 = vadd.f32 %v2007, %v2027
    %v2033 = vadd.f32 %v2010, %v2028
    %v2034 = vadd.f32 %v2013, %v2029
    %v2035 = vmul.f32 %v2030, 0.7978846
    %v2036 = vmul.f32 %v2031, 0.7978846
    %v2037 = vmul.f32 %v2032, 0.7978846
    %v2038 = vmul.f32 %v2033, 0.7978846
    %v2039 = vmul.f32 %v2034, 0.7978846
    %v2040 = vtanh.pop %v2035
    %v2041 = vtanh.pop %v2036
    %v2042 = vtanh.pop %v2037
    %v2043 = vtanh.pop %v2038
    %v2044 = vtanh.pop %v2039
    %v2045 = vadd.f32 %v2040, 1.0
    %v2046 = vadd.f32 %v2041, 1.0
    %v2047 = vadd.f32 %v2042, 1.0
    %v2048 = vadd.f32 %v2043, 1.0
    %v2049 = vadd.f32 %v2044, 1.0
    %v2050 = vmul.f32 %v2045, 0.5
    %v2051 = vmul.f32 %v2046, 0.5
    %v2052 = vmul.f32 %v2047, 0.5
    %v2053 = vmul.f32 %v2048, 0.5
    %v2054 = vmul.f32 %v2049, 0.5
    %v2055 = vmul.f32 %v2001, %v2050
    %v2056 = vmul.f32 %v2004, %v2051
    %v2057 = vmul.f32 %v2007, %v2052
    %v2058 = vmul.f32 %v2010, %v2053
    %v2059 = vmul.f32 %v2013, %v2054
    %v2061 = vperm.slane %v131, 0
    %2063 = vmatpush.msra.mxu0 %v130
    %2064 = vmatpush.msra.mxu0 %v129
    %2065 = vmatpush.msra.mxu0 %v128
    %2066 = vmatpush.msra.mxu0 %v127
    %2067 = vmatpush.msra.mxu0 %v126
    %2068 = vmatpush.msra.mxu0 %v125
    %2069 = vmatpush.msra.mxu0 %v124
    %2070 = vmatpush.msra.mxu0 %v123
    %2071 = vmatpush.msra.mxu0 %v122
    %2072 = vmatpush.msra.mxu0 %v121
    %2073 = vmatpush.msra.mxu0 %v120
    %2074 = vmatpush.msra.mxu0 %v119
    %2075 = vmatpush.msra.mxu0 %v118
    %2076 = vmatpush.msra.mxu0 %v117
    %2077 = vmatpush.msra.mxu0 %v116
    %2078 = vmatpush.msra.mxu0 %v115
    %2079 = vmatmul.f32.gmra.mxu0 %v2055
    %v2080 = vpop.f32.mrf.mxu0
    %v2081 = vadd.f32 %v2061, %v2080
    %2082 = vmatmul.f32.gmra.mxu0 %v2056
    %v2083 = vpop.f32.mrf.mxu0
    %v2084 = vadd.f32 %v2061, %v2083
    %2085 = vmatmul.f32.gmra.mxu0 %v2057
    %v2086 = vpop.f32.mrf.mxu0
    %v2087 = vadd.f32 %v2061, %v2086
    %2088 = vmatmul.f32.gmra.mxu0 %v2058
    %v2089 = vpop.f32.mrf.mxu0
    %v2090 = vadd.f32 %v2061, %v2089
    %2091 = vmatmul.f32.gmra.mxu0 %v2059
    %v2092 = vpop.f32.mrf.mxu0
    %v2093 = vadd.f32 %v2061, %v2092
    %2094 = vdwg.mxu0
    %v2095 = vadd.f32 %v1834, %v2081
    %v2096 = vadd.f32 %v1835, %v2084
    %v2097 = vadd.f32 %v1836, %v2087
    %v2098 = vadd.f32 %v1837, %v2090
    %v2099 = vadd.f32 %v1838, %v2093
    %v2100 = vld [vmem:[%s14] sm:$0x1]
    %v2101 = vld [vmem:[%s15] sm:$0x1]
    %v2102 = vsel %vm132, %v2095, 0.0
    %2103 = vadd.xlane.f32.xlu0 %v2102
    %v2104 = vpop.xlane.xlu0 %2103
    %v2105 = vsel %vm132, %v2096, 0.0
    %2106 = vadd.xlane.f32.xlu0 %v2105
    %v2107 = vpop.xlane.xlu0 %2106
    %v2108 = vsel %vm132, %v2097, 0.0
    %2109 = vadd.xlane.f32.xlu0 %v2108
    %v2110 = vpop.xlane.xlu0 %2109
    %v2111 = vsel %vm132, %v2098, 0.0
    %2112 = vadd.xlane.f32.xlu0 %v2111
    %v2113 = vpop.xlane.xlu0 %2112
    %v2114 = vsel %vm145, %v2099, 0.0
    %2115 = vadd.xlane.f32.xlu0 %v2114
    %v2116 = vpop.xlane.xlu0 %2115
    %v2117 = vmul.f32 %v2104, %v155
    %v2118 = vmul.f32 %v2107, %v155
    %v2119 = vmul.f32 %v2110, %v155
    %v2120 = vmul.f32 %v2113, %v155
    %v2121 = vmul.f32 %v2116, %v155
    %v2122 = vsub.f32 %v2095, %v2117
    %v2123 = vsub.f32 %v2096, %v2118
    %v2124 = vsub.f32 %v2097, %v2119
    %v2125 = vsub.f32 %v2098, %v2120
    %v2126 = vsub.f32 %v2099, %v2121
    %v2127 = vmul.f32 %v2122, %v2122
    %v2128 = vmul.f32 %v2123, %v2123
    %v2129 = vmul.f32 %v2124, %v2124
    %v2130 = vmul.f32 %v2125, %v2125
    %v2131 = vmul.f32 %v2126, %v2126
    %v2132 = vsel %vm132, %v2127, 0.0
    %2133 = vadd.xlane.f32.xlu0 %v2132
    %v2134 = vpop.xlane.xlu0 %2133
    %v2135 = vsel %vm132, %v2128, 0.0
    %2136 = vadd.xlane.f32.xlu0 %v2135
    %v2137 = vpop.xlane.xlu0 %2136
    %v2138 = vsel %vm132, %v2129, 0.0
    %2139 = vadd.xlane.f32.xlu0 %v2138
    %v2140 = vpop.xlane.xlu0 %2139
    %v2141 = vsel %vm132, %v2130, 0.0
    %2142 = vadd.xlane.f32.xlu0 %v2141
    %v2143 = vpop.xlane.xlu0 %2142
    %v2144 = vsel %vm145, %v2131, 0.0
    %2145 = vadd.xlane.f32.xlu0 %v2144
    %v2146 = vpop.xlane.xlu0 %2145
    %v2147 = vmul.f32 %v2134, %v155
    %v2148 = vmul.f32 %v2137, %v155
    %v2149 = vmul.f32 %v2140, %v155
    %v2150 = vmul.f32 %v2143, %v155
    %v2151 = vmul.f32 %v2146, %v155
    %v2152 = vadd.f32 %v2147, 1e-05
    %v2153 = vadd.f32 %v2148, 1e-05
    %v2154 = vadd.f32 %v2149, 1e-05
    %v2155 = vadd.f32 %v2150, 1e-05
    %v2156 = vadd.f32 %v2151, 1e-05
    %v2157 = vrsqrt.pop %v2152
    %v2158 = vmul.f32 %v2157, %v2152
    %v2159 = vmul.f32 %v2158, %v2157
    %v2160 = vmul.f32 0.5, %v2159
    %v2161 = vsub.f32 1.5, %v2160
    %v2162 = vmul.f32 %v2157, %v2161
    %vm2163 = vweird.f32 %v2152
    %vm2164 = vweird.f32 %v2157
    %vm2165 = vmor %vm2163, %vm2164
    %v2166 = vsel %vm2165, %v2157, %v2162
    %v2167 = vrsqrt.pop %v2153
    %v2168 = vmul.f32 %v2167, %v2153
    %v2169 = vmul.f32 %v2168, %v2167
    %v2170 = vmul.f32 0.5, %v2169
    %v2171 = vsub.f32 1.5, %v2170
    %v2172 = vmul.f32 %v2167, %v2171
    %vm2173 = vweird.f32 %v2153
    %vm2174 = vweird.f32 %v2167
    %vm2175 = vmor %vm2173, %vm2174
    %v2176 = vsel %vm2175, %v2167, %v2172
    %v2177 = vrsqrt.pop %v2154
    %v2178 = vmul.f32 %v2177, %v2154
    %v2179 = vmul.f32 %v2178, %v2177
    %v2180 = vmul.f32 0.5, %v2179
    %v2181 = vsub.f32 1.5, %v2180
    %v2182 = vmul.f32 %v2177, %v2181
    %vm2183 = vweird.f32 %v2154
    %vm2184 = vweird.f32 %v2177
    %vm2185 = vmor %vm2183, %vm2184
    %v2186 = vsel %vm2185, %v2177, %v2182
    %v2187 = vrsqrt.pop %v2155
    %v2188 = vmul.f32 %v2187, %v2155
    %v2189 = vmul.f32 %v2188, %v2187
    %v2190 = vmul.f32 0.5, %v2189
    %v2191 = vsub.f32 1.5, %v2190
    %v2192 = vmul.f32 %v2187, %v2191
    %vm2193 = vweird.f32 %v2155
    %vm2194 = vweird.f32 %v2187
    %vm2195 = vmor %vm2193, %vm2194
    %v2196 = vsel %vm2195, %v2187, %v2192
    %v2197 = vrsqrt.pop %v2156
    %v2198 = vmul.f32 %v2197, %v2156
    %v2199 = vmul.f32 %v2198, %v2197
    %v2200 = vmul.f32 0.5, %v2199
    %v2201 = vsub.f32 1.5, %v2200
    %v2202 = vmul.f32 %v2197, %v2201
    %vm2203 = vweird.f32 %v2156
    %vm2204 = vweird.f32 %v2197
    %vm2205 = vmor %vm2203, %vm2204
    %v2206 = vsel %vm2205, %v2197, %v2202
    %v2207 = vmul.f32 %v2122, %v2166
    %v2208 = vmul.f32 %v2123, %v2176
    %v2209 = vmul.f32 %v2124, %v2186
    %v2210 = vmul.f32 %v2125, %v2196
    %v2211 = vmul.f32 %v2126, %v2206
    %v2213 = vperm.slane %v2100, 0
    %v2215 = vmul.f32 %v2207, %v2213
    %v2216 = vmul.f32 %v2208, %v2213
    %v2217 = vmul.f32 %v2209, %v2213
    %v2218 = vmul.f32 %v2210, %v2213
    %v2219 = vmul.f32 %v2211, %v2213
    %v2221 = vperm.slane %v2101, 0
    %v2223 = vadd.f32 %v2215, %v2221
    %v2224 = vadd.f32 %v2216, %v2221
    %v2225 = vadd.f32 %v2217, %v2221
    %v2226 = vadd.f32 %v2218, %v2221
    %v2227 = vadd.f32 %v2219, %v2221
    %v2228 = vld [vmem:[%s16] sm:$0xff]
    %v2229 = vld [vmem:[%s16 + $0x8] sm:$0xff]
    %v2230 = vld [vmem:[%s16 + $0x10] sm:$0xff]
    %v2231 = vld [vmem:[%s16 + $0x18] sm:$0xff]
    %v2232 = vld [vmem:[%s17] sm:$0x1]
    %v2234 = vperm.slane %v2232, 0
    %v2237 = vsel %vm132, %v2223, 0
    %v2240 = vsel %vm132, %v2224, 0
    %v2243 = vsel %vm132, %v2225, 0
    %v2246 = vsel %vm132, %v2226, 0
    %v2249 = vsel %vm132, %v2227, 0
    %2251 = vmatpush.msra.mxu0 0.0
    %2252 = vmatpush.msra.mxu0 0.0
    %2253 = vmatpush.msra.mxu0 0.0
    %2254 = vmatpush.msra.mxu0 0.0
    %2255 = vmatpush.msra.mxu0 0.0
    %2256 = vmatpush.msra.mxu0 0.0
    %2257 = vmatpush.msra.mxu0 0.0
    %2258 = vmatpush.msra.mxu0 0.0
    %2259 = vmatpush.msra.mxu0 0.0
    %2260 = vmatpush.msra.mxu0 0.0
    %2261 = vmatpush.msra.mxu0 0.0
    %2262 = vmatpush.msra.mxu0 0.0
    %2263 = vmatpush.msra.mxu0 %v2231
    %2264 = vmatpush.msra.mxu0 %v2230
    %2265 = vmatpush.msra.mxu0 %v2229
    %2266 = vmatpush.msra.mxu0 %v2228
    %2267 = vmatmul.f32.gmra.mxu0 %v2237
    %v2268 = vpop.f32.mrf.mxu0
    %v2269 = vadd.f32 %v2234, %v2268
    %2270 = vmatmul.f32.gmra.mxu0 %v2240
    %v2271 = vpop.f32.mrf.mxu0
    %v2272 = vadd.f32 %v2234, %v2271
    %2273 = vmatmul.f32.gmra.mxu0 %v2243
    %v2274 = vpop.f32.mrf.mxu0
    %v2275 = vadd.f32 %v2234, %v2274
    %2276 = vmatmul.f32.gmra.mxu0 %v2246
    %v2277 = vpop.f32.mrf.mxu0
    %v2278 = vadd.f32 %v2234, %v2277
    %2279 = vmatmul.f32.gmra.mxu0 %v2249
    %v2280 = vpop.f32.mrf.mxu0
    %v2281 = vadd.f32 %v2234, %v2280
    %2282 = vdwg.mxu0
    %v2286 = vrot.slane %v2269, 1
    %v2287 = vrot.slane %v2272, 1
    %v2288 = vsel %vm1046, %v2286, %v2287
    %v2289 = vrot.slane %v2275, 1
    %v2290 = vsel %vm1046, %v2287, %v2289
    %vm2295 = vcmask 1045504
    %v2296 = vrot.slane %v2275, 2
    %v2297 = vrot.slane %v2278, 2
    %v2298 = vsel %vm2295, %v2296, %v2297
    %v2299 = vrot.slane %v2281, 2
    %v2300 = vsel %vm2295, %v2297, %v2299
    %2303 = vst.msk [vmem:[#allocation2] sm:$0xff] %vm1036, %v2288
    %2304 = vst.msk [vmem:[#allocation2 + $0x8] sm:$0xff] %vm1036, %v2290
    %2305 = vst.msk [vmem:[#allocation2 + $0x10] sm:$0xff] %vm1036, %v2298
    %2306 = vst.msk [vmem:[#allocation2 + $0x18] sm:$0xff] %vm1036, %v2300
    %v2307 = vld [vmem:[%s18] sm:$0xff]
    %v2308 = vld [vmem:[%s18 + $0x8] sm:$0xff]
    %v2309 = vld [vmem:[%s18 + $0x10] sm:$0xff]
    %v2310 = vld [vmem:[%s18 + $0x18] sm:$0xff]
    %vm2311 = vcmp.ne.f32.partialorder %v2307, %v2307
    %vm2312 = vcmp.ne.f32.partialorder %v2308, %v2308
    %vm2313 = vcmp.ne.f32.partialorder %v2309, %v2309
    %vm2314 = vcmp.ne.f32.partialorder %v2310, %v2310
    %v2315 = vsel %vm2311, 0.0, %v2307
    %v2316 = vsel %vm2312, 0.0, %v2308
    %v2317 = vsel %vm2313, 0.0, %v2309
    %v2318 = vsel %vm2314, 0.0, %v2310
    %v2319 = vld [vmem:[%s19] sm:$0xff]
    %v2320 = vld [vmem:[%s19 + $0x8] sm:$0xff]
    %v2321 = vld [vmem:[%s19 + $0x10] sm:$0xff]
    %v2322 = vld [vmem:[%s19 + $0x18] sm:$0xff]
    %v2323 = vsub.f32 %v2288, %v2315
    %v2324 = vsub.f32 %v2290, %v2316
    %v2325 = vsub.f32 %v2298, %v2317
    %v2326 = vsub.f32 %v2300, %v2318
    %v2327 = vmul.f32 %v2323, %v2323
    %v2328 = vmul.f32 %v2324, %v2324
    %v2329 = vmul.f32 %v2325, %v2325
    %v2330 = vmul.f32 %v2326, %v2326
    %v2331 = vsel %vm1036, %v2327, 0.0
    %2332 = vadd.xlane.f32.xlu0 %v2331
    %v2333 = vpop.xlane.xlu0 %2332
    %v2334 = vsel %vm1036, %v2328, 0.0
    %2335 = vadd.xlane.f32.xlu0 %v2334
    %v2336 = vpop.xlane.xlu0 %2335
    %v2337 = vsel %vm1036, %v2329, 0.0
    %2338 = vadd.xlane.f32.xlu0 %v2337
    %v2339 = vpop.xlane.xlu0 %2338
    %v2340 = vsel %vm1036, %v2330, 0.0
    %2341 = vadd.xlane.f32.xlu0 %v2340
    %v2342 = vpop.xlane.xlu0 %2341
    %v2343 = vrcp.pop 16.0
    %v2344 = vmul.f32 16.0, %v2343
    %v2345 = vsub.f32 1.0, %v2344
    %v2346 = vmul.f32 %v2343, %v2345
    %v2347 = vadd.f32 %v2343, %v2346
    %vm2348 = vweird.f32 %v2343
    %v2349 = vsel %vm2348, %v2343, %v2347
    %v2350 = vmul.f32 %v2333, %v2349
    %v2351 = vmul.f32 %v2336, %v2349
    %v2352 = vmul.f32 %v2339, %v2349
    %v2353 = vmul.f32 %v2342, %v2349
    %vm2354 = vcmp.gt.f32.partialorder %v2319, 0.0
    %vm2355 = vcmp.gt.f32.partialorder %v2320, 0.0
    %vm2356 = vcmp.gt.f32.partialorder %v2321, 0.0
    %vm2357 = vcmp.gt.f32.partialorder %v2322, 0.0
    %v2358 = vsel %vm2354, %v2350, 0.0
    %v2359 = vsel %vm2355, %v2351, 0.0
    %v2360 = vsel %vm2356, %v2352, 0.0
    %v2361 = vsel %vm2357, %v2353, 0.0
    %v2362 = vmul.f32 %v2358, %v2319
    %v2363 = vmul.f32 %v2359, %v2320
    %v2364 = vmul.f32 %v2360, %v2321
    %v2365 = vmul.f32 %v2361, %v2322
    %vm2366 = vcmask 7168
    %v2367 = vsel %vm2366, %v2362, 0.0
    %v2368 = vsel %vm2366, %v2363, 0.0
    %v2369 = vadd.f32 %v2367, %v2368
    %v2370 = vsel %vm2366, %v2364, 0.0
    %v2371 = vadd.f32 %v2369, %v2370
    %v2372 = vsel %vm2366, %v2365, 0.0
    %v2373 = vadd.f32 %v2371, %v2372
    %v2374 = vrot.slane %v2373, 4
    %v2375 = vadd.f32 %v2373, %v2374
    %v2376 = vrot.slane %v2375, 2
    %v2377 = vadd.f32 %v2375, %v2376
    %v2378 = vrot.slane %v2377, 1
    %v2379 = vadd.f32 %v2377, %v2378
    %vm2380 = vcmask 0
    %2381 = vst.msk [vmem:[#allocation4] sm:$0x1] %vm2380, %v2379
    %v2382 = vsel %vm2366, %v2319, 0.0
    %v2383 = vsel %vm2366, %v2320, 0.0
    %v2384 = vadd.f32 %v2382, %v2383
    %v2385 = vsel %vm2366, %v2321, 0.0
    %v2386 = vadd.f32 %v2384, %v2385
    %v2387 = vsel %vm2366, %v2322, 0.0
    %v2388 = vadd.f32 %v2386, %v2387
    %v2389 = vrot.slane %v2388, 4
    %v2390 = vadd.f32 %v2388, %v2389
    %v2391 = vrot.slane %v2390, 2
    %v2392 = vadd.f32 %v2390, %v2391
    %v2393 = vrot.slane %v2392, 1
    %v2394 = vadd.f32 %v2392, %v2393
    %2395 = vst.msk [vmem:[#allocation6] sm:$0x1] %vm2380, %v2394
    // Predicated region
    $region82: #{_lambda_.5} parent=1 // pred_check
      _
    $region83: #{_lambda_.5} parent=1 // pred_check_branch
      %2397 = sbr.rel (0) target = $region85
    $region84: #{_lambda_.5} parent=1 // pred_region
      %2399 = vsyncadd [#allocation3], 0
      %s2400 = sshll.u32 [#allocation2], 4
      %s2401 = int_to_ptr.vmem [resolvable:$true] %s2400
      %s2402 = sshll.u32 %s20, 4
      %s2403 = int_to_ptr.hbm [resolvable:$true] %s2402
      %2408 = dma.vmem_to_hbm [thread:$0]  %s2401, 512, %s2403, [#allocation3], 128, 128, 8
    $region85: #{_lambda_.5} parent=1 // pred_fallthru
      _
    // Predicated region
    $region86: #{_lambda_.5} parent=1 // pred_check
      _
    $region87: #{_lambda_.5} parent=1 // pred_check_branch
      %2410 = sbr.rel (0) target = $region89
    $region88: #{_lambda_.5} parent=1 // pred_region
      %2412 = vsyncadd [#allocation5], 0
      %s2414 = sshll.u32 [#allocation4], 4
      %s2415 = int_to_ptr.vmem [resolvable:$true] %s2414
      %s2416 = sshll.u32 %s21, 4
      %s2417 = int_to_ptr.hbm [resolvable:$true] %s2416
      %2419 = dma.vmem_to_hbm [thread:$0]  %s2415, 16, %s2417, [#allocation5]
    $region89: #{_lambda_.5} parent=1 // pred_fallthru
      _
    // Predicated region
    $region90: #{_lambda_.5} parent=1 // pred_check
      _
    $region91: #{_lambda_.5} parent=1 // pred_check_branch
      %2421 = sbr.rel (0) target = $region93
    $region92: #{_lambda_.5} parent=1 // pred_region
      %2423 = vsyncadd [#allocation5], 0
      %s2425 = sshll.u32 [#allocation6], 4
      %s2426 = int_to_ptr.vmem [resolvable:$true] %s2425
      %s2427 = sshll.u32 %s22, 4
      %s2428 = int_to_ptr.hbm [resolvable:$true] %s2427
      %2430 = dma.vmem_to_hbm [thread:$0]  %s2426, 16, %s2428, [#allocation5]
    $region93: #{_lambda_.5} parent=1 // pred_fallthru
      _
    // Predicated region
    $region94: #{_lambda_.5} parent=1 // pred_check
      _
    $region95: #{_lambda_.5} parent=1 // pred_check_branch
      %2432 = sbr.rel (0) target = $region97
    $region96: #{_lambda_.5} parent=1 // pred_region
      %2434 = dma.done [#allocation3], 512
    $region97: #{_lambda_.5} parent=1 // pred_fallthru
      _
    // Predicated region
    $region98: #{_lambda_.5} parent=1 // pred_check
      _
    $region99: #{_lambda_.5} parent=1 // pred_check_branch
      %2436 = sbr.rel (0) target = $region101
    $region100: #{_lambda_.5} parent=1 // pred_region
      %2438 = dma.done [#allocation5], 16
    $region101: #{_lambda_.5} parent=1 // pred_fallthru
      _
    // Predicated region
    $region102: #{_lambda_.5} parent=1 // pred_check
      _
    $region103: #{_lambda_.5} parent=1 // pred_check_branch
      %2440 = sbr.rel (0) target = $region105
    $region104: #{_lambda_.5} parent=1 // pred_region
      %2442 = dma.done [#allocation5], 16
    $region105: #{_lambda_.5} parent=1 // pred_fallthru
      _
    %2443 = vsyncpa [#allocation3], 1
    %2444 = vsyncpa [#allocation5], 1

</llo_original>
